<compile_context>
chip_gen: v6e
topology: v6e:2x2x1
jax: 0.10.0
libtpu: 0.0.40
codegen_flags: <defaults>
</compile_context>

<pallas_src>
import functools

import jax
import jax.numpy as jnp
from jax.experimental import pallas as pl
from jax.experimental.pallas import tpu as pltpu


# ------------------------------- configuration ------------------------------

class Config:
    vocab_size = 128
    hidden_size = 32
    num_heads = 2
    intermediate_size = 64
    num_layers = 2
    max_position_embeddings = 16
    type_vocab_size = 2
    layer_norm_eps = 1e-12


# ------------------------------ fused encoder kernel ------------------------

def _encoder_kernel(emb_ref, mask_ref,
                    emb_g_ref, emb_b_ref,
                    wqkv_ref, bqkv_ref,
                    wo_ref, bo_ref, ln1_g_ref, ln1_b_ref,
                    w1_ref, b1_ref, w2_ref, b2_ref, ln2_g_ref, ln2_b_ref,
                    o_ref, *, num_layers, num_heads, head_dim, eps):
    """Entire BERT encoder for one batch row (grid step = one sequence)."""
    S, H = emb_ref.shape[1], emb_ref.shape[2]

    def layer_norm(y, g, b):
        mu = jnp.mean(y, axis=-1, keepdims=True)
        var = jnp.mean((y - mu) * (y - mu), axis=-1, keepdims=True)
        # note: eps=1e-12 is effectively 0 in f32; matches the reference.
        return (y - mu) * jax.lax.rsqrt(var + eps) * g + b

    def gelu(y):
        c = 0.7978845608028654  # sqrt(2/pi); BERT "gelu_new" tanh approximation
        return 0.5 * y * (1.0 + jnp.tanh(c * (y + 0.044715 * y * y * y)))

    x = emb_ref[0]                                      # (S, H) f32
    bias = mask_ref[0]                                  # (1, S) additive key-mask
    x = layer_norm(x, emb_g_ref[...], emb_b_ref[...])   # embedding LayerNorm

    for l in range(num_layers):                         # static unrolled, L=2
        # ---- fused QKV projection (attention scale pre-folded into Q) ------
        qkv = jnp.dot(x.astype(jnp.bfloat16), wqkv_ref[l],
                      preferred_element_type=jnp.float32) + bqkv_ref[l]   # (S,3H)
        q = qkv[:, :H].reshape(S, num_heads, head_dim)
        k = qkv[:, H:2 * H].reshape(S, num_heads, head_dim)
        v = qkv[:, 2 * H:].reshape(S, num_heads, head_dim)

        # ---- attention: all heads in one batched matmul per step -----------
        s = jnp.einsum('qhd,khd->hqk',
                       q.astype(jnp.bfloat16), k.astype(jnp.bfloat16),
                       preferred_element_type=jnp.float32)     # (nh, Sq, Sk)
        s = s + bias                                           # mask keys
        s = s - jnp.max(s, axis=-1, keepdims=True)
        p = jnp.exp(s)
        # approx reciprocal -> softmax rows sum to ~1 (fine for inference)
        p = p * pl.reciprocal(jnp.sum(p, axis=-1, keepdims=True), approx=True)
        ctx = jnp.einsum('hqk,khd->qhd',
                         p.astype(jnp.bfloat16), v.astype(jnp.bfloat16),
                         preferred_element_type=jnp.float32)   # (Sq, nh, dh)
        ctx = ctx.reshape(S, H)                                # lane-dense, no concat

        # ---- attention output projection + residual + LayerNorm ------------
        y = jnp.dot(ctx.astype(jnp.bfloat16), wo_ref[l],
                    preferred_element_type=jnp.float32) + bo_ref[l] + x
        x = layer_norm(y, ln1_g_ref[l], ln1_b_ref[l])

        # ---- FFN up + GELU ---------------------------------------------------
        h = jnp.dot(x.astype(jnp.bfloat16), w1_ref[l],
                    preferred_element_type=jnp.float32) + b1_ref[l]
        h = gelu(h)

        # ---- FFN down + residual + LayerNorm ---------------------------------
        y = jnp.dot(h.astype(jnp.bfloat16), w2_ref[l],
                    preferred_element_type=jnp.float32) + b2_ref[l] + x
        x = layer_norm(y, ln2_g_ref[l], ln2_b_ref[l])

    o_ref[0] = x


# --------------------------------- parameters --------------------------------

def init_params(key, cfg):
    """Deterministic synthetic f32 parameters; QKV pre-fused to (H, 3H)."""
    H, I = cfg.hidden_size, cfg.intermediate_size

    def nrm(k, shape):
        return 0.02 * jax.random.normal(k, shape, dtype=jnp.float32)

    keys = jax.random.split(key, 4 + cfg.num_layers)
    params = {
        "word_emb": nrm(keys[0], (cfg.vocab_size, H)),
        "pos_emb": nrm(keys[1], (cfg.max_position_embeddings, H)),
        "type_emb": nrm(keys[2], (cfg.type_vocab_size, H)),
        "emb_ln_g": jnp.ones((H,), jnp.float32),
        "emb_ln_b": jnp.zeros((H,), jnp.float32),
        "pooler_w": nrm(keys[3], (H, H)),
        "pooler_b": jnp.zeros((H,), jnp.float32),
        "layers": [],
    }
    for l in range(cfg.num_layers):
        lk = jax.random.split(keys[4 + l], 4)
        params["layers"].append({
            "wqkv": nrm(lk[0], (H, 3 * H)), "bqkv": jnp.zeros((3 * H,), jnp.float32),
            "wo": nrm(lk[1], (H, H)), "bo": jnp.zeros((H,), jnp.float32),
            "ln1_g": jnp.ones((H,), jnp.float32), "ln1_b": jnp.zeros((H,), jnp.float32),
            "w1": nrm(lk[2], (H, I)), "b1": jnp.zeros((I,), jnp.float32),
            "w2": nrm(lk[3], (I, H)), "b2": jnp.zeros((H,), jnp.float32),
            "ln2_g": jnp.ones((H,), jnp.float32), "ln2_b": jnp.zeros((H,), jnp.float32),
        })
    return params


def prepare_kernel_params(params, cfg):
    """One-time prep OUTSIDE jit: stack per-layer weights along a layer axis,
    cast matmul weights to bf16 once, fold the attention scale into the Q
    columns of the fused QKV weight and bias."""
    H = cfg.hidden_size
    scale = float(H // cfg.num_heads) ** -0.5

    def stack(name):
        return jnp.stack([lp[name] for lp in params["layers"]], axis=0)

    q_scale = jnp.concatenate(
        [jnp.full((H,), scale, jnp.float32), jnp.ones((2 * H,), jnp.float32)])
    wqkv = stack("wqkv") * q_scale[None, None, :]          # (L, H, 3H)
    bqkv = stack("bqkv") * q_scale[None, :]                # (L, 3H)

    return {
        "emb_ln_g": params["emb_ln_g"].reshape(1, H),
        "emb_ln_b": params["emb_ln_b"].reshape(1, H),
        "wqkv": wqkv.astype(jnp.bfloat16),
        "bqkv": bqkv[:, None, :].astype(jnp.float32),
        "wo": stack("wo").astype(jnp.bfloat16),
        "bo": stack("bo")[:, None, :],
        "ln1_g": stack("ln1_g")[:, None, :],
        "ln1_b": stack("ln1_b")[:, None, :],
        "w1": stack("w1").astype(jnp.bfloat16),
        "b1": stack("b1")[:, None, :],
        "w2": stack("w2").astype(jnp.bfloat16),
        "b2": stack("b2")[:, None, :],
        "ln2_g": stack("ln2_g")[:, None, :],
        "ln2_b": stack("ln2_b")[:, None, :],
    }


# ----------------------------------- forward ---------------------------------

def seq_encoder_forward(params, kparams, input_ids, attention_mask, cfg):
    """Returns (last_hidden_state (B,S,H), pooler_output (B,H)) like BERT."""
    B, S = input_ids.shape
    H, I, L = cfg.hidden_size, cfg.intermediate_size, cfg.num_layers
    nh = cfg.num_heads
    dh = H // nh

    # embeddings (gather = plain-JAX glue); token_type_ids = 0
    word = jnp.take(params["word_emb"], input_ids, axis=0)            # (B,S,H)
    pos = params["pos_emb"][:S][None, :, :]
    typ = params["type_emb"][0][None, None, :]
    emb = (word + pos + typ).astype(jnp.float32)                      # (B,S,H)

    # additive key-mask bias (B,1,S): 0 for real tokens, -1e9 for padding
    mask_bias = ((1.0 - attention_mask.astype(jnp.float32)) * -1e9).reshape(B, 1, S)

    def full(shape):
        return pl.BlockSpec(shape, lambda b: (0,) * len(shape))

    encoder = pl.pallas_call(
        functools.partial(_encoder_kernel, num_layers=L, num_heads=nh,
                          head_dim=dh, eps=cfg.layer_norm_eps),
        out_shape=jax.ShapeDtypeStruct((B, S, H), jnp.float32),
        grid=(B,),
        in_specs=[
            pl.BlockSpec((1, S, H), lambda b: (b, 0, 0)),   # embeddings
            pl.BlockSpec((1, 1, S), lambda b: (b, 0, 0)),   # mask bias
            full((1, H)), full((1, H)),                     # embedding LN
            full((L, H, 3 * H)), full((L, 1, 3 * H)),       # fused QKV (bf16)
            full((L, H, H)), full((L, 1, H)),               # Wo, bo
            full((L, 1, H)), full((L, 1, H)),               # ln1 gamma/beta
            full((L, H, I)), full((L, 1, I)),               # W1, b1
            full((L, I, H)), full((L, 1, H)),               # W2, b2
            full((L, 1, H)), full((L, 1, H)),               # ln2 gamma/beta
        ],
        out_specs=pl.BlockSpec((1, S, H), lambda b: (b, 0, 0)),
        compiler_params=pltpu.CompilerParams(dimension_semantics=("parallel",)),
    )
    last_hidden_state = encoder(
        emb, mask_bias,
        kparams["emb_ln_g"], kparams["emb_ln_b"],
        kparams["wqkv"], kparams["bqkv"],
        kparams["wo"], kparams["bo"], kparams["ln1_g"], kparams["ln1_b"],
        kparams["w1"], kparams["b1"], kparams["w2"], kparams["b2"],
        kparams["ln2_g"], kparams["ln2_b"])

    # pooler: tanh(W * h_[CLS] + b) — (B,H)x(H,H) is too small to amortize a
    # pallas_call launch, so it stays plain JAX.
    cls = last_hidden_state[:, 0, :]
    pooler_output = jnp.tanh(cls @ params["pooler_w"] + params["pooler_b"])
    return last_hidden_state, pooler_output


# ---------------------------- pure-JAX reference ------------------------------

def _reference_forward(params, input_ids, attention_mask, cfg):
    B, S = input_ids.shape
    H, nh = cfg.hidden_size, cfg.num_heads
    dh = H // nh

    def ln(x, g, b):
        mu = x.mean(-1, keepdims=True)
        var = ((x - mu) ** 2).mean(-1, keepdims=True)
        return (x - mu) * jax.lax.rsqrt(var + cfg.layer_norm_eps) * g + b

    def gelu(y):
        c = 0.7978845608028654
        return 0.5 * y * (1.0 + jnp.tanh(c * (y + 0.044715 * y ** 3)))

    word = jnp.take(params["word_emb"], input_ids, axis=0)
    emb = word + params["pos_emb"][:S][None] + params["type_emb"][0][None, None]
    x = ln(emb.reshape(B * S, H), params["emb_ln_g"], params["emb_ln_b"])
    bias = ((1.0 - attention_mask.astype(jnp.float32)) * -1e9)[:, None, None, :]
    for lp in params["layers"]:
        qkv = x @ lp["wqkv"] + lp["bqkv"]
        q, k, v = jnp.split(qkv, 3, axis=-1)

        def sh(t):
            return t.reshape(B, S, nh, dh).transpose(0, 2, 1, 3)

        q, k, v = sh(q), sh(k), sh(v)
        s = jnp.einsum("bhqd,bhkd->bhqk", q, k) * (dh ** -0.5) + bias
        p = jax.nn.softmax(s, axis=-1)
        ctx = jnp.einsum("bhqk,bhkd->bhqd", p, v).transpose(0, 2, 1, 3).reshape(B * S, H)
        x = ln(ctx @ lp["wo"] + lp["bo"] + x, lp["ln1_g"], lp["ln1_b"])
        hdd = gelu(x @ lp["w1"] + lp["b1"])
        x = ln(hdd @ lp["w2"] + lp["b2"] + x, lp["ln2_g"], lp["ln2_b"])
    lhs = x.reshape(B, S, H)
    pooled = jnp.tanh(lhs[:, 0, :] @ params["pooler_w"] + params["pooler_b"])
    return lhs, pooled


# ------------------------------------ main ------------------------------------

if __name__ == "__main__":
    cfg = Config()
    B, S = 2, 8

    key = jax.random.PRNGKey(0)
    k_ids, k_params = jax.random.split(key)

    input_ids = jax.random.randint(k_ids, (B, S), 0, cfg.vocab_size, dtype=jnp.int32)
    attention_mask = jnp.array(
        [[1, 1, 1, 1, 1, 1, 1, 1],
         [1, 1, 1, 1, 1, 1, 0, 0]], dtype=jnp.int32)   # second example padded

    params = init_params(k_params, cfg)
    kparams = prepare_kernel_params(params, cfg)       # bf16 cast + scale fold, once

    forward = jax.jit(functools.partial(seq_encoder_forward, cfg=cfg))
    last_hidden_state, pooler_output = forward(params, kparams, input_ids, attention_mask)
    jax.block_until_ready((last_hidden_state, pooler_output))

    assert last_hidden_state.shape == (B, S, cfg.hidden_size)
    assert pooler_output.shape == (B, cfg.hidden_size)
    assert bool(jnp.all(jnp.isfinite(last_hidden_state)))
    assert bool(jnp.all(jnp.isfinite(pooler_output)))

    # correctness vs pure-JAX/f32 reference; bf16 MXU operands + approx
    # reciprocal softmax justify a loose absolute tolerance.
    ref_lhs, ref_pool = _reference_forward(params, input_ids, attention_mask, cfg)
    assert float(jnp.max(jnp.abs(last_hidden_state - ref_lhs))) < 0.1
    assert float(jnp.max(jnp.abs(pooler_output - ref_pool))) < 0.1

    print("KERNEL_OK")
</pallas_src>

<mosaic_0001>
module attributes {stable_mosaic.version = 11 : i64} {
  func.func @_encoder_kernel(%arg0: i32, %arg1: memref<1x8x32xf32, #tpu.memory_space<vmem>>, %arg2: memref<1x1x8xf32, #tpu.memory_space<vmem>>, %arg3: memref<1x32xf32, #tpu.memory_space<vmem>>, %arg4: memref<1x32xf32, #tpu.memory_space<vmem>>, %arg5: memref<2x32x96xbf16, #tpu.memory_space<vmem>>, %arg6: memref<2x1x96xf32, #tpu.memory_space<vmem>>, %arg7: memref<2x32x32xbf16, #tpu.memory_space<vmem>>, %arg8: memref<2x1x32xf32, #tpu.memory_space<vmem>>, %arg9: memref<2x1x32xf32, #tpu.memory_space<vmem>>, %arg10: memref<2x1x32xf32, #tpu.memory_space<vmem>>, %arg11: memref<2x32x64xbf16, #tpu.memory_space<vmem>>, %arg12: memref<2x1x64xf32, #tpu.memory_space<vmem>>, %arg13: memref<2x64x32xbf16, #tpu.memory_space<vmem>>, %arg14: memref<2x1x32xf32, #tpu.memory_space<vmem>>, %arg15: memref<2x1x32xf32, #tpu.memory_space<vmem>>, %arg16: memref<2x1x32xf32, #tpu.memory_space<vmem>>, %arg17: memref<1x8x32xf32, #tpu.memory_space<vmem>>) attributes {dimension_semantics = [#tpu.dimension_semantics<parallel>], iteration_bounds = array<i64: 2>, scalar_prefetch = 0 : i64, scratch_operands = 0 : i64, tpu.core_type = #tpu.core_type<tc>, window_params = [{transform_indices = @transform_0, window_bounds = array<i64: 1, 8, 32>}, {transform_indices = @transform_1, window_bounds = array<i64: 1, 1, 8>}, {pipeline_mode = #tpu.pipeline_mode<synchronous>, transform_indices = @transform_2, window_bounds = array<i64: 1, 32>}, {pipeline_mode = #tpu.pipeline_mode<synchronous>, transform_indices = @transform_3, window_bounds = array<i64: 1, 32>}, {pipeline_mode = #tpu.pipeline_mode<synchronous>, transform_indices = @transform_4, window_bounds = array<i64: 2, 32, 96>}, {pipeline_mode = #tpu.pipeline_mode<synchronous>, transform_indices = @transform_5, window_bounds = array<i64: 2, 1, 96>}, {pipeline_mode = #tpu.pipeline_mode<synchronous>, transform_indices = @transform_6, window_bounds = array<i64: 2, 32, 32>}, {pipeline_mode = #tpu.pipeline_mode<synchronous>, transform_indices = @transform_7, window_bounds = array<i64: 2, 1, 32>}, {pipeline_mode = #tpu.pipeline_mode<synchronous>, transform_indices = @transform_8, window_bounds = array<i64: 2, 1, 32>}, {pipeline_mode = #tpu.pipeline_mode<synchronous>, transform_indices = @transform_9, window_bounds = array<i64: 2, 1, 32>}, {pipeline_mode = #tpu.pipeline_mode<synchronous>, transform_indices = @transform_10, window_bounds = array<i64: 2, 32, 64>}, {pipeline_mode = #tpu.pipeline_mode<synchronous>, transform_indices = @transform_11, window_bounds = array<i64: 2, 1, 64>}, {pipeline_mode = #tpu.pipeline_mode<synchronous>, transform_indices = @transform_12, window_bounds = array<i64: 2, 64, 32>}, {pipeline_mode = #tpu.pipeline_mode<synchronous>, transform_indices = @transform_13, window_bounds = array<i64: 2, 1, 32>}, {pipeline_mode = #tpu.pipeline_mode<synchronous>, transform_indices = @transform_14, window_bounds = array<i64: 2, 1, 32>}, {pipeline_mode = #tpu.pipeline_mode<synchronous>, transform_indices = @transform_15, window_bounds = array<i64: 2, 1, 32>}, {transform_indices = @transform_16, window_bounds = array<i64: 1, 8, 32>}]} {
    %c0 = arith.constant 0 : index
    %c0_0 = arith.constant 0 : index
    %c0_1 = arith.constant 0 : index
    %0 = vector.load %arg1[%c0, %c0_0, %c0_1] : memref<1x8x32xf32, #tpu.memory_space<vmem>>, vector<1x8x32xf32>
    %1 = vector.shape_cast %0 : vector<1x8x32xf32> to vector<8x32xf32>
    %c0_2 = arith.constant 0 : index
    %c0_3 = arith.constant 0 : index
    %c0_4 = arith.constant 0 : index
    %2 = vector.load %arg2[%c0_2, %c0_3, %c0_4] : memref<1x1x8xf32, #tpu.memory_space<vmem>>, vector<1x1x8xf32>
    %3 = vector.shape_cast %2 : vector<1x1x8xf32> to vector<1x8xf32>
    %c0_5 = arith.constant 0 : index
    %c0_6 = arith.constant 0 : index
    %4 = vector.load %arg3[%c0_5, %c0_6] : memref<1x32xf32, #tpu.memory_space<vmem>>, vector<1x32xf32>
    %c0_7 = arith.constant 0 : index
    %c0_8 = arith.constant 0 : index
    %5 = vector.load %arg4[%c0_7, %c0_8] : memref<1x32xf32, #tpu.memory_space<vmem>>, vector<1x32xf32>
    %cst = arith.constant dense<0.000000e+00> : vector<8xf32>
    %6 = vector.multi_reduction <add>, %1, %cst [1] : vector<8x32xf32> to vector<8xf32>
    %7 = vector.shape_cast %6 : vector<8xf32> to vector<8x1xf32>
    %cst_9 = arith.constant 3.200000e+01 : f32
    %8 = vector.broadcast %cst_9 : f32 to vector<8x1xf32>
    %9 = arith.divf %7, %8 : vector<8x1xf32>
    %10 = vector.broadcast %9 : vector<8x1xf32> to vector<8x32xf32>
    %11 = arith.subf %1, %10 : vector<8x32xf32>
    %12 = vector.broadcast %9 : vector<8x1xf32> to vector<8x32xf32>
    %13 = arith.subf %1, %12 : vector<8x32xf32>
    %14 = arith.mulf %11, %13 : vector<8x32xf32>
    %cst_10 = arith.constant dense<0.000000e+00> : vector<8xf32>
    %15 = vector.multi_reduction <add>, %14, %cst_10 [1] : vector<8x32xf32> to vector<8xf32>
    %16 = vector.shape_cast %15 : vector<8xf32> to vector<8x1xf32>
    %cst_11 = arith.constant 3.200000e+01 : f32
    %17 = vector.broadcast %cst_11 : f32 to vector<8x1xf32>
    %18 = arith.divf %16, %17 : vector<8x1xf32>
    %19 = vector.broadcast %9 : vector<8x1xf32> to vector<8x32xf32>
    %20 = arith.subf %1, %19 : vector<8x32xf32>
    %cst_12 = arith.constant 9.99999996E-13 : f32
    %21 = vector.broadcast %cst_12 : f32 to vector<8x1xf32>
    %22 = arith.addf %18, %21 : vector<8x1xf32>
    %23 = math.rsqrt %22 : vector<8x1xf32>
    %24 = vector.broadcast %23 : vector<8x1xf32> to vector<8x32xf32>
    %25 = arith.mulf %20, %24 : vector<8x32xf32>
    %26 = vector.broadcast %4 : vector<1x32xf32> to vector<8x32xf32>
    %27 = arith.mulf %25, %26 : vector<8x32xf32>
    %28 = vector.broadcast %5 : vector<1x32xf32> to vector<8x32xf32>
    %29 = arith.addf %27, %28 : vector<8x32xf32>
    %30 = arith.truncf %29 : vector<8x32xf32> to vector<8x32xbf16>
    %c0_13 = arith.constant 0 : index
    %c0_14 = arith.constant 0 : index
    %c0_15 = arith.constant 0 : index
    %31 = vector.load %arg5[%c0_13, %c0_14, %c0_15] : memref<2x32x96xbf16, #tpu.memory_space<vmem>>, vector<1x32x96xbf16>
    %32 = vector.shape_cast %31 : vector<1x32x96xbf16> to vector<32x96xbf16>
    %cst_16 = arith.constant dense<0.000000e+00> : vector<8x96xf32>
    %33 = tpu.matmul %30, %32, %cst_16 {dimension_numbers = #tpu.dot_dimension_numbers<[1], [0], [0], [1], [0, 0, 1, 1], [], []>} : vector<8x32xbf16>, vector<32x96xbf16>, vector<8x96xf32> -> vector<8x96xf32>
    %c0_17 = arith.constant 0 : index
    %c0_18 = arith.constant 0 : index
    %c0_19 = arith.constant 0 : index
    %34 = vector.load %arg6[%c0_17, %c0_18, %c0_19] : memref<2x1x96xf32, #tpu.memory_space<vmem>>, vector<1x1x96xf32>
    %35 = vector.shape_cast %34 : vector<1x1x96xf32> to vector<1x96xf32>
    %36 = vector.broadcast %35 : vector<1x96xf32> to vector<8x96xf32>
    %37 = arith.addf %33, %36 : vector<8x96xf32>
    %38 = vector.extract_strided_slice %37 {offsets = [0, 0], sizes = [8, 32], strides = [1, 1]} : vector<8x96xf32> to vector<8x32xf32>
    %39 = vector.shape_cast %38 : vector<8x32xf32> to vector<8x2x16xf32>
    %40 = vector.extract_strided_slice %37 {offsets = [0, 32], sizes = [8, 32], strides = [1, 1]} : vector<8x96xf32> to vector<8x32xf32>
    %41 = vector.shape_cast %40 : vector<8x32xf32> to vector<8x2x16xf32>
    %42 = vector.extract_strided_slice %37 {offsets = [0, 64], sizes = [8, 32], strides = [1, 1]} : vector<8x96xf32> to vector<8x32xf32>
    %43 = vector.shape_cast %42 : vector<8x32xf32> to vector<8x2x16xf32>
    %44 = arith.truncf %39 : vector<8x2x16xf32> to vector<8x2x16xbf16>
    %45 = arith.truncf %41 : vector<8x2x16xf32> to vector<8x2x16xbf16>
    "tpu.trace_start"() <{level = 10 : i32, message = "qhd,khd->hqk"}> : () -> ()
    %cst_20 = arith.constant dense<0.000000e+00> : vector<2x8x8xf32>
    %46 = tpu.matmul %44, %45, %cst_20 {dimension_numbers = #tpu.dot_dimension_numbers<[2], [2], [0], [0], [0, 1, 0, 0, 1, 0], [1], [1]>} : vector<8x2x16xbf16>, vector<8x2x16xbf16>, vector<2x8x8xf32> -> vector<2x8x8xf32>
    "tpu.trace_stop"() : () -> ()
    %47 = vector.shape_cast %3 : vector<1x8xf32> to vector<1x1x8xf32>
    %48 = vector.broadcast %47 : vector<1x1x8xf32> to vector<2x8x8xf32>
    %49 = arith.addf %46, %48 : vector<2x8x8xf32>
    %cst_21 = arith.constant dense<0xFF800000> : vector<2x8xf32>
    %50 = vector.multi_reduction <maximumf>, %49, %cst_21 [2] : vector<2x8x8xf32> to vector<2x8xf32>
    %51 = vector.shape_cast %50 : vector<2x8xf32> to vector<2x8x1xf32>
    %52 = vector.broadcast %51 : vector<2x8x1xf32> to vector<2x8x8xf32>
    %53 = arith.subf %49, %52 : vector<2x8x8xf32>
    %54 = math.exp %53 : vector<2x8x8xf32>
    %cst_22 = arith.constant dense<0.000000e+00> : vector<2x8xf32>
    %55 = vector.multi_reduction <add>, %54, %cst_22 [2] : vector<2x8x8xf32> to vector<2x8xf32>
    %56 = vector.shape_cast %55 : vector<2x8xf32> to vector<2x8x1xf32>
    %57 = tpu.reciprocal %56 {approx = true} : vector<2x8x1xf32> -> vector<2x8x1xf32>
    %58 = vector.broadcast %57 : vector<2x8x1xf32> to vector<2x8x8xf32>
    %59 = arith.mulf %54, %58 : vector<2x8x8xf32>
    %60 = arith.truncf %59 : vector<2x8x8xf32> to vector<2x8x8xbf16>
    %61 = arith.truncf %43 : vector<8x2x16xf32> to vector<8x2x16xbf16>
    "tpu.trace_start"() <{level = 10 : i32, message = "hqk,khd->qhd"}> : () -> ()
    %cst_23 = arith.constant dense<0.000000e+00> : vector<2x16x8xf32>
    %62 = tpu.matmul %61, %60, %cst_23 {dimension_numbers = #tpu.dot_dimension_numbers<[0], [2], [2], [1], [0, 1, 0, 2, 1, 1], [1], [0]>} : vector<8x2x16xbf16>, vector<2x8x8xbf16>, vector<2x16x8xf32> -> vector<2x16x8xf32>
    %63 = tpu.transpose %62, [2, 0, 1] : vector<2x16x8xf32> -> vector<8x2x16xf32>
    "tpu.trace_stop"() : () -> ()
    %64 = vector.shape_cast %63 : vector<8x2x16xf32> to vector<8x32xf32>
    %65 = arith.truncf %64 : vector<8x32xf32> to vector<8x32xbf16>
    %c0_24 = arith.constant 0 : index
    %c0_25 = arith.constant 0 : index
    %c0_26 = arith.constant 0 : index
    %66 = vector.load %arg7[%c0_24, %c0_25, %c0_26] : memref<2x32x32xbf16, #tpu.memory_space<vmem>>, vector<1x32x32xbf16>
    %67 = vector.shape_cast %66 : vector<1x32x32xbf16> to vector<32x32xbf16>
    %cst_27 = arith.constant dense<0.000000e+00> : vector<8x32xf32>
    %68 = tpu.matmul %65, %67, %cst_27 {dimension_numbers = #tpu.dot_dimension_numbers<[1], [0], [0], [1], [0, 0, 1, 1], [], []>} : vector<8x32xbf16>, vector<32x32xbf16>, vector<8x32xf32> -> vector<8x32xf32>
    %c0_28 = arith.constant 0 : index
    %c0_29 = arith.constant 0 : index
    %c0_30 = arith.constant 0 : index
    %69 = vector.load %arg8[%c0_28, %c0_29, %c0_30] : memref<2x1x32xf32, #tpu.memory_space<vmem>>, vector<1x1x32xf32>
    %70 = vector.shape_cast %69 : vector<1x1x32xf32> to vector<1x32xf32>
    %71 = vector.broadcast %70 : vector<1x32xf32> to vector<8x32xf32>
    %72 = arith.addf %68, %71 : vector<8x32xf32>
    %73 = arith.addf %72, %29 : vector<8x32xf32>
    %c0_31 = arith.constant 0 : index
    %c0_32 = arith.constant 0 : index
    %c0_33 = arith.constant 0 : index
    %74 = vector.load %arg9[%c0_31, %c0_32, %c0_33] : memref<2x1x32xf32, #tpu.memory_space<vmem>>, vector<1x1x32xf32>
    %75 = vector.shape_cast %74 : vector<1x1x32xf32> to vector<1x32xf32>
    %c0_34 = arith.constant 0 : index
    %c0_35 = arith.constant 0 : index
    %c0_36 = arith.constant 0 : index
    %76 = vector.load %arg10[%c0_34, %c0_35, %c0_36] : memref<2x1x32xf32, #tpu.memory_space<vmem>>, vector<1x1x32xf32>
    %77 = vector.shape_cast %76 : vector<1x1x32xf32> to vector<1x32xf32>
    %cst_37 = arith.constant dense<0.000000e+00> : vector<8xf32>
    %78 = vector.multi_reduction <add>, %73, %cst_37 [1] : vector<8x32xf32> to vector<8xf32>
    %79 = vector.shape_cast %78 : vector<8xf32> to vector<8x1xf32>
    %cst_38 = arith.constant 3.200000e+01 : f32
    %80 = vector.broadcast %cst_38 : f32 to vector<8x1xf32>
    %81 = arith.divf %79, %80 : vector<8x1xf32>
    %82 = vector.broadcast %81 : vector<8x1xf32> to vector<8x32xf32>
    %83 = arith.subf %73, %82 : vector<8x32xf32>
    %84 = vector.broadcast %81 : vector<8x1xf32> to vector<8x32xf32>
    %85 = arith.subf %73, %84 : vector<8x32xf32>
    %86 = arith.mulf %83, %85 : vector<8x32xf32>
    %cst_39 = arith.constant dense<0.000000e+00> : vector<8xf32>
    %87 = vector.multi_reduction <add>, %86, %cst_39 [1] : vector<8x32xf32> to vector<8xf32>
    %88 = vector.shape_cast %87 : vector<8xf32> to vector<8x1xf32>
    %cst_40 = arith.constant 3.200000e+01 : f32
    %89 = vector.broadcast %cst_40 : f32 to vector<8x1xf32>
    %90 = arith.divf %88, %89 : vector<8x1xf32>
    %91 = vector.broadcast %81 : vector<8x1xf32> to vector<8x32xf32>
    %92 = arith.subf %73, %91 : vector<8x32xf32>
    %cst_41 = arith.constant 9.99999996E-13 : f32
    %93 = vector.broadcast %cst_41 : f32 to vector<8x1xf32>
    %94 = arith.addf %90, %93 : vector<8x1xf32>
    %95 = math.rsqrt %94 : vector<8x1xf32>
    %96 = vector.broadcast %95 : vector<8x1xf32> to vector<8x32xf32>
    %97 = arith.mulf %92, %96 : vector<8x32xf32>
    %98 = vector.broadcast %75 : vector<1x32xf32> to vector<8x32xf32>
    %99 = arith.mulf %97, %98 : vector<8x32xf32>
    %100 = vector.broadcast %77 : vector<1x32xf32> to vector<8x32xf32>
    %101 = arith.addf %99, %100 : vector<8x32xf32>
    %102 = arith.truncf %101 : vector<8x32xf32> to vector<8x32xbf16>
    %c0_42 = arith.constant 0 : index
    %c0_43 = arith.constant 0 : index
    %c0_44 = arith.constant 0 : index
    %103 = vector.load %arg11[%c0_42, %c0_43, %c0_44] : memref<2x32x64xbf16, #tpu.memory_space<vmem>>, vector<1x32x64xbf16>
    %104 = vector.shape_cast %103 : vector<1x32x64xbf16> to vector<32x64xbf16>
    %cst_45 = arith.constant dense<0.000000e+00> : vector<8x64xf32>
    %105 = tpu.matmul %102, %104, %cst_45 {dimension_numbers = #tpu.dot_dimension_numbers<[1], [0], [0], [1], [0, 0, 1, 1], [], []>} : vector<8x32xbf16>, vector<32x64xbf16>, vector<8x64xf32> -> vector<8x64xf32>
    %c0_46 = arith.constant 0 : index
    %c0_47 = arith.constant 0 : index
    %c0_48 = arith.constant 0 : index
    %106 = vector.load %arg12[%c0_46, %c0_47, %c0_48] : memref<2x1x64xf32, #tpu.memory_space<vmem>>, vector<1x1x64xf32>
    %107 = vector.shape_cast %106 : vector<1x1x64xf32> to vector<1x64xf32>
    %108 = vector.broadcast %107 : vector<1x64xf32> to vector<8x64xf32>
    %109 = arith.addf %105, %108 : vector<8x64xf32>
    %cst_49 = arith.constant 5.000000e-01 : f32
    %110 = vector.broadcast %cst_49 : f32 to vector<8x64xf32>
    %111 = arith.mulf %110, %109 : vector<8x64xf32>
    %cst_50 = arith.constant 4.471500e-02 : f32
    %112 = vector.broadcast %cst_50 : f32 to vector<8x64xf32>
    %113 = arith.mulf %112, %109 : vector<8x64xf32>
    %114 = arith.mulf %113, %109 : vector<8x64xf32>
    %115 = arith.mulf %114, %109 : vector<8x64xf32>
    %116 = arith.addf %109, %115 : vector<8x64xf32>
    %cst_51 = arith.constant 0.797884583 : f32
    %117 = vector.broadcast %cst_51 : f32 to vector<8x64xf32>
    %118 = arith.mulf %117, %116 : vector<8x64xf32>
    %119 = math.tanh %118 : vector<8x64xf32>
    %cst_52 = arith.constant 1.000000e+00 : f32
    %120 = vector.broadcast %cst_52 : f32 to vector<8x64xf32>
    %121 = arith.addf %120, %119 : vector<8x64xf32>
    %122 = arith.mulf %111, %121 : vector<8x64xf32>
    %123 = arith.truncf %122 : vector<8x64xf32> to vector<8x64xbf16>
    %c0_53 = arith.constant 0 : index
    %c0_54 = arith.constant 0 : index
    %c0_55 = arith.constant 0 : index
    %124 = vector.load %arg13[%c0_53, %c0_54, %c0_55] : memref<2x64x32xbf16, #tpu.memory_space<vmem>>, vector<1x64x32xbf16>
    %125 = vector.shape_cast %124 : vector<1x64x32xbf16> to vector<64x32xbf16>
    %cst_56 = arith.constant dense<0.000000e+00> : vector<8x32xf32>
    %126 = tpu.matmul %123, %125, %cst_56 {dimension_numbers = #tpu.dot_dimension_numbers<[1], [0], [0], [1], [0, 0, 1, 1], [], []>} : vector<8x64xbf16>, vector<64x32xbf16>, vector<8x32xf32> -> vector<8x32xf32>
    %c0_57 = arith.constant 0 : index
    %c0_58 = arith.constant 0 : index
    %c0_59 = arith.constant 0 : index
    %127 = vector.load %arg14[%c0_57, %c0_58, %c0_59] : memref<2x1x32xf32, #tpu.memory_space<vmem>>, vector<1x1x32xf32>
    %128 = vector.shape_cast %127 : vector<1x1x32xf32> to vector<1x32xf32>
    %129 = vector.broadcast %128 : vector<1x32xf32> to vector<8x32xf32>
    %130 = arith.addf %126, %129 : vector<8x32xf32>
    %131 = arith.addf %130, %101 : vector<8x32xf32>
    %c0_60 = arith.constant 0 : index
    %c0_61 = arith.constant 0 : index
    %c0_62 = arith.constant 0 : index
    %132 = vector.load %arg15[%c0_60, %c0_61, %c0_62] : memref<2x1x32xf32, #tpu.memory_space<vmem>>, vector<1x1x32xf32>
    %133 = vector.shape_cast %132 : vector<1x1x32xf32> to vector<1x32xf32>
    %c0_63 = arith.constant 0 : index
    %c0_64 = arith.constant 0 : index
    %c0_65 = arith.constant 0 : index
    %134 = vector.load %arg16[%c0_63, %c0_64, %c0_65] : memref<2x1x32xf32, #tpu.memory_space<vmem>>, vector<1x1x32xf32>
    %135 = vector.shape_cast %134 : vector<1x1x32xf32> to vector<1x32xf32>
    %cst_66 = arith.constant dense<0.000000e+00> : vector<8xf32>
    %136 = vector.multi_reduction <add>, %131, %cst_66 [1] : vector<8x32xf32> to vector<8xf32>
    %137 = vector.shape_cast %136 : vector<8xf32> to vector<8x1xf32>
    %cst_67 = arith.constant 3.200000e+01 : f32
    %138 = vector.broadcast %cst_67 : f32 to vector<8x1xf32>
    %139 = arith.divf %137, %138 : vector<8x1xf32>
    %140 = vector.broadcast %139 : vector<8x1xf32> to vector<8x32xf32>
    %141 = arith.subf %131, %140 : vector<8x32xf32>
    %142 = vector.broadcast %139 : vector<8x1xf32> to vector<8x32xf32>
    %143 = arith.subf %131, %142 : vector<8x32xf32>
    %144 = arith.mulf %141, %143 : vector<8x32xf32>
    %cst_68 = arith.constant dense<0.000000e+00> : vector<8xf32>
    %145 = vector.multi_reduction <add>, %144, %cst_68 [1] : vector<8x32xf32> to vector<8xf32>
    %146 = vector.shape_cast %145 : vector<8xf32> to vector<8x1xf32>
    %cst_69 = arith.constant 3.200000e+01 : f32
    %147 = vector.broadcast %cst_69 : f32 to vector<8x1xf32>
    %148 = arith.divf %146, %147 : vector<8x1xf32>
    %149 = vector.broadcast %139 : vector<8x1xf32> to vector<8x32xf32>
    %150 = arith.subf %131, %149 : vector<8x32xf32>
    %cst_70 = arith.constant 9.99999996E-13 : f32
    %151 = vector.broadcast %cst_70 : f32 to vector<8x1xf32>
    %152 = arith.addf %148, %151 : vector<8x1xf32>
    %153 = math.rsqrt %152 : vector<8x1xf32>
    %154 = vector.broadcast %153 : vector<8x1xf32> to vector<8x32xf32>
    %155 = arith.mulf %150, %154 : vector<8x32xf32>
    %156 = vector.broadcast %133 : vector<1x32xf32> to vector<8x32xf32>
    %157 = arith.mulf %155, %156 : vector<8x32xf32>
    %158 = vector.broadcast %135 : vector<1x32xf32> to vector<8x32xf32>
    %159 = arith.addf %157, %158 : vector<8x32xf32>
    %160 = arith.truncf %159 : vector<8x32xf32> to vector<8x32xbf16>
    %c1 = arith.constant 1 : index
    %c0_71 = arith.constant 0 : index
    %c0_72 = arith.constant 0 : index
    %161 = vector.load %arg5[%c1, %c0_71, %c0_72] : memref<2x32x96xbf16, #tpu.memory_space<vmem>>, vector<1x32x96xbf16>
    %162 = vector.shape_cast %161 : vector<1x32x96xbf16> to vector<32x96xbf16>
    %cst_73 = arith.constant dense<0.000000e+00> : vector<8x96xf32>
    %163 = tpu.matmul %160, %162, %cst_73 {dimension_numbers = #tpu.dot_dimension_numbers<[1], [0], [0], [1], [0, 0, 1, 1], [], []>} : vector<8x32xbf16>, vector<32x96xbf16>, vector<8x96xf32> -> vector<8x96xf32>
    %c1_74 = arith.constant 1 : index
    %c0_75 = arith.constant 0 : index
    %c0_76 = arith.constant 0 : index
    %164 = vector.load %arg6[%c1_74, %c0_75, %c0_76] : memref<2x1x96xf32, #tpu.memory_space<vmem>>, vector<1x1x96xf32>
    %165 = vector.shape_cast %164 : vector<1x1x96xf32> to vector<1x96xf32>
    %166 = vector.broadcast %165 : vector<1x96xf32> to vector<8x96xf32>
    %167 = arith.addf %163, %166 : vector<8x96xf32>
    %168 = vector.extract_strided_slice %167 {offsets = [0, 0], sizes = [8, 32], strides = [1, 1]} : vector<8x96xf32> to vector<8x32xf32>
    %169 = vector.shape_cast %168 : vector<8x32xf32> to vector<8x2x16xf32>
    %170 = vector.extract_strided_slice %167 {offsets = [0, 32], sizes = [8, 32], strides = [1, 1]} : vector<8x96xf32> to vector<8x32xf32>
    %171 = vector.shape_cast %170 : vector<8x32xf32> to vector<8x2x16xf32>
    %172 = vector.extract_strided_slice %167 {offsets = [0, 64], sizes = [8, 32], strides = [1, 1]} : vector<8x96xf32> to vector<8x32xf32>
    %173 = vector.shape_cast %172 : vector<8x32xf32> to vector<8x2x16xf32>
    %174 = arith.truncf %169 : vector<8x2x16xf32> to vector<8x2x16xbf16>
    %175 = arith.truncf %171 : vector<8x2x16xf32> to vector<8x2x16xbf16>
    "tpu.trace_start"() <{level = 10 : i32, message = "qhd,khd->hqk"}> : () -> ()
    %cst_77 = arith.constant dense<0.000000e+00> : vector<2x8x8xf32>
    %176 = tpu.matmul %174, %175, %cst_77 {dimension_numbers = #tpu.dot_dimension_numbers<[2], [2], [0], [0], [0, 1, 0, 0, 1, 0], [1], [1]>} : vector<8x2x16xbf16>, vector<8x2x16xbf16>, vector<2x8x8xf32> -> vector<2x8x8xf32>
    "tpu.trace_stop"() : () -> ()
    %177 = vector.shape_cast %3 : vector<1x8xf32> to vector<1x1x8xf32>
    %178 = vector.broadcast %177 : vector<1x1x8xf32> to vector<2x8x8xf32>
    %179 = arith.addf %176, %178 : vector<2x8x8xf32>
    %cst_78 = arith.constant dense<0xFF800000> : vector<2x8xf32>
    %180 = vector.multi_reduction <maximumf>, %179, %cst_78 [2] : vector<2x8x8xf32> to vector<2x8xf32>
    %181 = vector.shape_cast %180 : vector<2x8xf32> to vector<2x8x1xf32>
    %182 = vector.broadcast %181 : vector<2x8x1xf32> to vector<2x8x8xf32>
    %183 = arith.subf %179, %182 : vector<2x8x8xf32>
    %184 = math.exp %183 : vector<2x8x8xf32>
    %cst_79 = arith.constant dense<0.000000e+00> : vector<2x8xf32>
    %185 = vector.multi_reduction <add>, %184, %cst_79 [2] : vector<2x8x8xf32> to vector<2x8xf32>
    %186 = vector.shape_cast %185 : vector<2x8xf32> to vector<2x8x1xf32>
    %187 = tpu.reciprocal %186 {approx = true} : vector<2x8x1xf32> -> vector<2x8x1xf32>
    %188 = vector.broadcast %187 : vector<2x8x1xf32> to vector<2x8x8xf32>
    %189 = arith.mulf %184, %188 : vector<2x8x8xf32>
    %190 = arith.truncf %189 : vector<2x8x8xf32> to vector<2x8x8xbf16>
    %191 = arith.truncf %173 : vector<8x2x16xf32> to vector<8x2x16xbf16>
    "tpu.trace_start"() <{level = 10 : i32, message = "hqk,khd->qhd"}> : () -> ()
    %cst_80 = arith.constant dense<0.000000e+00> : vector<2x16x8xf32>
    %192 = tpu.matmul %191, %190, %cst_80 {dimension_numbers = #tpu.dot_dimension_numbers<[0], [2], [2], [1], [0, 1, 0, 2, 1, 1], [1], [0]>} : vector<8x2x16xbf16>, vector<2x8x8xbf16>, vector<2x16x8xf32> -> vector<2x16x8xf32>
    %193 = tpu.transpose %192, [2, 0, 1] : vector<2x16x8xf32> -> vector<8x2x16xf32>
    "tpu.trace_stop"() : () -> ()
    %194 = vector.shape_cast %193 : vector<8x2x16xf32> to vector<8x32xf32>
    %195 = arith.truncf %194 : vector<8x32xf32> to vector<8x32xbf16>
    %c1_81 = arith.constant 1 : index
    %c0_82 = arith.constant 0 : index
    %c0_83 = arith.constant 0 : index
    %196 = vector.load %arg7[%c1_81, %c0_82, %c0_83] : memref<2x32x32xbf16, #tpu.memory_space<vmem>>, vector<1x32x32xbf16>
    %197 = vector.shape_cast %196 : vector<1x32x32xbf16> to vector<32x32xbf16>
    %cst_84 = arith.constant dense<0.000000e+00> : vector<8x32xf32>
    %198 = tpu.matmul %195, %197, %cst_84 {dimension_numbers = #tpu.dot_dimension_numbers<[1], [0], [0], [1], [0, 0, 1, 1], [], []>} : vector<8x32xbf16>, vector<32x32xbf16>, vector<8x32xf32> -> vector<8x32xf32>
    %c1_85 = arith.constant 1 : index
    %c0_86 = arith.constant 0 : index
    %c0_87 = arith.constant 0 : index
    %199 = vector.load %arg8[%c1_85, %c0_86, %c0_87] : memref<2x1x32xf32, #tpu.memory_space<vmem>>, vector<1x1x32xf32>
    %200 = vector.shape_cast %199 : vector<1x1x32xf32> to vector<1x32xf32>
    %201 = vector.broadcast %200 : vector<1x32xf32> to vector<8x32xf32>
    %202 = arith.addf %198, %201 : vector<8x32xf32>
    %203 = arith.addf %202, %159 : vector<8x32xf32>
    %c1_88 = arith.constant 1 : index
    %c0_89 = arith.constant 0 : index
    %c0_90 = arith.constant 0 : index
    %204 = vector.load %arg9[%c1_88, %c0_89, %c0_90] : memref<2x1x32xf32, #tpu.memory_space<vmem>>, vector<1x1x32xf32>
    %205 = vector.shape_cast %204 : vector<1x1x32xf32> to vector<1x32xf32>
    %c1_91 = arith.constant 1 : index
    %c0_92 = arith.constant 0 : index
    %c0_93 = arith.constant 0 : index
    %206 = vector.load %arg10[%c1_91, %c0_92, %c0_93] : memref<2x1x32xf32, #tpu.memory_space<vmem>>, vector<1x1x32xf32>
    %207 = vector.shape_cast %206 : vector<1x1x32xf32> to vector<1x32xf32>
    %cst_94 = arith.constant dense<0.000000e+00> : vector<8xf32>
    %208 = vector.multi_reduction <add>, %203, %cst_94 [1] : vector<8x32xf32> to vector<8xf32>
    %209 = vector.shape_cast %208 : vector<8xf32> to vector<8x1xf32>
    %cst_95 = arith.constant 3.200000e+01 : f32
    %210 = vector.broadcast %cst_95 : f32 to vector<8x1xf32>
    %211 = arith.divf %209, %210 : vector<8x1xf32>
    %212 = vector.broadcast %211 : vector<8x1xf32> to vector<8x32xf32>
    %213 = arith.subf %203, %212 : vector<8x32xf32>
    %214 = vector.broadcast %211 : vector<8x1xf32> to vector<8x32xf32>
    %215 = arith.subf %203, %214 : vector<8x32xf32>
    %216 = arith.mulf %213, %215 : vector<8x32xf32>
    %cst_96 = arith.constant dense<0.000000e+00> : vector<8xf32>
    %217 = vector.multi_reduction <add>, %216, %cst_96 [1] : vector<8x32xf32> to vector<8xf32>
    %218 = vector.shape_cast %217 : vector<8xf32> to vector<8x1xf32>
    %cst_97 = arith.constant 3.200000e+01 : f32
    %219 = vector.broadcast %cst_97 : f32 to vector<8x1xf32>
    %220 = arith.divf %218, %219 : vector<8x1xf32>
    %221 = vector.broadcast %211 : vector<8x1xf32> to vector<8x32xf32>
    %222 = arith.subf %203, %221 : vector<8x32xf32>
    %cst_98 = arith.constant 9.99999996E-13 : f32
    %223 = vector.broadcast %cst_98 : f32 to vector<8x1xf32>
    %224 = arith.addf %220, %223 : vector<8x1xf32>
    %225 = math.rsqrt %224 : vector<8x1xf32>
    %226 = vector.broadcast %225 : vector<8x1xf32> to vector<8x32xf32>
    %227 = arith.mulf %222, %226 : vector<8x32xf32>
    %228 = vector.broadcast %205 : vector<1x32xf32> to vector<8x32xf32>
    %229 = arith.mulf %227, %228 : vector<8x32xf32>
    %230 = vector.broadcast %207 : vector<1x32xf32> to vector<8x32xf32>
    %231 = arith.addf %229, %230 : vector<8x32xf32>
    %232 = arith.truncf %231 : vector<8x32xf32> to vector<8x32xbf16>
    %c1_99 = arith.constant 1 : index
    %c0_100 = arith.constant 0 : index
    %c0_101 = arith.constant 0 : index
    %233 = vector.load %arg11[%c1_99, %c0_100, %c0_101] : memref<2x32x64xbf16, #tpu.memory_space<vmem>>, vector<1x32x64xbf16>
    %234 = vector.shape_cast %233 : vector<1x32x64xbf16> to vector<32x64xbf16>
    %cst_102 = arith.constant dense<0.000000e+00> : vector<8x64xf32>
    %235 = tpu.matmul %232, %234, %cst_102 {dimension_numbers = #tpu.dot_dimension_numbers<[1], [0], [0], [1], [0, 0, 1, 1], [], []>} : vector<8x32xbf16>, vector<32x64xbf16>, vector<8x64xf32> -> vector<8x64xf32>
    %c1_103 = arith.constant 1 : index
    %c0_104 = arith.constant 0 : index
    %c0_105 = arith.constant 0 : index
    %236 = vector.load %arg12[%c1_103, %c0_104, %c0_105] : memref<2x1x64xf32, #tpu.memory_space<vmem>>, vector<1x1x64xf32>
    %237 = vector.shape_cast %236 : vector<1x1x64xf32> to vector<1x64xf32>
    %238 = vector.broadcast %237 : vector<1x64xf32> to vector<8x64xf32>
    %239 = arith.addf %235, %238 : vector<8x64xf32>
    %cst_106 = arith.constant 5.000000e-01 : f32
    %240 = vector.broadcast %cst_106 : f32 to vector<8x64xf32>
    %241 = arith.mulf %240, %239 : vector<8x64xf32>
    %cst_107 = arith.constant 4.471500e-02 : f32
    %242 = vector.broadcast %cst_107 : f32 to vector<8x64xf32>
    %243 = arith.mulf %242, %239 : vector<8x64xf32>
    %244 = arith.mulf %243, %239 : vector<8x64xf32>
    %245 = arith.mulf %244, %239 : vector<8x64xf32>
    %246 = arith.addf %239, %245 : vector<8x64xf32>
    %cst_108 = arith.constant 0.797884583 : f32
    %247 = vector.broadcast %cst_108 : f32 to vector<8x64xf32>
    %248 = arith.mulf %247, %246 : vector<8x64xf32>
    %249 = math.tanh %248 : vector<8x64xf32>
    %cst_109 = arith.constant 1.000000e+00 : f32
    %250 = vector.broadcast %cst_109 : f32 to vector<8x64xf32>
    %251 = arith.addf %250, %249 : vector<8x64xf32>
    %252 = arith.mulf %241, %251 : vector<8x64xf32>
    %253 = arith.truncf %252 : vector<8x64xf32> to vector<8x64xbf16>
    %c1_110 = arith.constant 1 : index
    %c0_111 = arith.constant 0 : index
    %c0_112 = arith.constant 0 : index
    %254 = vector.load %arg13[%c1_110, %c0_111, %c0_112] : memref<2x64x32xbf16, #tpu.memory_space<vmem>>, vector<1x64x32xbf16>
    %255 = vector.shape_cast %254 : vector<1x64x32xbf16> to vector<64x32xbf16>
    %cst_113 = arith.constant dense<0.000000e+00> : vector<8x32xf32>
    %256 = tpu.matmul %253, %255, %cst_113 {dimension_numbers = #tpu.dot_dimension_numbers<[1], [0], [0], [1], [0, 0, 1, 1], [], []>} : vector<8x64xbf16>, vector<64x32xbf16>, vector<8x32xf32> -> vector<8x32xf32>
    %c1_114 = arith.constant 1 : index
    %c0_115 = arith.constant 0 : index
    %c0_116 = arith.constant 0 : index
    %257 = vector.load %arg14[%c1_114, %c0_115, %c0_116] : memref<2x1x32xf32, #tpu.memory_space<vmem>>, vector<1x1x32xf32>
    %258 = vector.shape_cast %257 : vector<1x1x32xf32> to vector<1x32xf32>
    %259 = vector.broadcast %258 : vector<1x32xf32> to vector<8x32xf32>
    %260 = arith.addf %256, %259 : vector<8x32xf32>
    %261 = arith.addf %260, %231 : vector<8x32xf32>
    %c1_117 = arith.constant 1 : index
    %c0_118 = arith.constant 0 : index
    %c0_119 = arith.constant 0 : index
    %262 = vector.load %arg15[%c1_117, %c0_118, %c0_119] : memref<2x1x32xf32, #tpu.memory_space<vmem>>, vector<1x1x32xf32>
    %263 = vector.shape_cast %262 : vector<1x1x32xf32> to vector<1x32xf32>
    %c1_120 = arith.constant 1 : index
    %c0_121 = arith.constant 0 : index
    %c0_122 = arith.constant 0 : index
    %264 = vector.load %arg16[%c1_120, %c0_121, %c0_122] : memref<2x1x32xf32, #tpu.memory_space<vmem>>, vector<1x1x32xf32>
    %265 = vector.shape_cast %264 : vector<1x1x32xf32> to vector<1x32xf32>
    %cst_123 = arith.constant dense<0.000000e+00> : vector<8xf32>
    %266 = vector.multi_reduction <add>, %261, %cst_123 [1] : vector<8x32xf32> to vector<8xf32>
    %267 = vector.shape_cast %266 : vector<8xf32> to vector<8x1xf32>
    %cst_124 = arith.constant 3.200000e+01 : f32
    %268 = vector.broadcast %cst_124 : f32 to vector<8x1xf32>
    %269 = arith.divf %267, %268 : vector<8x1xf32>
    %270 = vector.broadcast %269 : vector<8x1xf32> to vector<8x32xf32>
    %271 = arith.subf %261, %270 : vector<8x32xf32>
    %272 = vector.broadcast %269 : vector<8x1xf32> to vector<8x32xf32>
    %273 = arith.subf %261, %272 : vector<8x32xf32>
    %274 = arith.mulf %271, %273 : vector<8x32xf32>
    %cst_125 = arith.constant dense<0.000000e+00> : vector<8xf32>
    %275 = vector.multi_reduction <add>, %274, %cst_125 [1] : vector<8x32xf32> to vector<8xf32>
    %276 = vector.shape_cast %275 : vector<8xf32> to vector<8x1xf32>
    %cst_126 = arith.constant 3.200000e+01 : f32
    %277 = vector.broadcast %cst_126 : f32 to vector<8x1xf32>
    %278 = arith.divf %276, %277 : vector<8x1xf32>
    %279 = vector.broadcast %269 : vector<8x1xf32> to vector<8x32xf32>
    %280 = arith.subf %261, %279 : vector<8x32xf32>
    %cst_127 = arith.constant 9.99999996E-13 : f32
    %281 = vector.broadcast %cst_127 : f32 to vector<8x1xf32>
    %282 = arith.addf %278, %281 : vector<8x1xf32>
    %283 = math.rsqrt %282 : vector<8x1xf32>
    %284 = vector.broadcast %283 : vector<8x1xf32> to vector<8x32xf32>
    %285 = arith.mulf %280, %284 : vector<8x32xf32>
    %286 = vector.broadcast %263 : vector<1x32xf32> to vector<8x32xf32>
    %287 = arith.mulf %285, %286 : vector<8x32xf32>
    %288 = vector.broadcast %265 : vector<1x32xf32> to vector<8x32xf32>
    %289 = arith.addf %287, %288 : vector<8x32xf32>
    %c0_128 = arith.constant 0 : index
    %c0_129 = arith.constant 0 : index
    %c0_130 = arith.constant 0 : index
    %290 = vector.load %arg17[%c0_128, %c0_129, %c0_130] : memref<1x8x32xf32, #tpu.memory_space<vmem>>, vector<1x8x32xf32>
    %291 = vector.shape_cast %290 : vector<1x8x32xf32> to vector<8x32xf32>
    %292 = vector.shape_cast %289 : vector<8x32xf32> to vector<1x8x32xf32>
    tpu.vector_store %arg17[%c0_128, %c0_129, %c0_130], %292 {strides = array<i32>} : memref<1x8x32xf32, #tpu.memory_space<vmem>>, vector<1x8x32xf32>,
    return
  }
  func.func @transform_0(%arg0: i32) -> (i32, i32, i32) {
    %c0_i32 = arith.constant 0 : i32
    %c0_i32_0 = arith.constant 0 : i32
    %c0_i32_1 = arith.constant 0 : i32
    return %arg0, %c0_i32, %c0_i32_0 : i32, i32, i32
  }
  func.func @transform_1(%arg0: i32) -> (i32, i32, i32) {
    %c0_i32 = arith.constant 0 : i32
    %c0_i32_0 = arith.constant 0 : i32
    %c0_i32_1 = arith.constant 0 : i32
    return %arg0, %c0_i32, %c0_i32_0 : i32, i32, i32
  }
  func.func @transform_2(%arg0: i32) -> (i32, i32) {
    %c0_i32 = arith.constant 0 : i32
    %c0_i32_0 = arith.constant 0 : i32
    %c0_i32_1 = arith.constant 0 : i32
    return %c0_i32, %c0_i32_0 : i32, i32
  }
  func.func @transform_3(%arg0: i32) -> (i32, i32) {
    %c0_i32 = arith.constant 0 : i32
    %c0_i32_0 = arith.constant 0 : i32
    %c0_i32_1 = arith.constant 0 : i32
    return %c0_i32, %c0_i32_0 : i32, i32
  }
  func.func @transform_4(%arg0: i32) -> (i32, i32, i32) {
    %c0_i32 = arith.constant 0 : i32
    %c0_i32_0 = arith.constant 0 : i32
    %c0_i32_1 = arith.constant 0 : i32
    %c0_i32_2 = arith.constant 0 : i32
    return %c0_i32, %c0_i32_0, %c0_i32_1 : i32, i32, i32
  }
  func.func @transform_5(%arg0: i32) -> (i32, i32, i32) {
    %c0_i32 = arith.constant 0 : i32
    %c0_i32_0 = arith.constant 0 : i32
    %c0_i32_1 = arith.constant 0 : i32
    %c0_i32_2 = arith.constant 0 : i32
    return %c0_i32, %c0_i32_0, %c0_i32_1 : i32, i32, i32
  }
  func.func @transform_6(%arg0: i32) -> (i32, i32, i32) {
    %c0_i32 = arith.constant 0 : i32
    %c0_i32_0 = arith.constant 0 : i32
    %c0_i32_1 = arith.constant 0 : i32
    %c0_i32_2 = arith.constant 0 : i32
    return %c0_i32, %c0_i32_0, %c0_i32_1 : i32, i32, i32
  }
  func.func @transform_7(%arg0: i32) -> (i32, i32, i32) {
    %c0_i32 = arith.constant 0 : i32
    %c0_i32_0 = arith.constant 0 : i32
    %c0_i32_1 = arith.constant 0 : i32
    %c0_i32_2 = arith.constant 0 : i32
    return %c0_i32, %c0_i32_0, %c0_i32_1 : i32, i32, i32
  }
  func.func @transform_8(%arg0: i32) -> (i32, i32, i32) {
    %c0_i32 = arith.constant 0 : i32
    %c0_i32_0 = arith.constant 0 : i32
    %c0_i32_1 = arith.constant 0 : i32
    %c0_i32_2 = arith.constant 0 : i32
    return %c0_i32, %c0_i32_0, %c0_i32_1 : i32, i32, i32
  }
  func.func @transform_9(%arg0: i32) -> (i32, i32, i32) {
    %c0_i32 = arith.constant 0 : i32
    %c0_i32_0 = arith.constant 0 : i32
    %c0_i32_1 = arith.constant 0 : i32
    %c0_i32_2 = arith.constant 0 : i32
    return %c0_i32, %c0_i32_0, %c0_i32_1 : i32, i32, i32
  }
  func.func @transform_10(%arg0: i32) -> (i32, i32, i32) {
    %c0_i32 = arith.constant 0 : i32
    %c0_i32_0 = arith.constant 0 : i32
    %c0_i32_1 = arith.constant 0 : i32
    %c0_i32_2 = arith.constant 0 : i32
    return %c0_i32, %c0_i32_0, %c0_i32_1 : i32, i32, i32
  }
  func.func @transform_11(%arg0: i32) -> (i32, i32, i32) {
    %c0_i32 = arith.constant 0 : i32
    %c0_i32_0 = arith.constant 0 : i32
    %c0_i32_1 = arith.constant 0 : i32
    %c0_i32_2 = arith.constant 0 : i32
    return %c0_i32, %c0_i32_0, %c0_i32_1 : i32, i32, i32
  }
  func.func @transform_12(%arg0: i32) -> (i32, i32, i32) {
    %c0_i32 = arith.constant 0 : i32
    %c0_i32_0 = arith.constant 0 : i32
    %c0_i32_1 = arith.constant 0 : i32
    %c0_i32_2 = arith.constant 0 : i32
    return %c0_i32, %c0_i32_0, %c0_i32_1 : i32, i32, i32
  }
  func.func @transform_13(%arg0: i32) -> (i32, i32, i32) {
    %c0_i32 = arith.constant 0 : i32
    %c0_i32_0 = arith.constant 0 : i32
    %c0_i32_1 = arith.constant 0 : i32
    %c0_i32_2 = arith.constant 0 : i32
    return %c0_i32, %c0_i32_0, %c0_i32_1 : i32, i32, i32
  }
  func.func @transform_14(%arg0: i32) -> (i32, i32, i32) {
    %c0_i32 = arith.constant 0 : i32
    %c0_i32_0 = arith.constant 0 : i32
    %c0_i32_1 = arith.constant 0 : i32
    %c0_i32_2 = arith.constant 0 : i32
    return %c0_i32, %c0_i32_0, %c0_i32_1 : i32, i32, i32
  }
  func.func @transform_15(%arg0: i32) -> (i32, i32, i32) {
    %c0_i32 = arith.constant 0 : i32
    %c0_i32_0 = arith.constant 0 : i32
    %c0_i32_1 = arith.constant 0 : i32
    %c0_i32_2 = arith.constant 0 : i32
    return %c0_i32, %c0_i32_0, %c0_i32_1 : i32, i32, i32
  }
  func.func @transform_16(%arg0: i32) -> (i32, i32, i32) {
    %c0_i32 = arith.constant 0 : i32
    %c0_i32_0 = arith.constant 0 : i32
    %c0_i32_1 = arith.constant 0 : i32
    return %arg0, %c0_i32, %c0_i32_0 : i32, i32, i32
  }
}

</mosaic_0001>

<llo_original>
// kernel: seq_encoder_forward.1
$region0: #{seq_encoder_forward.1}
  #allocation0 [shape = 'u32[]', space=smem, size = 0x4, offset = 0x4, fixed_abs, tag = 'smem constant byte address 0x4 - core index']
  #allocation1 [shape = 'u32[144,128]{1,0:T(1,128)}', space=vmem, size = 0x12000, scoped, tag = 'internal scratch']
  %s0 = inlined_call_operand.vmem [shape: f32[2,8,32], index: 0, kind: input, shape index: {}]
  %s1 = inlined_call_operand.vmem [shape: f32[2,1,8], index: 1, kind: input, shape index: {}]
  %s2 = inlined_call_operand.vmem [shape: f32[1,32], index: 2, kind: input, shape index: {}]
  %s3 = inlined_call_operand.vmem [shape: f32[1,32], index: 3, kind: input, shape index: {}]
  %s4 = inlined_call_operand.vmem [shape: bf16[2,32,96], index: 4, kind: input, shape index: {}]
  %s5 = inlined_call_operand.vmem [shape: f32[2,1,96], index: 5, kind: input, shape index: {}]
  %s6 = inlined_call_operand.vmem [shape: bf16[2,32,32], index: 6, kind: input, shape index: {}]
  %s7 = inlined_call_operand.vmem [shape: f32[2,1,32], index: 7, kind: input, shape index: {}]
  %s8 = inlined_call_operand.vmem [shape: f32[2,1,32], index: 8, kind: input, shape index: {}]
  %s9 = inlined_call_operand.vmem [shape: f32[2,1,32], index: 9, kind: input, shape index: {}]
  %s10 = inlined_call_operand.vmem [shape: bf16[2,32,64], index: 10, kind: input, shape index: {}]
  %s11 = inlined_call_operand.vmem [shape: f32[2,1,64], index: 11, kind: input, shape index: {}]
  %s12 = inlined_call_operand.vmem [shape: bf16[2,64,32], index: 12, kind: input, shape index: {}]
  %s13 = inlined_call_operand.vmem [shape: f32[2,1,32], index: 13, kind: input, shape index: {}]
  %s14 = inlined_call_operand.vmem [shape: f32[2,1,32], index: 14, kind: input, shape index: {}]
  %s15 = inlined_call_operand.vmem [shape: f32[2,1,32], index: 15, kind: input, shape index: {}]
  %s16 = inlined_call_operand.vmem [shape: f32[2,8,32], index: 16, kind: output, shape index: {}]
  %s17 = sld [smem:[#allocation0]]
  $region97: #{seq_encoder_forward.1} parent=0
    _
  %s19 = ssub.s32 1, %s17
  %s20 = scalar_select 0, %s19, %s17
  loop: start=0, step=1, limit=4
  $region2: #{seq_encoder_forward.1} parent=0 // loop_pre_header
    _
  $region3: #{seq_encoder_forward.1} parent=0 // loop_header
    %s22 = sphi 0, %s26
    %p23 = scmp.ge.s32.totalorder %s22, 4
    %s32 = sphi 0, %s34
    %s35 = sphi 0, %s32
    %s36 = sphi 0, %s35
    %s52 = sphi 0, %s36
    %s58 = sphi 0, %s60
    %s61 = sphi 0, %s58
    %s62 = sphi 0, %s61
    %s78 = sphi 0, %s62
    %s82 = sphi 0, %s82
    %s84 = sphi 0, %s82
    %s85 = sphi 0, %s84
    %s99 = sphi 0, %s85
    %s103 = sphi 0, %s103
    %s105 = sphi 0, %s103
    %s106 = sphi 0, %s105
    %s120 = sphi 0, %s106
    %s124 = sphi 0, %s124
    %s126 = sphi 0, %s124
    %s127 = sphi 0, %s126
    %s141 = sphi 0, %s127
    %s145 = sphi 0, %s145
    %s147 = sphi 0, %s145
    %s148 = sphi 0, %s147
    %s162 = sphi 0, %s148
    %s166 = sphi 0, %s166
    %s168 = sphi 0, %s166
    %s169 = sphi 0, %s168
    %s183 = sphi 0, %s169
    %s187 = sphi 0, %s187
    %s189 = sphi 0, %s187
    %s190 = sphi 0, %s189
    %s204 = sphi 0, %s190
    %s208 = sphi 0, %s208
    %s210 = sphi 0, %s208
    %s211 = sphi 0, %s210
    %s225 = sphi 0, %s211
    %s229 = sphi 0, %s229
    %s231 = sphi 0, %s229
    %s232 = sphi 0, %s231
    %s246 = sphi 0, %s232
    %s250 = sphi 0, %s250
    %s252 = sphi 0, %s250
    %s253 = sphi 0, %s252
    %s267 = sphi 0, %s253
    %s271 = sphi 0, %s271
    %s273 = sphi 0, %s271
    %s274 = sphi 0, %s273
    %s288 = sphi 0, %s274
    %s292 = sphi 0, %s292
    %s294 = sphi 0, %s292
    %s295 = sphi 0, %s294
    %s309 = sphi 0, %s295
    %s313 = sphi 0, %s313
    %s315 = sphi 0, %s313
    %s316 = sphi 0, %s315
    %s330 = sphi 0, %s316
    %s334 = sphi 0, %s334
    %s336 = sphi 0, %s334
    %s337 = sphi 0, %s336
    %s351 = sphi 0, %s337
    %s355 = sphi 0, %s355
    %s357 = sphi 0, %s355
    %s358 = sphi 0, %s357
    %s372 = sphi 0, %s358
    %s378 = sphi 0, %s380
    %s381 = sphi 0, %s378
    %s382 = sphi 0, %s381
    %s398 = sphi 0, %s382
  $region4: #{seq_encoder_forward.1} parent=0 // loop_header_branch
    %25 = sbr.rel (%p23) target = $region8
  $region5: #{seq_encoder_forward.1} parent=0 // loop_body
    %s27 = ssub.s32 %s22, 1
    %s28 = ssub.s32 %s22, 2
    %s29 = sadd.s32 %s22, 1
    %s30 = ssub.s32 %s22, %s29
    %p31 = scmp.eq.s32.totalorder %s30, 0
    %s33 = sadd.s32 %s32, 1
    %s34 = scalar_select %p31, %s32, %s33
    %p37 = pneg %p31
    %p38 = scmp.eq.s32.totalorder %s22, 1
    %p39 = por %p37, %p38
    %p40 = scmp.ne.s32.totalorder %s32, %s35
    %p41 = scmp.eq.s32.totalorder %s22, 0
    %p42 = por %p40, %p41
    %p43 = scmp.ne.s32.totalorder %s32, %s35
    %p44 = scmp.eq.s32.totalorder %s27, 1
    %p45 = por %p43, %p44
    %p46 = scmp.ne.s32.totalorder %s35, %s36
    %p47 = scmp.eq.s32.totalorder %s27, 0
    %p48 = por %p46, %p47
    %p49 = scmp.ne.s32.totalorder %s35, %s36
    %p50 = scmp.eq.s32.totalorder %s28, 1
    %p51 = por %p49, %p50
    %p53 = scmp.ne.s32.totalorder %s36, %s52
    %p54 = scmp.eq.s32.totalorder %s28, 0
    %p55 = por %p53, %p54
    %s56 = ssub.s32 %s22, %s29
    %p57 = scmp.eq.s32.totalorder %s56, 0
    %s59 = sadd.s32 %s58, 1
    %s60 = scalar_select %p57, %s58, %s59
    %p63 = pneg %p57
    %p64 = scmp.eq.s32.totalorder %s22, 1
    %p65 = por %p63, %p64
    %p66 = scmp.ne.s32.totalorder %s58, %s61
    %p67 = scmp.eq.s32.totalorder %s22, 0
    %p68 = por %p66, %p67
    %p69 = scmp.ne.s32.totalorder %s58, %s61
    %p70 = scmp.eq.s32.totalorder %s27, 1
    %p71 = por %p69, %p70
    %p72 = scmp.ne.s32.totalorder %s61, %s62
    %p73 = scmp.eq.s32.totalorder %s27, 0
    %p74 = por %p72, %p73
    %p75 = scmp.ne.s32.totalorder %s61, %s62
    %p76 = scmp.eq.s32.totalorder %s28, 1
    %p77 = por %p75, %p76
    %p79 = scmp.ne.s32.totalorder %s62, %s78
    %p80 = scmp.eq.s32.totalorder %s28, 0
    %p81 = por %p79, %p80
    %s83 = sadd.s32 %s82, 1
    %p86 = scmp.eq.s32.totalorder %s22, 1
    %p87 = scmp.ne.s32.totalorder %s82, %s84
    %p88 = scmp.eq.s32.totalorder %s22, 0
    %p89 = por %p87, %p88
    %p90 = scmp.ne.s32.totalorder %s82, %s84
    %p91 = scmp.eq.s32.totalorder %s27, 1
    %p92 = por %p90, %p91
    %p93 = scmp.ne.s32.totalorder %s84, %s85
    %p94 = scmp.eq.s32.totalorder %s27, 0
    %p95 = por %p93, %p94
    %p96 = scmp.ne.s32.totalorder %s84, %s85
    %p97 = scmp.eq.s32.totalorder %s28, 1
    %p98 = por %p96, %p97
    %p100 = scmp.ne.s32.totalorder %s85, %s99
    %p101 = scmp.eq.s32.totalorder %s28, 0
    %p102 = por %p100, %p101
    %s104 = sadd.s32 %s103, 1
    %p107 = scmp.eq.s32.totalorder %s22, 1
    %p108 = scmp.ne.s32.totalorder %s103, %s105
    %p109 = scmp.eq.s32.totalorder %s22, 0
    %p110 = por %p108, %p109
    %p111 = scmp.ne.s32.totalorder %s103, %s105
    %p112 = scmp.eq.s32.totalorder %s27, 1
    %p113 = por %p111, %p112
    %p114 = scmp.ne.s32.totalorder %s105, %s106
    %p115 = scmp.eq.s32.totalorder %s27, 0
    %p116 = por %p114, %p115
    %p117 = scmp.ne.s32.totalorder %s105, %s106
    %p118 = scmp.eq.s32.totalorder %s28, 1
    %p119 = por %p117, %p118
    %p121 = scmp.ne.s32.totalorder %s106, %s120
    %p122 = scmp.eq.s32.totalorder %s28, 0
    %p123 = por %p121, %p122
    %s125 = sadd.s32 %s124, 1
    %p128 = scmp.eq.s32.totalorder %s22, 1
    %p129 = scmp.ne.s32.totalorder %s124, %s126
    %p130 = scmp.eq.s32.totalorder %s22, 0
    %p131 = por %p129, %p130
    %p132 = scmp.ne.s32.totalorder %s124, %s126
    %p133 = scmp.eq.s32.totalorder %s27, 1
    %p134 = por %p132, %p133
    %p135 = scmp.ne.s32.totalorder %s126, %s127
    %p136 = scmp.eq.s32.totalorder %s27, 0
    %p137 = por %p135, %p136
    %p138 = scmp.ne.s32.totalorder %s126, %s127
    %p139 = scmp.eq.s32.totalorder %s28, 1
    %p140 = por %p138, %p139
    %p142 = scmp.ne.s32.totalorder %s127, %s141
    %p143 = scmp.eq.s32.totalorder %s28, 0
    %p144 = por %p142, %p143
    %s146 = sadd.s32 %s145, 1
    %p149 = scmp.eq.s32.totalorder %s22, 1
    %p150 = scmp.ne.s32.totalorder %s145, %s147
    %p151 = scmp.eq.s32.totalorder %s22, 0
    %p152 = por %p150, %p151
    %p153 = scmp.ne.s32.totalorder %s145, %s147
    %p154 = scmp.eq.s32.totalorder %s27, 1
    %p155 = por %p153, %p154
    %p156 = scmp.ne.s32.totalorder %s147, %s148
    %p157 = scmp.eq.s32.totalorder %s27, 0
    %p158 = por %p156, %p157
    %p159 = scmp.ne.s32.totalorder %s147, %s148
    %p160 = scmp.eq.s32.totalorder %s28, 1
    %p161 = por %p159, %p160
    %p163 = scmp.ne.s32.totalorder %s148, %s162
    %p164 = scmp.eq.s32.totalorder %s28, 0
    %p165 = por %p163, %p164
    %s167 = sadd.s32 %s166, 1
    %p170 = scmp.eq.s32.totalorder %s22, 1
    %p171 = scmp.ne.s32.totalorder %s166, %s168
    %p172 = scmp.eq.s32.totalorder %s22, 0
    %p173 = por %p171, %p172
    %p174 = scmp.ne.s32.totalorder %s166, %s168
    %p175 = scmp.eq.s32.totalorder %s27, 1
    %p176 = por %p174, %p175
    %p177 = scmp.ne.s32.totalorder %s168, %s169
    %p178 = scmp.eq.s32.totalorder %s27, 0
    %p179 = por %p177, %p178
    %p180 = scmp.ne.s32.totalorder %s168, %s169
    %p181 = scmp.eq.s32.totalorder %s28, 1
    %p182 = por %p180, %p181
    %p184 = scmp.ne.s32.totalorder %s169, %s183
    %p185 = scmp.eq.s32.totalorder %s28, 0
    %p186 = por %p184, %p185
    %s188 = sadd.s32 %s187, 1
    %p191 = scmp.eq.s32.totalorder %s22, 1
    %p192 = scmp.ne.s32.totalorder %s187, %s189
    %p193 = scmp.eq.s32.totalorder %s22, 0
    %p194 = por %p192, %p193
    %p195 = scmp.ne.s32.totalorder %s187, %s189
    %p196 = scmp.eq.s32.totalorder %s27, 1
    %p197 = por %p195, %p196
    %p198 = scmp.ne.s32.totalorder %s189, %s190
    %p199 = scmp.eq.s32.totalorder %s27, 0
    %p200 = por %p198, %p199
    %p201 = scmp.ne.s32.totalorder %s189, %s190
    %p202 = scmp.eq.s32.totalorder %s28, 1
    %p203 = por %p201, %p202
    %p205 = scmp.ne.s32.totalorder %s190, %s204
    %p206 = scmp.eq.s32.totalorder %s28, 0
    %p207 = por %p205, %p206
    %s209 = sadd.s32 %s208, 1
    %p212 = scmp.eq.s32.totalorder %s22, 1
    %p213 = scmp.ne.s32.totalorder %s208, %s210
    %p214 = scmp.eq.s32.totalorder %s22, 0
    %p215 = por %p213, %p214
    %p216 = scmp.ne.s32.totalorder %s208, %s210
    %p217 = scmp.eq.s32.totalorder %s27, 1
    %p218 = por %p216, %p217
    %p219 = scmp.ne.s32.totalorder %s210, %s211
    %p220 = scmp.eq.s32.totalorder %s27, 0
    %p221 = por %p219, %p220
    %p222 = scmp.ne.s32.totalorder %s210, %s211
    %p223 = scmp.eq.s32.totalorder %s28, 1
    %p224 = por %p222, %p223
    %p226 = scmp.ne.s32.totalorder %s211, %s225
    %p227 = scmp.eq.s32.totalorder %s28, 0
    %p228 = por %p226, %p227
    %s230 = sadd.s32 %s229, 1
    %p233 = scmp.eq.s32.totalorder %s22, 1
    %p234 = scmp.ne.s32.totalorder %s229, %s231
    %p235 = scmp.eq.s32.totalorder %s22, 0
    %p236 = por %p234, %p235
    %p237 = scmp.ne.s32.totalorder %s229, %s231
    %p238 = scmp.eq.s32.totalorder %s27, 1
    %p239 = por %p237, %p238
    %p240 = scmp.ne.s32.totalorder %s231, %s232
    %p241 = scmp.eq.s32.totalorder %s27, 0
    %p242 = por %p240, %p241
    %p243 = scmp.ne.s32.totalorder %s231, %s232
    %p244 = scmp.eq.s32.totalorder %s28, 1
    %p245 = por %p243, %p244
    %p247 = scmp.ne.s32.totalorder %s232, %s246
    %p248 = scmp.eq.s32.totalorder %s28, 0
    %p249 = por %p247, %p248
    %s251 = sadd.s32 %s250, 1
    %p254 = scmp.eq.s32.totalorder %s22, 1
    %p255 = scmp.ne.s32.totalorder %s250, %s252
    %p256 = scmp.eq.s32.totalorder %s22, 0
    %p257 = por %p255, %p256
    %p258 = scmp.ne.s32.totalorder %s250, %s252
    %p259 = scmp.eq.s32.totalorder %s27, 1
    %p260 = por %p258, %p259
    %p261 = scmp.ne.s32.totalorder %s252, %s253
    %p262 = scmp.eq.s32.totalorder %s27, 0
    %p263 = por %p261, %p262
    %p264 = scmp.ne.s32.totalorder %s252, %s253
    %p265 = scmp.eq.s32.totalorder %s28, 1
    %p266 = por %p264, %p265
    %p268 = scmp.ne.s32.totalorder %s253, %s267
    %p269 = scmp.eq.s32.totalorder %s28, 0
    %p270 = por %p268, %p269
    %s272 = sadd.s32 %s271, 1
    %p275 = scmp.eq.s32.totalorder %s22, 1
    %p276 = scmp.ne.s32.totalorder %s271, %s273
    %p277 = scmp.eq.s32.totalorder %s22, 0
    %p278 = por %p276, %p277
    %p279 = scmp.ne.s32.totalorder %s271, %s273
    %p280 = scmp.eq.s32.totalorder %s27, 1
    %p281 = por %p279, %p280
    %p282 = scmp.ne.s32.totalorder %s273, %s274
    %p283 = scmp.eq.s32.totalorder %s27, 0
    %p284 = por %p282, %p283
    %p285 = scmp.ne.s32.totalorder %s273, %s274
    %p286 = scmp.eq.s32.totalorder %s28, 1
    %p287 = por %p285, %p286
    %p289 = scmp.ne.s32.totalorder %s274, %s288
    %p290 = scmp.eq.s32.totalorder %s28, 0
    %p291 = por %p289, %p290
    %s293 = sadd.s32 %s292, 1
    %p296 = scmp.eq.s32.totalorder %s22, 1
    %p297 = scmp.ne.s32.totalorder %s292, %s294
    %p298 = scmp.eq.s32.totalorder %s22, 0
    %p299 = por %p297, %p298
    %p300 = scmp.ne.s32.totalorder %s292, %s294
    %p301 = scmp.eq.s32.totalorder %s27, 1
    %p302 = por %p300, %p301
    %p303 = scmp.ne.s32.totalorder %s294, %s295
    %p304 = scmp.eq.s32.totalorder %s27, 0
    %p305 = por %p303, %p304
    %p306 = scmp.ne.s32.totalorder %s294, %s295
    %p307 = scmp.eq.s32.totalorder %s28, 1
    %p308 = por %p306, %p307
    %p310 = scmp.ne.s32.totalorder %s295, %s309
    %p311 = scmp.eq.s32.totalorder %s28, 0
    %p312 = por %p310, %p311
    %s314 = sadd.s32 %s313, 1
    %p317 = scmp.eq.s32.totalorder %s22, 1
    %p318 = scmp.ne.s32.totalorder %s313, %s315
    %p319 = scmp.eq.s32.totalorder %s22, 0
    %p320 = por %p318, %p319
    %p321 = scmp.ne.s32.totalorder %s313, %s315
    %p322 = scmp.eq.s32.totalorder %s27, 1
    %p323 = por %p321, %p322
    %p324 = scmp.ne.s32.totalorder %s315, %s316
    %p325 = scmp.eq.s32.totalorder %s27, 0
    %p326 = por %p324, %p325
    %p327 = scmp.ne.s32.totalorder %s315, %s316
    %p328 = scmp.eq.s32.totalorder %s28, 1
    %p329 = por %p327, %p328
    %p331 = scmp.ne.s32.totalorder %s316, %s330
    %p332 = scmp.eq.s32.totalorder %s28, 0
    %p333 = por %p331, %p332
    %s335 = sadd.s32 %s334, 1
    %p338 = scmp.eq.s32.totalorder %s22, 1
    %p339 = scmp.ne.s32.totalorder %s334, %s336
    %p340 = scmp.eq.s32.totalorder %s22, 0
    %p341 = por %p339, %p340
    %p342 = scmp.ne.s32.totalorder %s334, %s336
    %p343 = scmp.eq.s32.totalorder %s27, 1
    %p344 = por %p342, %p343
    %p345 = scmp.ne.s32.totalorder %s336, %s337
    %p346 = scmp.eq.s32.totalorder %s27, 0
    %p347 = por %p345, %p346
    %p348 = scmp.ne.s32.totalorder %s336, %s337
    %p349 = scmp.eq.s32.totalorder %s28, 1
    %p350 = por %p348, %p349
    %p352 = scmp.ne.s32.totalorder %s337, %s351
    %p353 = scmp.eq.s32.totalorder %s28, 0
    %p354 = por %p352, %p353
    %s356 = sadd.s32 %s355, 1
    %p359 = scmp.eq.s32.totalorder %s22, 1
    %p360 = scmp.ne.s32.totalorder %s355, %s357
    %p361 = scmp.eq.s32.totalorder %s22, 0
    %p362 = por %p360, %p361
    %p363 = scmp.ne.s32.totalorder %s355, %s357
    %p364 = scmp.eq.s32.totalorder %s27, 1
    %p365 = por %p363, %p364
    %p366 = scmp.ne.s32.totalorder %s357, %s358
    %p367 = scmp.eq.s32.totalorder %s27, 0
    %p368 = por %p366, %p367
    %p369 = scmp.ne.s32.totalorder %s357, %s358
    %p370 = scmp.eq.s32.totalorder %s28, 1
    %p371 = por %p369, %p370
    %p373 = scmp.ne.s32.totalorder %s358, %s372
    %p374 = scmp.eq.s32.totalorder %s28, 0
    %p375 = por %p373, %p374
    %s376 = ssub.s32 %s22, %s29
    %p377 = scmp.eq.s32.totalorder %s376, 0
    %s379 = sadd.s32 %s378, 1
    %s380 = scalar_select %p377, %s378, %s379
    %p383 = pneg %p377
    %p384 = scmp.eq.s32.totalorder %s22, 1
    %p385 = por %p383, %p384
    %p386 = scmp.ne.s32.totalorder %s378, %s381
    %p387 = scmp.eq.s32.totalorder %s22, 0
    %p388 = por %p386, %p387
    %p389 = scmp.ne.s32.totalorder %s378, %s381
    %p390 = scmp.eq.s32.totalorder %s27, 1
    %p391 = por %p389, %p390
    %p392 = scmp.ne.s32.totalorder %s381, %s382
    %p393 = scmp.eq.s32.totalorder %s27, 0
    %p394 = por %p392, %p393
    %p395 = scmp.ne.s32.totalorder %s381, %s382
    %p396 = scmp.eq.s32.totalorder %s28, 1
    %p397 = por %p395, %p396
    %p399 = scmp.ne.s32.totalorder %s382, %s398
    %p400 = scmp.eq.s32.totalorder %s28, 0
    %p401 = por %p399, %p400
    %p402 = scmp.le.s32.totalorder 1, %s22
    %p403 = scmp.lt.s32.totalorder %s22, 3
    %p404 = pnand %p402, %p403
    %p405 = pneg %p404
    // Predicated region
    $region9: #{seq_encoder_forward.1} parent=5 // pred_check
      _
    $region10: #{seq_encoder_forward.1} parent=5 // pred_check_branch
      %407 = sbr.rel (%p404) target = $region12
    $region11: #{seq_encoder_forward.1} parent=5 // pred_region
      %s408 = ssub.s32 %s22, 1
      // Predicated region
      $region13: #{seq_encoder_forward.1} parent=11 // pred_check
        %p409 = pneg %p95
      $region14: #{seq_encoder_forward.1} parent=11 // pred_check_branch
        %411 = sbr.rel (%p409) target = $region16
      $region15: #{seq_encoder_forward.1} parent=11 // pred_region
        _
      $region16: #{seq_encoder_forward.1} parent=11 // pred_fallthru
        _
      // Predicated region
      $region17: #{seq_encoder_forward.1} parent=11 // pred_check
        %p412 = pneg %p116
      $region18: #{seq_encoder_forward.1} parent=11 // pred_check_branch
        %414 = sbr.rel (%p412) target = $region20
      $region19: #{seq_encoder_forward.1} parent=11 // pred_region
        _
      $region20: #{seq_encoder_forward.1} parent=11 // pred_fallthru
        _
      // Predicated region
      $region21: #{seq_encoder_forward.1} parent=11 // pred_check
        %p415 = pneg %p137
      $region22: #{seq_encoder_forward.1} parent=11 // pred_check_branch
        %417 = sbr.rel (%p415) target = $region24
      $region23: #{seq_encoder_forward.1} parent=11 // pred_region
        _
      $region24: #{seq_encoder_forward.1} parent=11 // pred_fallthru
        _
      // Predicated region
      $region25: #{seq_encoder_forward.1} parent=11 // pred_check
        %p418 = pneg %p158
      $region26: #{seq_encoder_forward.1} parent=11 // pred_check_branch
        %420 = sbr.rel (%p418) target = $region28
      $region27: #{seq_encoder_forward.1} parent=11 // pred_region
        _
      $region28: #{seq_encoder_forward.1} parent=11 // pred_fallthru
        _
      // Predicated region
      $region29: #{seq_encoder_forward.1} parent=11 // pred_check
        %p421 = pneg %p179
      $region30: #{seq_encoder_forward.1} parent=11 // pred_check_branch
        %423 = sbr.rel (%p421) target = $region32
      $region31: #{seq_encoder_forward.1} parent=11 // pred_region
        _
      $region32: #{seq_encoder_forward.1} parent=11 // pred_fallthru
        _
      // Predicated region
      $region33: #{seq_encoder_forward.1} parent=11 // pred_check
        %p424 = pneg %p200
      $region34: #{seq_encoder_forward.1} parent=11 // pred_check_branch
        %426 = sbr.rel (%p424) target = $region36
      $region35: #{seq_encoder_forward.1} parent=11 // pred_region
        _
      $region36: #{seq_encoder_forward.1} parent=11 // pred_fallthru
        _
      // Predicated region
      $region37: #{seq_encoder_forward.1} parent=11 // pred_check
        %p427 = pneg %p221
      $region38: #{seq_encoder_forward.1} parent=11 // pred_check_branch
        %429 = sbr.rel (%p427) target = $region40
      $region39: #{seq_encoder_forward.1} parent=11 // pred_region
        _
      $region40: #{seq_encoder_forward.1} parent=11 // pred_fallthru
        _
      // Predicated region
      $region41: #{seq_encoder_forward.1} parent=11 // pred_check
        %p430 = pneg %p242
      $region42: #{seq_encoder_forward.1} parent=11 // pred_check_branch
        %432 = sbr.rel (%p430) target = $region44
      $region43: #{seq_encoder_forward.1} parent=11 // pred_region
        _
      $region44: #{seq_encoder_forward.1} parent=11 // pred_fallthru
        _
      // Predicated region
      $region45: #{seq_encoder_forward.1} parent=11 // pred_check
        %p433 = pneg %p263
      $region46: #{seq_encoder_forward.1} parent=11 // pred_check_branch
        %435 = sbr.rel (%p433) target = $region48
      $region47: #{seq_encoder_forward.1} parent=11 // pred_region
        _
      $region48: #{seq_encoder_forward.1} parent=11 // pred_fallthru
        _
      // Predicated region
      $region49: #{seq_encoder_forward.1} parent=11 // pred_check
        %p436 = pneg %p284
      $region50: #{seq_encoder_forward.1} parent=11 // pred_check_branch
        %438 = sbr.rel (%p436) target = $region52
      $region51: #{seq_encoder_forward.1} parent=11 // pred_region
        _
      $region52: #{seq_encoder_forward.1} parent=11 // pred_fallthru
        _
      // Predicated region
      $region53: #{seq_encoder_forward.1} parent=11 // pred_check
        %p439 = pneg %p305
      $region54: #{seq_encoder_forward.1} parent=11 // pred_check_branch
        %441 = sbr.rel (%p439) target = $region56
      $region55: #{seq_encoder_forward.1} parent=11 // pred_region
        _
      $region56: #{seq_encoder_forward.1} parent=11 // pred_fallthru
        _
      // Predicated region
      $region57: #{seq_encoder_forward.1} parent=11 // pred_check
        %p442 = pneg %p326
      $region58: #{seq_encoder_forward.1} parent=11 // pred_check_branch
        %444 = sbr.rel (%p442) target = $region60
      $region59: #{seq_encoder_forward.1} parent=11 // pred_region
        _
      $region60: #{seq_encoder_forward.1} parent=11 // pred_fallthru
        _
      // Predicated region
      $region61: #{seq_encoder_forward.1} parent=11 // pred_check
        %p445 = pneg %p347
      $region62: #{seq_encoder_forward.1} parent=11 // pred_check_branch
        %447 = sbr.rel (%p445) target = $region64
      $region63: #{seq_encoder_forward.1} parent=11 // pred_region
        _
      $region64: #{seq_encoder_forward.1} parent=11 // pred_fallthru
        _
      // Predicated region
      $region65: #{seq_encoder_forward.1} parent=11 // pred_check
        %p448 = pneg %p368
      $region66: #{seq_encoder_forward.1} parent=11 // pred_check_branch
        %450 = sbr.rel (%p448) target = $region68
      $region67: #{seq_encoder_forward.1} parent=11 // pred_region
        _
      $region68: #{seq_encoder_forward.1} parent=11 // pred_fallthru
        _
    $region12: #{seq_encoder_forward.1} parent=5 // pred_fallthru
      _
    %p451 = scmp.lt.s32.totalorder %s22, 2
    // Predicated region
    $region69: #{seq_encoder_forward.1} parent=5 // pred_check
      %p452 = pneg %p451
    $region70: #{seq_encoder_forward.1} parent=5 // pred_check_branch
      %454 = sbr.rel (%p452) target = $region72
    $region71: #{seq_encoder_forward.1} parent=5 // pred_region
      // Predicated region
      $region73: #{seq_encoder_forward.1} parent=71 // pred_check
        %p455 = pneg %p42
      $region74: #{seq_encoder_forward.1} parent=71 // pred_check_branch
        %457 = sbr.rel (%p455) target = $region76
      $region75: #{seq_encoder_forward.1} parent=71 // pred_region
        %p458 = scmp.lt.s32.totalorder %s22, 1
        %s459 = scalar_select %p458, %s22, 1
        %s460 = smul.addr %s459, 8
        %s461 = scalar_lea.vmem %s0, %s460
      $region76: #{seq_encoder_forward.1} parent=71 // pred_fallthru
        _
      // Predicated region
      $region77: #{seq_encoder_forward.1} parent=71 // pred_check
        %p462 = pneg %p68
      $region78: #{seq_encoder_forward.1} parent=71 // pred_check_branch
        %464 = sbr.rel (%p462) target = $region80
      $region79: #{seq_encoder_forward.1} parent=71 // pred_region
        %p465 = scmp.lt.s32.totalorder %s22, 1
        %s466 = scalar_select %p465, %s22, 1
        %s467 = scalar_lea.vmem %s1, %s466
      $region80: #{seq_encoder_forward.1} parent=71 // pred_fallthru
        _
    $region72: #{seq_encoder_forward.1} parent=5 // pred_fallthru
      _
    %p468 = scmp.le.s32.totalorder 1, %s22
    %p469 = scmp.lt.s32.totalorder %s22, 3
    %p470 = pnand %p468, %p469
    %p471 = pneg %p470
    // Predicated region
    $region81: #{seq_encoder_forward.1} parent=5 // pred_check
      _
    $region82: #{seq_encoder_forward.1} parent=5 // pred_check_branch
      %473 = sbr.rel (%p470) target = $region84
    $region83: #{seq_encoder_forward.1} parent=5 // pred_region
      %s474 = ssub.s32 %s22, 1
      %p475 = scmp.lt.s32.totalorder %s27, 1
      %s476 = scalar_select %p475, %s27, 1
      %s477 = smul.addr %s476, 8
      %s478 = scalar_lea.vmem %s0, %s477
      %p479 = pneg %p48
      %p480 = pneg %p45
      %p481 = scmp.lt.s32.totalorder %s27, 1
      %s482 = scalar_select %p481, %s27, 1
      %s483 = scalar_lea.vmem %s1, %s482
      %p484 = pneg %p74
      %p485 = pneg %p71
      %p486 = pneg %p95
      %p487 = pneg %p92
      %p488 = pneg %p116
      %p489 = pneg %p113
      %p490 = pneg %p137
      %p491 = pneg %p134
      %p492 = pneg %p158
      %p493 = pneg %p155
      %p494 = pneg %p179
      %p495 = pneg %p176
      %p496 = pneg %p200
      %p497 = pneg %p197
      %p498 = pneg %p221
      %p499 = pneg %p218
      %p500 = pneg %p242
      %p501 = pneg %p239
      %p502 = pneg %p263
      %p503 = pneg %p260
      %p504 = pneg %p284
      %p505 = pneg %p281
      %p506 = pneg %p305
      %p507 = pneg %p302
      %p508 = pneg %p326
      %p509 = pneg %p323
      %p510 = pneg %p347
      %p511 = pneg %p344
      %p512 = pneg %p368
      %p513 = pneg %p365
      %p514 = pneg %p394
      %p515 = pneg %p391
      %p516 = scmp.lt.s32.totalorder %s27, 1
      %s517 = scalar_select %p516, %s27, 1
      %s518 = smul.addr %s517, 8
      %s519 = scalar_lea.vmem %s16, %s518
      %p520 = scmp.lt.s32.totalorder %s27, 1
      %s521 = scalar_select %p520, %s27, 1
      %s522 = smul.addr %s521, 8
      %s523 = scalar_lea.vmem %s0, %s522
      %p524 = scmp.lt.s32.totalorder %s27, 1
      %s525 = scalar_select %p524, %s27, 1
      %s526 = scalar_lea.vmem %s1, %s525
      %p527 = scmp.lt.s32.totalorder %s27, 1
      %s528 = scalar_select %p527, %s27, 1
      %s529 = smul.addr %s528, 8
      %s530 = scalar_lea.vmem %s16, %s529
      %v532 = vld [vmem:[%s523] sm:$0xff]
      %v533 = vld [vmem:[%s526] sm:$0x1]
      %v534 = vld [vmem:[%s2] sm:$0x1]
      %v535 = vld [vmem:[%s3] sm:$0x1]
      %vm536 = vcmask 261120
      %v537 = vsel %vm536, %v532, 0.0
      %538 = vadd.xlane.f32.xlu0 %v537
      %v539 = vpop.xlane.xlu0 %538
      %v540 = vrcp.pop 32.0
      %v541 = vmul.f32 %v539, %v540
      %v542 = vsub.f32 %v532, %v541
      %v543 = vmul.f32 %v542, %v542
      %v544 = vsel %vm536, %v543, 0.0
      %545 = vadd.xlane.f32.xlu0 %v544
      %v546 = vpop.xlane.xlu0 %545
      %v547 = vmul.f32 %v546, %v540
      %v548 = vadd.f32 %v547, 1e-12
      %v549 = vrsqrt.pop %v548
      %v550 = vmul.f32 %v542, %v549
      %v552 = vlaneseq
      %v553 = vshrl.u32 %v552, 7
      %v554 = vsub.s32 0, %v553
      %v555 = vrot.slane %v534, %v554
      %v557 = vmul.f32 %v550, %v555
      %v559 = vlaneseq
      %v560 = vshrl.u32 %v559, 7
      %v561 = vsub.s32 0, %v560
      %v562 = vrot.slane %v535, %v561
      %v564 = vadd.f32 %v557, %v562
      %v565 = vpack.c.bf16 %v564, %v564
      %v566 = vld [vmem:[%s4] sm:$0xf]
      %v567 = vld [vmem:[%s4 + $0x4] sm:$0xf]
      %v568 = vld [vmem:[%s4 + $0x8] sm:$0xf]
      %v569 = vld [vmem:[%s4 + $0xc] sm:$0xf]
      %v570 = vld [vmem:[%s5] sm:$0x1]
      %v572 = vlaneseq
      %v573 = vshrl.u32 %v572, 7
      %v574 = vsub.s32 0, %v573
      %v575 = vrot.slane %v570, %v574
      %v581 = vunpack.c.l.b16 %v566
      %v582 = vunpack.c.l.b16 %v567
      %v583 = vunpack.c.l.b16 %v568
      %v584 = vunpack.c.l.b16 %v569
      %v585 = vpack.c.b16 %v582, %v581
      %v586 = vpack.c.b16 %v584, %v583
      %v590 = vsel %vm536, %v565, 0
      %592 = vmatprep.subr.bf16.mxu0 0
      %593 = vmatpush1.bf16.msra.mxu0 0
      %594 = vmatprep.subr.bf16.mxu0 0
      %595 = vmatpush1.bf16.msra.mxu0 0
      %596 = vmatprep.subr.bf16.mxu0 0
      %597 = vmatpush1.bf16.msra.mxu0 0
      %598 = vmatprep.subr.bf16.mxu0 0
      %599 = vmatpush1.bf16.msra.mxu0 0
      %600 = vmatprep.subr.bf16.mxu0 0
      %601 = vmatpush1.bf16.msra.mxu0 0
      %602 = vmatprep.subr.bf16.mxu0 0
      %603 = vmatpush1.bf16.msra.mxu0 0
      %604 = vmatprep.subr.bf16.mxu0 0
      %605 = vmatpush1.bf16.msra.mxu0 %v586
      %606 = vmatprep.subr.bf16.mxu0 0
      %607 = vmatpush1.bf16.msra.mxu0 %v585
      %608 = vmatprep.subr.bf16.mxu0 0
      %609 = vmatpush2.bf16.msra.mxu0 0
      %610 = vmatprep.subr.bf16.mxu0 0
      %611 = vmatpush2.bf16.msra.mxu0 0
      %612 = vmatprep.subr.bf16.mxu0 0
      %613 = vmatpush2.bf16.msra.mxu0 0
      %614 = vmatprep.subr.bf16.mxu0 0
      %615 = vmatpush2.bf16.msra.mxu0 0
      %616 = vmatprep.subr.bf16.mxu0 0
      %617 = vmatpush2.bf16.msra.mxu0 0
      %618 = vmatprep.subr.bf16.mxu0 0
      %619 = vmatpush2.bf16.msra.mxu0 0
      %620 = vmatprep.subr.bf16.mxu0 0
      %621 = vmatpush2.bf16.msra.mxu0 0
      %622 = vmatprep.subr.bf16.mxu0 0
      %623 = vmatpush2.bf16.msra.mxu0 0
      %624 = vmatprep.mubr.bf16.mxu0 0
      %625 = vmatmul.mubr.bf16.gmra.mxu0 %v590
      %v626 = vpop.f32.mrf.mxu0
      %v627 = vadd.f32 %v575, %v626
      %v628 = vpop.f32.mrf.mxu0
      %v629 = vpop.f32.mrf.mxu0
      %v630 = vpop.f32.mrf.mxu0
      %631 = vdwg.mxu0
      %633 = vrot.lane.b32.xlu0 %v627, 112
      %v634 = vpop.permute.xlu0 %633
      %v636 = vcombine.high %v627, 0.0
      %v638 = vunpack.c.l.s4 1983009808
      %v639 = vunpack.c.0.s8 %v638
      %v640 = vlaneseq
      %v641 = vshrl.u32 %v640, 7
      %v642 = vsub.s32 %v639, %v641
      %v643 = vrot.slane %v627, %v642
      %v645 = vunpack.c.l.s4 1983009808
      %v646 = vunpack.c.0.s8 %v645
      %v647 = vlaneseq
      %v648 = vshrl.u32 %v647, 7
      %v649 = vsub.s32 %v646, %v648
      %v650 = vrot.slane %v636, %v649
      %v651 = vcombine.high %v634, 0.0
      %v653 = vunpack.c.l.s4 1983009808
      %v654 = vunpack.c.0.s8 %v653
      %v655 = vlaneseq
      %v656 = vshrl.u32 %v655, 7
      %v657 = vsub.s32 %v654, %v656
      %v658 = vrot.slane %v634, %v657
      %v660 = vunpack.c.l.s4 1983009808
      %v661 = vunpack.c.0.s8 %v660
      %v662 = vlaneseq
      %v663 = vshrl.u32 %v662, 7
      %v664 = vsub.s32 %v661, %v663
      %v665 = vrot.slane %v651, %v664
      %v666 = vcombine.low %v643, %v658
      %v667 = vcombine.high %v643, %v658
      %v669 = vunpack.c.l.s4 1934713408
      %v670 = vunpack.c.0.s8 %v669
      %v671 = vlaneseq
      %v672 = vshrl.u32 %v671, 7
      %v673 = vsub.s32 %v670, %v672
      %v674 = vrot.slane %v666, %v673
      %v676 = vunpack.c.l.s4 1934713408
      %v677 = vunpack.c.0.s8 %v676
      %v678 = vlaneseq
      %v679 = vshrl.u32 %v678, 7
      %v680 = vsub.s32 %v677, %v679
      %v681 = vrot.slane %v667, %v680
      %v682 = vcombine.low %v650, %v665
      %v683 = vcombine.high %v650, %v665
      %v685 = vunpack.c.l.s4 1934713408
      %v686 = vunpack.c.0.s8 %v685
      %v687 = vlaneseq
      %v688 = vshrl.u32 %v687, 7
      %v689 = vsub.s32 %v686, %v688
      %v690 = vrot.slane %v682, %v689
      %v692 = vunpack.c.l.s4 1934713408
      %v693 = vunpack.c.0.s8 %v692
      %v694 = vlaneseq
      %v695 = vshrl.u32 %v694, 7
      %v696 = vsub.s32 %v693, %v695
      %v697 = vrot.slane %v683, %v696
      %v698 = vcombine.high %v674, 0.0
      %v699 = vcombine.high %v681, 0.0
      %v700 = vcombine.high %v690, 0.0
      %v701 = vcombine.high %v697, 0.0
      %702 = vrot.lane.b32.xlu0 %v627, 96
      %v703 = vpop.permute.xlu0 %702
      %704 = vrot.lane.b32.xlu0 %v634, 96
      %v705 = vpop.permute.xlu0 %704
      %v708 = vcombine.high %v703, 0.0
      %v710 = vunpack.c.l.s4 1983009808
      %v711 = vunpack.c.0.s8 %v710
      %v712 = vlaneseq
      %v713 = vshrl.u32 %v712, 7
      %v714 = vsub.s32 %v711, %v713
      %v715 = vrot.slane %v703, %v714
      %v717 = vunpack.c.l.s4 1983009808
      %v718 = vunpack.c.0.s8 %v717
      %v719 = vlaneseq
      %v720 = vshrl.u32 %v719, 7
      %v721 = vsub.s32 %v718, %v720
      %v722 = vrot.slane %v708, %v721
      %v723 = vcombine.high %v705, 0.0
      %v725 = vunpack.c.l.s4 1983009808
      %v726 = vunpack.c.0.s8 %v725
      %v727 = vlaneseq
      %v728 = vshrl.u32 %v727, 7
      %v729 = vsub.s32 %v726, %v728
      %v730 = vrot.slane %v705, %v729
      %v732 = vunpack.c.l.s4 1983009808
      %v733 = vunpack.c.0.s8 %v732
      %v734 = vlaneseq
      %v735 = vshrl.u32 %v734, 7
      %v736 = vsub.s32 %v733, %v735
      %v737 = vrot.slane %v723, %v736
      %v738 = vcombine.low %v715, %v730
      %v739 = vcombine.high %v715, %v730
      %v741 = vunpack.c.l.s4 1934713408
      %v742 = vunpack.c.0.s8 %v741
      %v743 = vlaneseq
      %v744 = vshrl.u32 %v743, 7
      %v745 = vsub.s32 %v742, %v744
      %v746 = vrot.slane %v738, %v745
      %v748 = vunpack.c.l.s4 1934713408
      %v749 = vunpack.c.0.s8 %v748
      %v750 = vlaneseq
      %v751 = vshrl.u32 %v750, 7
      %v752 = vsub.s32 %v749, %v751
      %v753 = vrot.slane %v739, %v752
      %v754 = vcombine.low %v722, %v737
      %v755 = vcombine.high %v722, %v737
      %v757 = vunpack.c.l.s4 1934713408
      %v758 = vunpack.c.0.s8 %v757
      %v759 = vlaneseq
      %v760 = vshrl.u32 %v759, 7
      %v761 = vsub.s32 %v758, %v760
      %v762 = vrot.slane %v754, %v761
      %v764 = vunpack.c.l.s4 1934713408
      %v765 = vunpack.c.0.s8 %v764
      %v766 = vlaneseq
      %v767 = vshrl.u32 %v766, 7
      %v768 = vsub.s32 %v765, %v767
      %v769 = vrot.slane %v755, %v768
      %v770 = vcombine.high %v746, 0.0
      %v771 = vcombine.high %v753, 0.0
      %v772 = vcombine.high %v762, 0.0
      %v773 = vcombine.high %v769, 0.0
      %774 = vrot.lane.b32.xlu0 %v627, 64
      %v775 = vpop.permute.xlu0 %774
      %776 = vrot.lane.b32.xlu0 %v634, 64
      %v777 = vpop.permute.xlu0 %776
      %v780 = vcombine.high %v775, 0.0
      %v782 = vunpack.c.l.s4 1983009808
      %v783 = vunpack.c.0.s8 %v782
      %v784 = vlaneseq
      %v785 = vshrl.u32 %v784, 7
      %v786 = vsub.s32 %v783, %v785
      %v787 = vrot.slane %v775, %v786
      %v789 = vunpack.c.l.s4 1983009808
      %v790 = vunpack.c.0.s8 %v789
      %v791 = vlaneseq
      %v792 = vshrl.u32 %v791, 7
      %v793 = vsub.s32 %v790, %v792
      %v794 = vrot.slane %v780, %v793
      %v795 = vcombine.high %v777, 0.0
      %v797 = vunpack.c.l.s4 1983009808
      %v798 = vunpack.c.0.s8 %v797
      %v799 = vlaneseq
      %v800 = vshrl.u32 %v799, 7
      %v801 = vsub.s32 %v798, %v800
      %v802 = vrot.slane %v777, %v801
      %v804 = vunpack.c.l.s4 1983009808
      %v805 = vunpack.c.0.s8 %v804
      %v806 = vlaneseq
      %v807 = vshrl.u32 %v806, 7
      %v808 = vsub.s32 %v805, %v807
      %v809 = vrot.slane %v795, %v808
      %v810 = vcombine.low %v787, %v802
      %v811 = vcombine.high %v787, %v802
      %v813 = vunpack.c.l.s4 1934713408
      %v814 = vunpack.c.0.s8 %v813
      %v815 = vlaneseq
      %v816 = vshrl.u32 %v815, 7
      %v817 = vsub.s32 %v814, %v816
      %v818 = vrot.slane %v810, %v817
      %v820 = vunpack.c.l.s4 1934713408
      %v821 = vunpack.c.0.s8 %v820
      %v822 = vlaneseq
      %v823 = vshrl.u32 %v822, 7
      %v824 = vsub.s32 %v821, %v823
      %v825 = vrot.slane %v811, %v824
      %v826 = vcombine.low %v794, %v809
      %v827 = vcombine.high %v794, %v809
      %v829 = vunpack.c.l.s4 1934713408
      %v830 = vunpack.c.0.s8 %v829
      %v831 = vlaneseq
      %v832 = vshrl.u32 %v831, 7
      %v833 = vsub.s32 %v830, %v832
      %v834 = vrot.slane %v826, %v833
      %v836 = vunpack.c.l.s4 1934713408
      %v837 = vunpack.c.0.s8 %v836
      %v838 = vlaneseq
      %v839 = vshrl.u32 %v838, 7
      %v840 = vsub.s32 %v837, %v839
      %v841 = vrot.slane %v827, %v840
      %v842 = vcombine.high %v818, 0.0
      %v843 = vcombine.high %v825, 0.0
      %v844 = vcombine.high %v834, 0.0
      %v845 = vcombine.high %v841, 0.0
      %v846 = vpack.c.bf16 %v674, %v674
      %v847 = vpack.c.bf16 %v698, %v698
      %v848 = vpack.c.bf16 %v681, %v681
      %v849 = vpack.c.bf16 %v699, %v699
      %v850 = vpack.c.bf16 %v690, %v690
      %v851 = vpack.c.bf16 %v700, %v700
      %v852 = vpack.c.bf16 %v697, %v697
      %v853 = vpack.c.bf16 %v701, %v701
      %v854 = vpack.c.bf16 %v746, %v746
      %v855 = vpack.c.bf16 %v770, %v770
      %v856 = vpack.c.bf16 %v753, %v753
      %v857 = vpack.c.bf16 %v771, %v771
      %v858 = vpack.c.bf16 %v762, %v762
      %v859 = vpack.c.bf16 %v772, %v772
      %v860 = vpack.c.bf16 %v769, %v769
      %v861 = vpack.c.bf16 %v773, %v773
      %v863 = vlaneseq
      %v864 = vshrl.u32 %v863, 7
      %v865 = vsub.s32 0, %v864
      %v866 = vrot.slane %v533, %v865
      %v868 = vcombine.low %v846, %v850
      %v870 = vunpack.c.l.s4 1983009808
      %v871 = vunpack.c.0.s8 %v870
      %v872 = vlaneseq
      %v873 = vshrl.u32 %v872, 7
      %v874 = vsub.s32 %v871, %v873
      %v875 = vrot.slane %v868, %v874
      %v876 = vcombine.low %v848, %v852
      %v878 = vunpack.c.l.s4 1983009808
      %v879 = vunpack.c.0.s8 %v878
      %v880 = vlaneseq
      %v881 = vshrl.u32 %v880, 7
      %v882 = vsub.s32 %v879, %v881
      %v883 = vrot.slane %v876, %v882
      %v884 = vcombine.low %v875, %v883
      %v886 = vunpack.c.l.s4 1934713408
      %v887 = vunpack.c.0.s8 %v886
      %v888 = vlaneseq
      %v889 = vshrl.u32 %v888, 7
      %v890 = vsub.s32 %v887, %v889
      %v891 = vrot.slane %v884, %v890
      %v892 = vcombine.low %v847, %v851
      %v894 = vunpack.c.l.s4 1983009808
      %v895 = vunpack.c.0.s8 %v894
      %v896 = vlaneseq
      %v897 = vshrl.u32 %v896, 7
      %v898 = vsub.s32 %v895, %v897
      %v899 = vrot.slane %v892, %v898
      %v900 = vcombine.low %v849, %v853
      %v902 = vunpack.c.l.s4 1983009808
      %v903 = vunpack.c.0.s8 %v902
      %v904 = vlaneseq
      %v905 = vshrl.u32 %v904, 7
      %v906 = vsub.s32 %v903, %v905
      %v907 = vrot.slane %v900, %v906
      %v908 = vcombine.low %v899, %v907
      %v910 = vunpack.c.l.s4 1934713408
      %v911 = vunpack.c.0.s8 %v910
      %v912 = vlaneseq
      %v913 = vshrl.u32 %v912, 7
      %v914 = vsub.s32 %v911, %v913
      %v915 = vrot.slane %v908, %v914
      %v918 = vpack.i.b16 %v915, %v891
      %v919 = vshrl.u32 %v891, 16
      %v920 = vshrl.u32 %v915, 16
      %v921 = vpack.i.b16 %v920, %v919
      %922 = vxpose.xlu0.c.b16.start [1/8] %v854, 128
      %923 = vxpose.xlu0.c.b16.cont [2/8] 0, 128
      %924 = vxpose.xlu0.c.b16.cont [3/8] 0, 128
      %925 = vxpose.xlu0.c.b16.cont [4/8] 0, 128
      %926 = vxpose.xlu0.c.b16.cont [5/8] 0, 128
      %927 = vxpose.xlu0.c.b16.cont [6/8] 0, 128
      %928 = vxpose.xlu0.c.b16.cont [7/8] 0, 128
      %929 = vxpose.xlu0.c.b16.end [8/8] 0, 128
      %v930 = vpop.trf.xlu0
      %v931 = vpop.trf.xlu0
      %v932 = vpop.trf.xlu0
      %v933 = vpop.trf.xlu0
      %v934 = vpop.trf.xlu0
      %v935 = vpop.trf.xlu0
      %v936 = vpop.trf.xlu0
      %v937 = vpop.trf.xlu0
      %938 = vxpose.xlu0.c.b16.start [1/8] %v855, 128
      %939 = vxpose.xlu0.c.b16.cont [2/8] 0, 128
      %940 = vxpose.xlu0.c.b16.cont [3/8] 0, 128
      %941 = vxpose.xlu0.c.b16.cont [4/8] 0, 128
      %942 = vxpose.xlu0.c.b16.cont [5/8] 0, 128
      %943 = vxpose.xlu0.c.b16.cont [6/8] 0, 128
      %944 = vxpose.xlu0.c.b16.cont [7/8] 0, 128
      %945 = vxpose.xlu0.c.b16.end [8/8] 0, 128
      %v946 = vpop.trf.xlu0
      %v947 = vpop.trf.xlu0
      %v948 = vpop.trf.xlu0
      %v949 = vpop.trf.xlu0
      %v950 = vpop.trf.xlu0
      %v951 = vpop.trf.xlu0
      %v952 = vpop.trf.xlu0
      %v953 = vpop.trf.xlu0
      %954 = vxpose.xlu0.c.b16.start [1/8] %v856, 128
      %955 = vxpose.xlu0.c.b16.cont [2/8] 0, 128
      %956 = vxpose.xlu0.c.b16.cont [3/8] 0, 128
      %957 = vxpose.xlu0.c.b16.cont [4/8] 0, 128
      %958 = vxpose.xlu0.c.b16.cont [5/8] 0, 128
      %959 = vxpose.xlu0.c.b16.cont [6/8] 0, 128
      %960 = vxpose.xlu0.c.b16.cont [7/8] 0, 128
      %961 = vxpose.xlu0.c.b16.end [8/8] 0, 128
      %v962 = vpop.trf.xlu0
      %v963 = vpop.trf.xlu0
      %v964 = vpop.trf.xlu0
      %v965 = vpop.trf.xlu0
      %v966 = vpop.trf.xlu0
      %v967 = vpop.trf.xlu0
      %v968 = vpop.trf.xlu0
      %v969 = vpop.trf.xlu0
      %970 = vxpose.xlu0.c.b16.start [1/8] %v857, 128
      %971 = vxpose.xlu0.c.b16.cont [2/8] 0, 128
      %972 = vxpose.xlu0.c.b16.cont [3/8] 0, 128
      %973 = vxpose.xlu0.c.b16.cont [4/8] 0, 128
      %974 = vxpose.xlu0.c.b16.cont [5/8] 0, 128
      %975 = vxpose.xlu0.c.b16.cont [6/8] 0, 128
      %976 = vxpose.xlu0.c.b16.cont [7/8] 0, 128
      %977 = vxpose.xlu0.c.b16.end [8/8] 0, 128
      %v978 = vpop.trf.xlu0
      %v979 = vpop.trf.xlu0
      %v980 = vpop.trf.xlu0
      %v981 = vpop.trf.xlu0
      %v982 = vpop.trf.xlu0
      %v983 = vpop.trf.xlu0
      %v984 = vpop.trf.xlu0
      %v985 = vpop.trf.xlu0
      %986 = vxpose.xlu0.c.b16.start [1/8] %v858, 128
      %987 = vxpose.xlu0.c.b16.cont [2/8] 0, 128
      %988 = vxpose.xlu0.c.b16.cont [3/8] 0, 128
      %989 = vxpose.xlu0.c.b16.cont [4/8] 0, 128
      %990 = vxpose.xlu0.c.b16.cont [5/8] 0, 128
      %991 = vxpose.xlu0.c.b16.cont [6/8] 0, 128
      %992 = vxpose.xlu0.c.b16.cont [7/8] 0, 128
      %993 = vxpose.xlu0.c.b16.end [8/8] 0, 128
      %v994 = vpop.trf.xlu0
      %v995 = vpop.trf.xlu0
      %v996 = vpop.trf.xlu0
      %v997 = vpop.trf.xlu0
      %v998 = vpop.trf.xlu0
      %v999 = vpop.trf.xlu0
      %v1000 = vpop.trf.xlu0
      %v1001 = vpop.trf.xlu0
      %1002 = vxpose.xlu0.c.b16.start [1/8] %v859, 128
      %1003 = vxpose.xlu0.c.b16.cont [2/8] 0, 128
      %1004 = vxpose.xlu0.c.b16.cont [3/8] 0, 128
      %1005 = vxpose.xlu0.c.b16.cont [4/8] 0, 128
      %1006 = vxpose.xlu0.c.b16.cont [5/8] 0, 128
      %1007 = vxpose.xlu0.c.b16.cont [6/8] 0, 128
      %1008 = vxpose.xlu0.c.b16.cont [7/8] 0, 128
      %1009 = vxpose.xlu0.c.b16.end [8/8] 0, 128
      %v1010 = vpop.trf.xlu0
      %v1011 = vpop.trf.xlu0
      %v1012 = vpop.trf.xlu0
      %v1013 = vpop.trf.xlu0
      %v1014 = vpop.trf.xlu0
      %v1015 = vpop.trf.xlu0
      %v1016 = vpop.trf.xlu0
      %v1017 = vpop.trf.xlu0
      %1018 = vxpose.xlu0.c.b16.start [1/8] %v860, 128
      %1019 = vxpose.xlu0.c.b16.cont [2/8] 0, 128
      %1020 = vxpose.xlu0.c.b16.cont [3/8] 0, 128
      %1021 = vxpose.xlu0.c.b16.cont [4/8] 0, 128
      %1022 = vxpose.xlu0.c.b16.cont [5/8] 0, 128
      %1023 = vxpose.xlu0.c.b16.cont [6/8] 0, 128
      %1024 = vxpose.xlu0.c.b16.cont [7/8] 0, 128
      %1025 = vxpose.xlu0.c.b16.end [8/8] 0, 128
      %v1026 = vpop.trf.xlu0
      %v1027 = vpop.trf.xlu0
      %v1028 = vpop.trf.xlu0
      %v1029 = vpop.trf.xlu0
      %v1030 = vpop.trf.xlu0
      %v1031 = vpop.trf.xlu0
      %v1032 = vpop.trf.xlu0
      %v1033 = vpop.trf.xlu0
      %1034 = vxpose.xlu0.c.b16.start [1/8] %v861, 128
      %1035 = vxpose.xlu0.c.b16.cont [2/8] 0, 128
      %1036 = vxpose.xlu0.c.b16.cont [3/8] 0, 128
      %1037 = vxpose.xlu0.c.b16.cont [4/8] 0, 128
      %1038 = vxpose.xlu0.c.b16.cont [5/8] 0, 128
      %1039 = vxpose.xlu0.c.b16.cont [6/8] 0, 128
      %1040 = vxpose.xlu0.c.b16.cont [7/8] 0, 128
      %1041 = vxpose.xlu0.c.b16.end [8/8] 0, 128
      %v1042 = vpop.trf.xlu0
      %v1043 = vpop.trf.xlu0
      %v1044 = vpop.trf.xlu0
      %v1045 = vpop.trf.xlu0
      %v1046 = vpop.trf.xlu0
      %v1047 = vpop.trf.xlu0
      %v1048 = vpop.trf.xlu0
      %v1049 = vpop.trf.xlu0
      %v1052 = vpack.i.b16 %v946, %v930
      %v1054 = vshrl.u32 %v930, 16
      %v1055 = vshrl.u32 %v946, 16
      %v1056 = vpack.i.b16 %v1055, %v1054
      %v1060 = vpack.i.b16 %v978, %v962
      %v1062 = vshrl.u32 %v962, 16
      %v1063 = vshrl.u32 %v978, 16
      %v1064 = vpack.i.b16 %v1063, %v1062
      %v1068 = vpack.i.b16 %v1010, %v994
      %v1070 = vshrl.u32 %v994, 16
      %v1071 = vshrl.u32 %v1010, 16
      %v1072 = vpack.i.b16 %v1071, %v1070
      %v1076 = vpack.i.b16 %v1042, %v1026
      %v1078 = vshrl.u32 %v1026, 16
      %v1079 = vshrl.u32 %v1042, 16
      %v1080 = vpack.i.b16 %v1079, %v1078
      %v1082 = vcombine.low %v1052, %v1068
      %v1083 = vcombine.high %v1052, %v1068
      %v1085 = vunpack.c.l.s4 1983009808
      %v1086 = vunpack.c.0.s8 %v1085
      %v1087 = vlaneseq
      %v1088 = vshrl.u32 %v1087, 7
      %v1089 = vsub.s32 %v1086, %v1088
      %v1090 = vrot.slane %v1082, %v1089
      %v1092 = vunpack.c.l.s4 1983009808
      %v1093 = vunpack.c.0.s8 %v1092
      %v1094 = vlaneseq
      %v1095 = vshrl.u32 %v1094, 7
      %v1096 = vsub.s32 %v1093, %v1095
      %v1097 = vrot.slane %v1083, %v1096
      %v1098 = vcombine.low %v1060, %v1076
      %v1099 = vcombine.high %v1060, %v1076
      %v1101 = vunpack.c.l.s4 1983009808
      %v1102 = vunpack.c.0.s8 %v1101
      %v1103 = vlaneseq
      %v1104 = vshrl.u32 %v1103, 7
      %v1105 = vsub.s32 %v1102, %v1104
      %v1106 = vrot.slane %v1098, %v1105
      %v1108 = vunpack.c.l.s4 1983009808
      %v1109 = vunpack.c.0.s8 %v1108
      %v1110 = vlaneseq
      %v1111 = vshrl.u32 %v1110, 7
      %v1112 = vsub.s32 %v1109, %v1111
      %v1113 = vrot.slane %v1099, %v1112
      %v1114 = vcombine.low %v1090, %v1106
      %v1115 = vcombine.high %v1090, %v1106
      %v1117 = vunpack.c.l.s4 1934713408
      %v1118 = vunpack.c.0.s8 %v1117
      %v1119 = vlaneseq
      %v1120 = vshrl.u32 %v1119, 7
      %v1121 = vsub.s32 %v1118, %v1120
      %v1122 = vrot.slane %v1114, %v1121
      %v1124 = vunpack.c.l.s4 1934713408
      %v1125 = vunpack.c.0.s8 %v1124
      %v1126 = vlaneseq
      %v1127 = vshrl.u32 %v1126, 7
      %v1128 = vsub.s32 %v1125, %v1127
      %v1129 = vrot.slane %v1115, %v1128
      %v1130 = vcombine.low %v1097, %v1113
      %v1131 = vcombine.high %v1097, %v1113
      %v1133 = vunpack.c.l.s4 1934713408
      %v1134 = vunpack.c.0.s8 %v1133
      %v1135 = vlaneseq
      %v1136 = vshrl.u32 %v1135, 7
      %v1137 = vsub.s32 %v1134, %v1136
      %v1138 = vrot.slane %v1130, %v1137
      %v1140 = vunpack.c.l.s4 1934713408
      %v1141 = vunpack.c.0.s8 %v1140
      %v1142 = vlaneseq
      %v1143 = vshrl.u32 %v1142, 7
      %v1144 = vsub.s32 %v1141, %v1143
      %v1145 = vrot.slane %v1131, %v1144
      %v1146 = vcombine.high %v1122, 0
      %v1147 = vcombine.high %v1129, 0
      %v1148 = vcombine.high %v1138, 0
      %v1149 = vcombine.high %v1145, 0
      %v1150 = vcombine.low %v1056, %v1072
      %v1151 = vcombine.high %v1056, %v1072
      %v1153 = vunpack.c.l.s4 1983009808
      %v1154 = vunpack.c.0.s8 %v1153
      %v1155 = vlaneseq
      %v1156 = vshrl.u32 %v1155, 7
      %v1157 = vsub.s32 %v1154, %v1156
      %v1158 = vrot.slane %v1150, %v1157
      %v1160 = vunpack.c.l.s4 1983009808
      %v1161 = vunpack.c.0.s8 %v1160
      %v1162 = vlaneseq
      %v1163 = vshrl.u32 %v1162, 7
      %v1164 = vsub.s32 %v1161, %v1163
      %v1165 = vrot.slane %v1151, %v1164
      %v1166 = vcombine.low %v1064, %v1080
      %v1167 = vcombine.high %v1064, %v1080
      %v1169 = vunpack.c.l.s4 1983009808
      %v1170 = vunpack.c.0.s8 %v1169
      %v1171 = vlaneseq
      %v1172 = vshrl.u32 %v1171, 7
      %v1173 = vsub.s32 %v1170, %v1172
      %v1174 = vrot.slane %v1166, %v1173
      %v1176 = vunpack.c.l.s4 1983009808
      %v1177 = vunpack.c.0.s8 %v1176
      %v1178 = vlaneseq
      %v1179 = vshrl.u32 %v1178, 7
      %v1180 = vsub.s32 %v1177, %v1179
      %v1181 = vrot.slane %v1167, %v1180
      %v1182 = vcombine.low %v1158, %v1174
      %v1183 = vcombine.high %v1158, %v1174
      %v1185 = vunpack.c.l.s4 1934713408
      %v1186 = vunpack.c.0.s8 %v1185
      %v1187 = vlaneseq
      %v1188 = vshrl.u32 %v1187, 7
      %v1189 = vsub.s32 %v1186, %v1188
      %v1190 = vrot.slane %v1182, %v1189
      %v1192 = vunpack.c.l.s4 1934713408
      %v1193 = vunpack.c.0.s8 %v1192
      %v1194 = vlaneseq
      %v1195 = vshrl.u32 %v1194, 7
      %v1196 = vsub.s32 %v1193, %v1195
      %v1197 = vrot.slane %v1183, %v1196
      %v1198 = vcombine.low %v1165, %v1181
      %v1199 = vcombine.high %v1165, %v1181
      %v1201 = vunpack.c.l.s4 1934713408
      %v1202 = vunpack.c.0.s8 %v1201
      %v1203 = vlaneseq
      %v1204 = vshrl.u32 %v1203, 7
      %v1205 = vsub.s32 %v1202, %v1204
      %v1206 = vrot.slane %v1198, %v1205
      %v1208 = vunpack.c.l.s4 1934713408
      %v1209 = vunpack.c.0.s8 %v1208
      %v1210 = vlaneseq
      %v1211 = vshrl.u32 %v1210, 7
      %v1212 = vsub.s32 %v1209, %v1211
      %v1213 = vrot.slane %v1199, %v1212
      %v1214 = vcombine.high %v1190, 0
      %v1215 = vcombine.high %v1197, 0
      %v1216 = vcombine.high %v1206, 0
      %v1217 = vcombine.high %v1213, 0
      %1218 = vxpose.xlu0.c.b16.start [1/8] %v1122, 128
      %1219 = vxpose.xlu0.c.b16.cont [2/8] 0, 128
      %1220 = vxpose.xlu0.c.b16.cont [3/8] 0, 128
      %1221 = vxpose.xlu0.c.b16.cont [4/8] 0, 128
      %1222 = vxpose.xlu0.c.b16.cont [5/8] 0, 128
      %1223 = vxpose.xlu0.c.b16.cont [6/8] 0, 128
      %1224 = vxpose.xlu0.c.b16.cont [7/8] 0, 128
      %1225 = vxpose.xlu0.c.b16.end [8/8] 0, 128
      %v1226 = vpop.trf.xlu0
      %v1227 = vpop.trf.xlu0
      %v1228 = vpop.trf.xlu0
      %v1229 = vpop.trf.xlu0
      %v1230 = vpop.trf.xlu0
      %v1231 = vpop.trf.xlu0
      %v1232 = vpop.trf.xlu0
      %v1233 = vpop.trf.xlu0
      %1234 = vxpose.xlu0.c.b16.start [1/8] %v1190, 128
      %1235 = vxpose.xlu0.c.b16.cont [2/8] 0, 128
      %1236 = vxpose.xlu0.c.b16.cont [3/8] 0, 128
      %1237 = vxpose.xlu0.c.b16.cont [4/8] 0, 128
      %1238 = vxpose.xlu0.c.b16.cont [5/8] 0, 128
      %1239 = vxpose.xlu0.c.b16.cont [6/8] 0, 128
      %1240 = vxpose.xlu0.c.b16.cont [7/8] 0, 128
      %1241 = vxpose.xlu0.c.b16.end [8/8] 0, 128
      %v1242 = vpop.trf.xlu0
      %v1243 = vpop.trf.xlu0
      %v1244 = vpop.trf.xlu0
      %v1245 = vpop.trf.xlu0
      %v1246 = vpop.trf.xlu0
      %v1247 = vpop.trf.xlu0
      %v1248 = vpop.trf.xlu0
      %v1249 = vpop.trf.xlu0
      %1250 = vxpose.xlu0.c.b16.start [1/8] %v1146, 128
      %1251 = vxpose.xlu0.c.b16.cont [2/8] 0, 128
      %1252 = vxpose.xlu0.c.b16.cont [3/8] 0, 128
      %1253 = vxpose.xlu0.c.b16.cont [4/8] 0, 128
      %1254 = vxpose.xlu0.c.b16.cont [5/8] 0, 128
      %1255 = vxpose.xlu0.c.b16.cont [6/8] 0, 128
      %1256 = vxpose.xlu0.c.b16.cont [7/8] 0, 128
      %1257 = vxpose.xlu0.c.b16.end [8/8] 0, 128
      %v1258 = vpop.trf.xlu0
      %v1259 = vpop.trf.xlu0
      %v1260 = vpop.trf.xlu0
      %v1261 = vpop.trf.xlu0
      %v1262 = vpop.trf.xlu0
      %v1263 = vpop.trf.xlu0
      %v1264 = vpop.trf.xlu0
      %v1265 = vpop.trf.xlu0
      %1266 = vxpose.xlu0.c.b16.start [1/8] %v1214, 128
      %1267 = vxpose.xlu0.c.b16.cont [2/8] 0, 128
      %1268 = vxpose.xlu0.c.b16.cont [3/8] 0, 128
      %1269 = vxpose.xlu0.c.b16.cont [4/8] 0, 128
      %1270 = vxpose.xlu0.c.b16.cont [5/8] 0, 128
      %1271 = vxpose.xlu0.c.b16.cont [6/8] 0, 128
      %1272 = vxpose.xlu0.c.b16.cont [7/8] 0, 128
      %1273 = vxpose.xlu0.c.b16.end [8/8] 0, 128
      %v1274 = vpop.trf.xlu0
      %v1275 = vpop.trf.xlu0
      %v1276 = vpop.trf.xlu0
      %v1277 = vpop.trf.xlu0
      %v1278 = vpop.trf.xlu0
      %v1279 = vpop.trf.xlu0
      %v1280 = vpop.trf.xlu0
      %v1281 = vpop.trf.xlu0
      %1282 = vxpose.xlu0.c.b16.start [1/8] %v1129, 128
      %1283 = vxpose.xlu0.c.b16.cont [2/8] 0, 128
      %1284 = vxpose.xlu0.c.b16.cont [3/8] 0, 128
      %1285 = vxpose.xlu0.c.b16.cont [4/8] 0, 128
      %1286 = vxpose.xlu0.c.b16.cont [5/8] 0, 128
      %1287 = vxpose.xlu0.c.b16.cont [6/8] 0, 128
      %1288 = vxpose.xlu0.c.b16.cont [7/8] 0, 128
      %1289 = vxpose.xlu0.c.b16.end [8/8] 0, 128
      %v1290 = vpop.trf.xlu0
      %v1291 = vpop.trf.xlu0
      %v1292 = vpop.trf.xlu0
      %v1293 = vpop.trf.xlu0
      %v1294 = vpop.trf.xlu0
      %v1295 = vpop.trf.xlu0
      %v1296 = vpop.trf.xlu0
      %v1297 = vpop.trf.xlu0
      %1298 = vxpose.xlu0.c.b16.start [1/8] %v1197, 128
      %1299 = vxpose.xlu0.c.b16.cont [2/8] 0, 128
      %1300 = vxpose.xlu0.c.b16.cont [3/8] 0, 128
      %1301 = vxpose.xlu0.c.b16.cont [4/8] 0, 128
      %1302 = vxpose.xlu0.c.b16.cont [5/8] 0, 128
      %1303 = vxpose.xlu0.c.b16.cont [6/8] 0, 128
      %1304 = vxpose.xlu0.c.b16.cont [7/8] 0, 128
      %1305 = vxpose.xlu0.c.b16.end [8/8] 0, 128
      %v1306 = vpop.trf.xlu0
      %v1307 = vpop.trf.xlu0
      %v1308 = vpop.trf.xlu0
      %v1309 = vpop.trf.xlu0
      %v1310 = vpop.trf.xlu0
      %v1311 = vpop.trf.xlu0
      %v1312 = vpop.trf.xlu0
      %v1313 = vpop.trf.xlu0
      %1314 = vxpose.xlu0.c.b16.start [1/8] %v1147, 128
      %1315 = vxpose.xlu0.c.b16.cont [2/8] 0, 128
      %1316 = vxpose.xlu0.c.b16.cont [3/8] 0, 128
      %1317 = vxpose.xlu0.c.b16.cont [4/8] 0, 128
      %1318 = vxpose.xlu0.c.b16.cont [5/8] 0, 128
      %1319 = vxpose.xlu0.c.b16.cont [6/8] 0, 128
      %1320 = vxpose.xlu0.c.b16.cont [7/8] 0, 128
      %1321 = vxpose.xlu0.c.b16.end [8/8] 0, 128
      %v1322 = vpop.trf.xlu0
      %v1323 = vpop.trf.xlu0
      %v1324 = vpop.trf.xlu0
      %v1325 = vpop.trf.xlu0
      %v1326 = vpop.trf.xlu0
      %v1327 = vpop.trf.xlu0
      %v1328 = vpop.trf.xlu0
      %v1329 = vpop.trf.xlu0
      %1330 = vxpose.xlu0.c.b16.start [1/8] %v1215, 128
      %1331 = vxpose.xlu0.c.b16.cont [2/8] 0, 128
      %1332 = vxpose.xlu0.c.b16.cont [3/8] 0, 128
      %1333 = vxpose.xlu0.c.b16.cont [4/8] 0, 128
      %1334 = vxpose.xlu0.c.b16.cont [5/8] 0, 128
      %1335 = vxpose.xlu0.c.b16.cont [6/8] 0, 128
      %1336 = vxpose.xlu0.c.b16.cont [7/8] 0, 128
      %1337 = vxpose.xlu0.c.b16.end [8/8] 0, 128
      %v1338 = vpop.trf.xlu0
      %v1339 = vpop.trf.xlu0
      %v1340 = vpop.trf.xlu0
      %v1341 = vpop.trf.xlu0
      %v1342 = vpop.trf.xlu0
      %v1343 = vpop.trf.xlu0
      %v1344 = vpop.trf.xlu0
      %v1345 = vpop.trf.xlu0
      %1346 = vxpose.xlu0.c.b16.start [1/8] %v1138, 128
      %1347 = vxpose.xlu0.c.b16.cont [2/8] 0, 128
      %1348 = vxpose.xlu0.c.b16.cont [3/8] 0, 128
      %1349 = vxpose.xlu0.c.b16.cont [4/8] 0, 128
      %1350 = vxpose.xlu0.c.b16.cont [5/8] 0, 128
      %1351 = vxpose.xlu0.c.b16.cont [6/8] 0, 128
      %1352 = vxpose.xlu0.c.b16.cont [7/8] 0, 128
      %1353 = vxpose.xlu0.c.b16.end [8/8] 0, 128
      %v1354 = vpop.trf.xlu0
      %v1355 = vpop.trf.xlu0
      %v1356 = vpop.trf.xlu0
      %v1357 = vpop.trf.xlu0
      %v1358 = vpop.trf.xlu0
      %v1359 = vpop.trf.xlu0
      %v1360 = vpop.trf.xlu0
      %v1361 = vpop.trf.xlu0
      %1362 = vxpose.xlu0.c.b16.start [1/8] %v1206, 128
      %1363 = vxpose.xlu0.c.b16.cont [2/8] 0, 128
      %1364 = vxpose.xlu0.c.b16.cont [3/8] 0, 128
      %1365 = vxpose.xlu0.c.b16.cont [4/8] 0, 128
      %1366 = vxpose.xlu0.c.b16.cont [5/8] 0, 128
      %1367 = vxpose.xlu0.c.b16.cont [6/8] 0, 128
      %1368 = vxpose.xlu0.c.b16.cont [7/8] 0, 128
      %1369 = vxpose.xlu0.c.b16.end [8/8] 0, 128
      %v1370 = vpop.trf.xlu0
      %v1371 = vpop.trf.xlu0
      %v1372 = vpop.trf.xlu0
      %v1373 = vpop.trf.xlu0
      %v1374 = vpop.trf.xlu0
      %v1375 = vpop.trf.xlu0
      %v1376 = vpop.trf.xlu0
      %v1377 = vpop.trf.xlu0
      %1378 = vxpose.xlu0.c.b16.start [1/8] %v1148, 128
      %1379 = vxpose.xlu0.c.b16.cont [2/8] 0, 128
      %1380 = vxpose.xlu0.c.b16.cont [3/8] 0, 128
      %1381 = vxpose.xlu0.c.b16.cont [4/8] 0, 128
      %1382 = vxpose.xlu0.c.b16.cont [5/8] 0, 128
      %1383 = vxpose.xlu0.c.b16.cont [6/8] 0, 128
      %1384 = vxpose.xlu0.c.b16.cont [7/8] 0, 128
      %1385 = vxpose.xlu0.c.b16.end [8/8] 0, 128
      %v1386 = vpop.trf.xlu0
      %v1387 = vpop.trf.xlu0
      %v1388 = vpop.trf.xlu0
      %v1389 = vpop.trf.xlu0
      %v1390 = vpop.trf.xlu0
      %v1391 = vpop.trf.xlu0
      %v1392 = vpop.trf.xlu0
      %v1393 = vpop.trf.xlu0
      %1394 = vxpose.xlu0.c.b16.start [1/8] %v1216, 128
      %1395 = vxpose.xlu0.c.b16.cont [2/8] 0, 128
      %1396 = vxpose.xlu0.c.b16.cont [3/8] 0, 128
      %1397 = vxpose.xlu0.c.b16.cont [4/8] 0, 128
      %1398 = vxpose.xlu0.c.b16.cont [5/8] 0, 128
      %1399 = vxpose.xlu0.c.b16.cont [6/8] 0, 128
      %1400 = vxpose.xlu0.c.b16.cont [7/8] 0, 128
      %1401 = vxpose.xlu0.c.b16.end [8/8] 0, 128
      %v1402 = vpop.trf.xlu0
      %v1403 = vpop.trf.xlu0
      %v1404 = vpop.trf.xlu0
      %v1405 = vpop.trf.xlu0
      %v1406 = vpop.trf.xlu0
      %v1407 = vpop.trf.xlu0
      %v1408 = vpop.trf.xlu0
      %v1409 = vpop.trf.xlu0
      %1410 = vxpose.xlu0.c.b16.start [1/8] %v1145, 128
      %1411 = vxpose.xlu0.c.b16.cont [2/8] 0, 128
      %1412 = vxpose.xlu0.c.b16.cont [3/8] 0, 128
      %1413 = vxpose.xlu0.c.b16.cont [4/8] 0, 128
      %1414 = vxpose.xlu0.c.b16.cont [5/8] 0, 128
      %1415 = vxpose.xlu0.c.b16.cont [6/8] 0, 128
      %1416 = vxpose.xlu0.c.b16.cont [7/8] 0, 128
      %1417 = vxpose.xlu0.c.b16.end [8/8] 0, 128
      %v1418 = vpop.trf.xlu0
      %v1419 = vpop.trf.xlu0
      %v1420 = vpop.trf.xlu0
      %v1421 = vpop.trf.xlu0
      %v1422 = vpop.trf.xlu0
      %v1423 = vpop.trf.xlu0
      %v1424 = vpop.trf.xlu0
      %v1425 = vpop.trf.xlu0
      %1426 = vxpose.xlu0.c.b16.start [1/8] %v1213, 128
      %1427 = vxpose.xlu0.c.b16.cont [2/8] 0, 128
      %1428 = vxpose.xlu0.c.b16.cont [3/8] 0, 128
      %1429 = vxpose.xlu0.c.b16.cont [4/8] 0, 128
      %1430 = vxpose.xlu0.c.b16.cont [5/8] 0, 128
      %1431 = vxpose.xlu0.c.b16.cont [6/8] 0, 128
      %1432 = vxpose.xlu0.c.b16.cont [7/8] 0, 128
      %1433 = vxpose.xlu0.c.b16.end [8/8] 0, 128
      %v1434 = vpop.trf.xlu0
      %v1435 = vpop.trf.xlu0
      %v1436 = vpop.trf.xlu0
      %v1437 = vpop.trf.xlu0
      %v1438 = vpop.trf.xlu0
      %v1439 = vpop.trf.xlu0
      %v1440 = vpop.trf.xlu0
      %v1441 = vpop.trf.xlu0
      %1442 = vxpose.xlu0.c.b16.start [1/8] %v1149, 128
      %1443 = vxpose.xlu0.c.b16.cont [2/8] 0, 128
      %1444 = vxpose.xlu0.c.b16.cont [3/8] 0, 128
      %1445 = vxpose.xlu0.c.b16.cont [4/8] 0, 128
      %1446 = vxpose.xlu0.c.b16.cont [5/8] 0, 128
      %1447 = vxpose.xlu0.c.b16.cont [6/8] 0, 128
      %1448 = vxpose.xlu0.c.b16.cont [7/8] 0, 128
      %1449 = vxpose.xlu0.c.b16.end [8/8] 0, 128
      %v1450 = vpop.trf.xlu0
      %v1451 = vpop.trf.xlu0
      %v1452 = vpop.trf.xlu0
      %v1453 = vpop.trf.xlu0
      %v1454 = vpop.trf.xlu0
      %v1455 = vpop.trf.xlu0
      %v1456 = vpop.trf.xlu0
      %v1457 = vpop.trf.xlu0
      %1458 = vxpose.xlu0.c.b16.start [1/8] %v1217, 128
      %1459 = vxpose.xlu0.c.b16.cont [2/8] 0, 128
      %1460 = vxpose.xlu0.c.b16.cont [3/8] 0, 128
      %1461 = vxpose.xlu0.c.b16.cont [4/8] 0, 128
      %1462 = vxpose.xlu0.c.b16.cont [5/8] 0, 128
      %1463 = vxpose.xlu0.c.b16.cont [6/8] 0, 128
      %1464 = vxpose.xlu0.c.b16.cont [7/8] 0, 128
      %1465 = vxpose.xlu0.c.b16.end [8/8] 0, 128
      %v1466 = vpop.trf.xlu0
      %v1467 = vpop.trf.xlu0
      %v1468 = vpop.trf.xlu0
      %v1469 = vpop.trf.xlu0
      %v1470 = vpop.trf.xlu0
      %v1471 = vpop.trf.xlu0
      %v1472 = vpop.trf.xlu0
      %v1473 = vpop.trf.xlu0
      %v1474 = vcombine.low %v1226, %v1290
      %v1476 = vunpack.c.l.s4 1983009808
      %v1477 = vunpack.c.0.s8 %v1476
      %v1478 = vlaneseq
      %v1479 = vshrl.u32 %v1478, 7
      %v1480 = vsub.s32 %v1477, %v1479
      %v1481 = vrot.slane %v1474, %v1480
      %v1482 = vcombine.low %v1258, %v1322
      %v1484 = vunpack.c.l.s4 1983009808
      %v1485 = vunpack.c.0.s8 %v1484
      %v1486 = vlaneseq
      %v1487 = vshrl.u32 %v1486, 7
      %v1488 = vsub.s32 %v1485, %v1487
      %v1489 = vrot.slane %v1482, %v1488
      %v1490 = vcombine.low %v1354, %v1418
      %v1492 = vunpack.c.l.s4 1983009808
      %v1493 = vunpack.c.0.s8 %v1492
      %v1494 = vlaneseq
      %v1495 = vshrl.u32 %v1494, 7
      %v1496 = vsub.s32 %v1493, %v1495
      %v1497 = vrot.slane %v1490, %v1496
      %v1498 = vcombine.low %v1386, %v1450
      %v1500 = vunpack.c.l.s4 1983009808
      %v1501 = vunpack.c.0.s8 %v1500
      %v1502 = vlaneseq
      %v1503 = vshrl.u32 %v1502, 7
      %v1504 = vsub.s32 %v1501, %v1503
      %v1505 = vrot.slane %v1498, %v1504
      %v1506 = vcombine.low %v1481, %v1489
      %v1508 = vunpack.c.l.s4 1934713408
      %v1509 = vunpack.c.0.s8 %v1508
      %v1510 = vlaneseq
      %v1511 = vshrl.u32 %v1510, 7
      %v1512 = vsub.s32 %v1509, %v1511
      %v1513 = vrot.slane %v1506, %v1512
      %v1514 = vcombine.low %v1497, %v1505
      %v1516 = vunpack.c.l.s4 1934713408
      %v1517 = vunpack.c.0.s8 %v1516
      %v1518 = vlaneseq
      %v1519 = vshrl.u32 %v1518, 7
      %v1520 = vsub.s32 %v1517, %v1519
      %v1521 = vrot.slane %v1514, %v1520
      %v1522 = vcombine.low %v1513, %v1521
      %v1523 = vcombine.low %v1242, %v1306
      %v1525 = vunpack.c.l.s4 1983009808
      %v1526 = vunpack.c.0.s8 %v1525
      %v1527 = vlaneseq
      %v1528 = vshrl.u32 %v1527, 7
      %v1529 = vsub.s32 %v1526, %v1528
      %v1530 = vrot.slane %v1523, %v1529
      %v1531 = vcombine.low %v1274, %v1338
      %v1533 = vunpack.c.l.s4 1983009808
      %v1534 = vunpack.c.0.s8 %v1533
      %v1535 = vlaneseq
      %v1536 = vshrl.u32 %v1535, 7
      %v1537 = vsub.s32 %v1534, %v1536
      %v1538 = vrot.slane %v1531, %v1537
      %v1539 = vcombine.low %v1370, %v1434
      %v1541 = vunpack.c.l.s4 1983009808
      %v1542 = vunpack.c.0.s8 %v1541
      %v1543 = vlaneseq
      %v1544 = vshrl.u32 %v1543, 7
      %v1545 = vsub.s32 %v1542, %v1544
      %v1546 = vrot.slane %v1539, %v1545
      %v1547 = vcombine.low %v1402, %v1466
      %v1549 = vunpack.c.l.s4 1983009808
      %v1550 = vunpack.c.0.s8 %v1549
      %v1551 = vlaneseq
      %v1552 = vshrl.u32 %v1551, 7
      %v1553 = vsub.s32 %v1550, %v1552
      %v1554 = vrot.slane %v1547, %v1553
      %v1555 = vcombine.low %v1530, %v1538
      %v1557 = vunpack.c.l.s4 1934713408
      %v1558 = vunpack.c.0.s8 %v1557
      %v1559 = vlaneseq
      %v1560 = vshrl.u32 %v1559, 7
      %v1561 = vsub.s32 %v1558, %v1560
      %v1562 = vrot.slane %v1555, %v1561
      %v1563 = vcombine.low %v1546, %v1554
      %v1565 = vunpack.c.l.s4 1934713408
      %v1566 = vunpack.c.0.s8 %v1565
      %v1567 = vlaneseq
      %v1568 = vshrl.u32 %v1567, 7
      %v1569 = vsub.s32 %v1566, %v1568
      %v1570 = vrot.slane %v1563, %v1569
      %v1571 = vcombine.low %v1562, %v1570
      %v1574 = vpack.i.b16 %v1571, %v1522
      %v1576 = vshrl.u32 %v1522, 16
      %v1577 = vshrl.u32 %v1571, 16
      %v1578 = vpack.i.b16 %v1577, %v1576
      %vm1580 = vcmask 130048
      %v1582 = vsel %vm1580, %v918, 0
      %1584 = vmatprep.subr.bf16.mxu0 0
      %1585 = vmatpush1.bf16.msra.mxu0 0
      %1586 = vmatprep.subr.bf16.mxu0 0
      %1587 = vmatpush1.bf16.msra.mxu0 0
      %1588 = vmatprep.subr.bf16.mxu0 0
      %1589 = vmatpush1.bf16.msra.mxu0 0
      %1590 = vmatprep.subr.bf16.mxu0 0
      %1591 = vmatpush1.bf16.msra.mxu0 0
      %1592 = vmatprep.subr.bf16.mxu0 0
      %1593 = vmatpush1.bf16.msra.mxu0 0
      %1594 = vmatprep.subr.bf16.mxu0 0
      %1595 = vmatpush1.bf16.msra.mxu0 0
      %1596 = vmatprep.subr.bf16.mxu0 0
      %1597 = vmatpush1.bf16.msra.mxu0 0
      %1598 = vmatprep.subr.bf16.mxu0 0
      %1599 = vmatpush1.bf16.msra.mxu0 %v1574
      %1600 = vmatprep.subr.bf16.mxu0 0
      %1601 = vmatpush2.bf16.msra.mxu0 0
      %1602 = vmatprep.subr.bf16.mxu0 0
      %1603 = vmatpush2.bf16.msra.mxu0 0
      %1604 = vmatprep.subr.bf16.mxu0 0
      %1605 = vmatpush2.bf16.msra.mxu0 0
      %1606 = vmatprep.subr.bf16.mxu0 0
      %1607 = vmatpush2.bf16.msra.mxu0 0
      %1608 = vmatprep.subr.bf16.mxu0 0
      %1609 = vmatpush2.bf16.msra.mxu0 0
      %1610 = vmatprep.subr.bf16.mxu0 0
      %1611 = vmatpush2.bf16.msra.mxu0 0
      %1612 = vmatprep.subr.bf16.mxu0 0
      %1613 = vmatpush2.bf16.msra.mxu0 0
      %1614 = vmatprep.subr.bf16.mxu0 0
      %1615 = vmatpush2.bf16.msra.mxu0 0
      %1616 = vmatprep.mubr.bf16.mxu0 0
      %1617 = vmatmul.mubr.bf16.gmra.mxu0 %v1582
      %v1618 = vpop.f32.mrf.mxu0
      %v1619 = vadd.f32 %v866, %v1618
      %v1620 = vpop.f32.mrf.mxu0
      %v1621 = vpop.f32.mrf.mxu0
      %v1622 = vpop.f32.mrf.mxu0
      %1623 = vdwg.mxu0
      %v1625 = vsel %vm1580, %v921, 0
      %1627 = vmatprep.subr.bf16.mxu0 0
      %1628 = vmatpush1.bf16.msra.mxu0 0
      %1629 = vmatprep.subr.bf16.mxu0 0
      %1630 = vmatpush1.bf16.msra.mxu0 0
      %1631 = vmatprep.subr.bf16.mxu0 0
      %1632 = vmatpush1.bf16.msra.mxu0 0
      %1633 = vmatprep.subr.bf16.mxu0 0
      %1634 = vmatpush1.bf16.msra.mxu0 0
      %1635 = vmatprep.subr.bf16.mxu0 0
      %1636 = vmatpush1.bf16.msra.mxu0 0
      %1637 = vmatprep.subr.bf16.mxu0 0
      %1638 = vmatpush1.bf16.msra.mxu0 0
      %1639 = vmatprep.subr.bf16.mxu0 0
      %1640 = vmatpush1.bf16.msra.mxu0 0
      %1641 = vmatprep.subr.bf16.mxu0 0
      %1642 = vmatpush1.bf16.msra.mxu0 %v1578
      %1643 = vmatprep.subr.bf16.mxu0 0
      %1644 = vmatpush2.bf16.msra.mxu0 0
      %1645 = vmatprep.subr.bf16.mxu0 0
      %1646 = vmatpush2.bf16.msra.mxu0 0
      %1647 = vmatprep.subr.bf16.mxu0 0
      %1648 = vmatpush2.bf16.msra.mxu0 0
      %1649 = vmatprep.subr.bf16.mxu0 0
      %1650 = vmatpush2.bf16.msra.mxu0 0
      %1651 = vmatprep.subr.bf16.mxu0 0
      %1652 = vmatpush2.bf16.msra.mxu0 0
      %1653 = vmatprep.subr.bf16.mxu0 0
      %1654 = vmatpush2.bf16.msra.mxu0 0
      %1655 = vmatprep.subr.bf16.mxu0 0
      %1656 = vmatpush2.bf16.msra.mxu0 0
      %1657 = vmatprep.subr.bf16.mxu0 0
      %1658 = vmatpush2.bf16.msra.mxu0 0
      %1659 = vmatprep.mubr.bf16.mxu0 0
      %1660 = vmatmul.mubr.bf16.gmra.mxu0 %v1625
      %v1661 = vpop.f32.mrf.mxu0
      %v1662 = vadd.f32 %v866, %v1661
      %v1663 = vpop.f32.mrf.mxu0
      %v1664 = vpop.f32.mrf.mxu0
      %v1665 = vpop.f32.mrf.mxu0
      %1666 = vdwg.mxu0
      %vm1667 = vcmask 64512
      %v1668 = vsel %vm1667, %v1619, -inf
      %1669 = vmax.xlane.f32.xlu0 %v1668
      %v1670 = vpop.xlane.xlu0 %1669
      %v1671 = vsel %vm1667, %v1662, -inf
      %1672 = vmax.xlane.f32.xlu0 %v1671
      %v1673 = vpop.xlane.xlu0 %1672
      %v1674 = vsub.f32 %v1619, %v1670
      %v1675 = vsub.f32 %v1662, %v1673
      %v1676 = vmul.f32 %v1674, 1.442695
      %v1677 = vpow.pop %v1676
      %v1678 = vmul.f32 %v1675, 1.442695
      %v1679 = vpow.pop %v1678
      %v1680 = vsel %vm1667, %v1677, 0.0
      %1681 = vadd.xlane.f32.xlu0 %v1680
      %v1682 = vpop.xlane.xlu0 %1681
      %v1683 = vsel %vm1667, %v1679, 0.0
      %1684 = vadd.xlane.f32.xlu0 %v1683
      %v1685 = vpop.xlane.xlu0 %1684
      %v1686 = vrcp.pop %v1682
      %v1687 = vrcp.pop %v1685
      %v1688 = vmul.f32 %v1677, %v1686
      %v1689 = vmul.f32 %v1679, %v1687
      %v1690 = vpack.c.bf16 %v1688, %v1688
      %v1691 = vpack.c.bf16 %v1689, %v1689
      %v1692 = vpack.c.bf16 %v818, %v818
      %v1693 = vpack.c.bf16 %v842, %v842
      %v1694 = vpack.c.bf16 %v825, %v825
      %v1695 = vpack.c.bf16 %v843, %v843
      %v1696 = vpack.c.bf16 %v834, %v834
      %v1697 = vpack.c.bf16 %v844, %v844
      %v1698 = vpack.c.bf16 %v841, %v841
      %v1699 = vpack.c.bf16 %v845, %v845
      %1700 = vxpose.xlu0.c.b16.start [1/8] %v1692, 128
      %1701 = vxpose.xlu0.c.b16.cont [2/8] 0, 128
      %1702 = vxpose.xlu0.c.b16.cont [3/8] 0, 128
      %1703 = vxpose.xlu0.c.b16.cont [4/8] 0, 128
      %1704 = vxpose.xlu0.c.b16.cont [5/8] 0, 128
      %1705 = vxpose.xlu0.c.b16.cont [6/8] 0, 128
      %1706 = vxpose.xlu0.c.b16.cont [7/8] 0, 128
      %1707 = vxpose.xlu0.c.b16.end [8/8] 0, 128
      %v1708 = vpop.trf.xlu0
      %v1709 = vpop.trf.xlu0
      %v1710 = vpop.trf.xlu0
      %v1711 = vpop.trf.xlu0
      %v1712 = vpop.trf.xlu0
      %v1713 = vpop.trf.xlu0
      %v1714 = vpop.trf.xlu0
      %v1715 = vpop.trf.xlu0
      %1716 = vxpose.xlu0.c.b16.start [1/8] %v1693, 128
      %1717 = vxpose.xlu0.c.b16.cont [2/8] 0, 128
      %1718 = vxpose.xlu0.c.b16.cont [3/8] 0, 128
      %1719 = vxpose.xlu0.c.b16.cont [4/8] 0, 128
      %1720 = vxpose.xlu0.c.b16.cont [5/8] 0, 128
      %1721 = vxpose.xlu0.c.b16.cont [6/8] 0, 128
      %1722 = vxpose.xlu0.c.b16.cont [7/8] 0, 128
      %1723 = vxpose.xlu0.c.b16.end [8/8] 0, 128
      %v1724 = vpop.trf.xlu0
      %v1725 = vpop.trf.xlu0
      %v1726 = vpop.trf.xlu0
      %v1727 = vpop.trf.xlu0
      %v1728 = vpop.trf.xlu0
      %v1729 = vpop.trf.xlu0
      %v1730 = vpop.trf.xlu0
      %v1731 = vpop.trf.xlu0
      %1732 = vxpose.xlu0.c.b16.start [1/8] %v1694, 128
      %1733 = vxpose.xlu0.c.b16.cont [2/8] 0, 128
      %1734 = vxpose.xlu0.c.b16.cont [3/8] 0, 128
      %1735 = vxpose.xlu0.c.b16.cont [4/8] 0, 128
      %1736 = vxpose.xlu0.c.b16.cont [5/8] 0, 128
      %1737 = vxpose.xlu0.c.b16.cont [6/8] 0, 128
      %1738 = vxpose.xlu0.c.b16.cont [7/8] 0, 128
      %1739 = vxpose.xlu0.c.b16.end [8/8] 0, 128
      %v1740 = vpop.trf.xlu0
      %v1741 = vpop.trf.xlu0
      %v1742 = vpop.trf.xlu0
      %v1743 = vpop.trf.xlu0
      %v1744 = vpop.trf.xlu0
      %v1745 = vpop.trf.xlu0
      %v1746 = vpop.trf.xlu0
      %v1747 = vpop.trf.xlu0
      %1748 = vxpose.xlu0.c.b16.start [1/8] %v1695, 128
      %1749 = vxpose.xlu0.c.b16.cont [2/8] 0, 128
      %1750 = vxpose.xlu0.c.b16.cont [3/8] 0, 128
      %1751 = vxpose.xlu0.c.b16.cont [4/8] 0, 128
      %1752 = vxpose.xlu0.c.b16.cont [5/8] 0, 128
      %1753 = vxpose.xlu0.c.b16.cont [6/8] 0, 128
      %1754 = vxpose.xlu0.c.b16.cont [7/8] 0, 128
      %1755 = vxpose.xlu0.c.b16.end [8/8] 0, 128
      %v1756 = vpop.trf.xlu0
      %v1757 = vpop.trf.xlu0
      %v1758 = vpop.trf.xlu0
      %v1759 = vpop.trf.xlu0
      %v1760 = vpop.trf.xlu0
      %v1761 = vpop.trf.xlu0
      %v1762 = vpop.trf.xlu0
      %v1763 = vpop.trf.xlu0
      %1764 = vxpose.xlu0.c.b16.start [1/8] %v1696, 128
      %1765 = vxpose.xlu0.c.b16.cont [2/8] 0, 128
      %1766 = vxpose.xlu0.c.b16.cont [3/8] 0, 128
      %1767 = vxpose.xlu0.c.b16.cont [4/8] 0, 128
      %1768 = vxpose.xlu0.c.b16.cont [5/8] 0, 128
      %1769 = vxpose.xlu0.c.b16.cont [6/8] 0, 128
      %1770 = vxpose.xlu0.c.b16.cont [7/8] 0, 128
      %1771 = vxpose.xlu0.c.b16.end [8/8] 0, 128
      %v1772 = vpop.trf.xlu0
      %v1773 = vpop.trf.xlu0
      %v1774 = vpop.trf.xlu0
      %v1775 = vpop.trf.xlu0
      %v1776 = vpop.trf.xlu0
      %v1777 = vpop.trf.xlu0
      %v1778 = vpop.trf.xlu0
      %v1779 = vpop.trf.xlu0
      %1780 = vxpose.xlu0.c.b16.start [1/8] %v1697, 128
      %1781 = vxpose.xlu0.c.b16.cont [2/8] 0, 128
      %1782 = vxpose.xlu0.c.b16.cont [3/8] 0, 128
      %1783 = vxpose.xlu0.c.b16.cont [4/8] 0, 128
      %1784 = vxpose.xlu0.c.b16.cont [5/8] 0, 128
      %1785 = vxpose.xlu0.c.b16.cont [6/8] 0, 128
      %1786 = vxpose.xlu0.c.b16.cont [7/8] 0, 128
      %1787 = vxpose.xlu0.c.b16.end [8/8] 0, 128
      %v1788 = vpop.trf.xlu0
      %v1789 = vpop.trf.xlu0
      %v1790 = vpop.trf.xlu0
      %v1791 = vpop.trf.xlu0
      %v1792 = vpop.trf.xlu0
      %v1793 = vpop.trf.xlu0
      %v1794 = vpop.trf.xlu0
      %v1795 = vpop.trf.xlu0
      %1796 = vxpose.xlu0.c.b16.start [1/8] %v1698, 128
      %1797 = vxpose.xlu0.c.b16.cont [2/8] 0, 128
      %1798 = vxpose.xlu0.c.b16.cont [3/8] 0, 128
      %1799 = vxpose.xlu0.c.b16.cont [4/8] 0, 128
      %1800 = vxpose.xlu0.c.b16.cont [5/8] 0, 128
      %1801 = vxpose.xlu0.c.b16.cont [6/8] 0, 128
      %1802 = vxpose.xlu0.c.b16.cont [7/8] 0, 128
      %1803 = vxpose.xlu0.c.b16.end [8/8] 0, 128
      %v1804 = vpop.trf.xlu0
      %v1805 = vpop.trf.xlu0
      %v1806 = vpop.trf.xlu0
      %v1807 = vpop.trf.xlu0
      %v1808 = vpop.trf.xlu0
      %v1809 = vpop.trf.xlu0
      %v1810 = vpop.trf.xlu0
      %v1811 = vpop.trf.xlu0
      %1812 = vxpose.xlu0.c.b16.start [1/8] %v1699, 128
      %1813 = vxpose.xlu0.c.b16.cont [2/8] 0, 128
      %1814 = vxpose.xlu0.c.b16.cont [3/8] 0, 128
      %1815 = vxpose.xlu0.c.b16.cont [4/8] 0, 128
      %1816 = vxpose.xlu0.c.b16.cont [5/8] 0, 128
      %1817 = vxpose.xlu0.c.b16.cont [6/8] 0, 128
      %1818 = vxpose.xlu0.c.b16.cont [7/8] 0, 128
      %1819 = vxpose.xlu0.c.b16.end [8/8] 0, 128
      %v1820 = vpop.trf.xlu0
      %v1821 = vpop.trf.xlu0
      %v1822 = vpop.trf.xlu0
      %v1823 = vpop.trf.xlu0
      %v1824 = vpop.trf.xlu0
      %v1825 = vpop.trf.xlu0
      %v1826 = vpop.trf.xlu0
      %v1827 = vpop.trf.xlu0
      %v1830 = vpack.i.b16 %v1724, %v1708
      %v1832 = vshrl.u32 %v1708, 16
      %v1833 = vshrl.u32 %v1724, 16
      %v1834 = vpack.i.b16 %v1833, %v1832
      %v1838 = vpack.i.b16 %v1756, %v1740
      %v1840 = vshrl.u32 %v1740, 16
      %v1841 = vshrl.u32 %v1756, 16
      %v1842 = vpack.i.b16 %v1841, %v1840
      %v1846 = vpack.i.b16 %v1788, %v1772
      %v1848 = vshrl.u32 %v1772, 16
      %v1849 = vshrl.u32 %v1788, 16
      %v1850 = vpack.i.b16 %v1849, %v1848
      %v1854 = vpack.i.b16 %v1820, %v1804
      %v1856 = vshrl.u32 %v1804, 16
      %v1857 = vshrl.u32 %v1820, 16
      %v1858 = vpack.i.b16 %v1857, %v1856
      %v1860 = vcombine.low %v1830, %v1846
      %v1861 = vcombine.high %v1830, %v1846
      %v1863 = vunpack.c.l.s4 1983009808
      %v1864 = vunpack.c.0.s8 %v1863
      %v1865 = vlaneseq
      %v1866 = vshrl.u32 %v1865, 7
      %v1867 = vsub.s32 %v1864, %v1866
      %v1868 = vrot.slane %v1860, %v1867
      %v1870 = vunpack.c.l.s4 1983009808
      %v1871 = vunpack.c.0.s8 %v1870
      %v1872 = vlaneseq
      %v1873 = vshrl.u32 %v1872, 7
      %v1874 = vsub.s32 %v1871, %v1873
      %v1875 = vrot.slane %v1861, %v1874
      %v1876 = vcombine.low %v1838, %v1854
      %v1877 = vcombine.high %v1838, %v1854
      %v1879 = vunpack.c.l.s4 1983009808
      %v1880 = vunpack.c.0.s8 %v1879
      %v1881 = vlaneseq
      %v1882 = vshrl.u32 %v1881, 7
      %v1883 = vsub.s32 %v1880, %v1882
      %v1884 = vrot.slane %v1876, %v1883
      %v1886 = vunpack.c.l.s4 1983009808
      %v1887 = vunpack.c.0.s8 %v1886
      %v1888 = vlaneseq
      %v1889 = vshrl.u32 %v1888, 7
      %v1890 = vsub.s32 %v1887, %v1889
      %v1891 = vrot.slane %v1877, %v1890
      %v1892 = vcombine.low %v1868, %v1884
      %v1893 = vcombine.high %v1868, %v1884
      %v1895 = vunpack.c.l.s4 1934713408
      %v1896 = vunpack.c.0.s8 %v1895
      %v1897 = vlaneseq
      %v1898 = vshrl.u32 %v1897, 7
      %v1899 = vsub.s32 %v1896, %v1898
      %v1900 = vrot.slane %v1892, %v1899
      %v1902 = vunpack.c.l.s4 1934713408
      %v1903 = vunpack.c.0.s8 %v1902
      %v1904 = vlaneseq
      %v1905 = vshrl.u32 %v1904, 7
      %v1906 = vsub.s32 %v1903, %v1905
      %v1907 = vrot.slane %v1893, %v1906
      %v1908 = vcombine.low %v1875, %v1891
      %v1909 = vcombine.high %v1875, %v1891
      %v1911 = vunpack.c.l.s4 1934713408
      %v1912 = vunpack.c.0.s8 %v1911
      %v1913 = vlaneseq
      %v1914 = vshrl.u32 %v1913, 7
      %v1915 = vsub.s32 %v1912, %v1914
      %v1916 = vrot.slane %v1908, %v1915
      %v1918 = vunpack.c.l.s4 1934713408
      %v1919 = vunpack.c.0.s8 %v1918
      %v1920 = vlaneseq
      %v1921 = vshrl.u32 %v1920, 7
      %v1922 = vsub.s32 %v1919, %v1921
      %v1923 = vrot.slane %v1909, %v1922
      %v1924 = vcombine.high %v1900, 0
      %v1925 = vcombine.high %v1907, 0
      %v1926 = vcombine.high %v1916, 0
      %v1927 = vcombine.high %v1923, 0
      %v1928 = vcombine.low %v1834, %v1850
      %v1929 = vcombine.high %v1834, %v1850
      %v1931 = vunpack.c.l.s4 1983009808
      %v1932 = vunpack.c.0.s8 %v1931
      %v1933 = vlaneseq
      %v1934 = vshrl.u32 %v1933, 7
      %v1935 = vsub.s32 %v1932, %v1934
      %v1936 = vrot.slane %v1928, %v1935
      %v1938 = vunpack.c.l.s4 1983009808
      %v1939 = vunpack.c.0.s8 %v1938
      %v1940 = vlaneseq
      %v1941 = vshrl.u32 %v1940, 7
      %v1942 = vsub.s32 %v1939, %v1941
      %v1943 = vrot.slane %v1929, %v1942
      %v1944 = vcombine.low %v1842, %v1858
      %v1945 = vcombine.high %v1842, %v1858
      %v1947 = vunpack.c.l.s4 1983009808
      %v1948 = vunpack.c.0.s8 %v1947
      %v1949 = vlaneseq
      %v1950 = vshrl.u32 %v1949, 7
      %v1951 = vsub.s32 %v1948, %v1950
      %v1952 = vrot.slane %v1944, %v1951
      %v1954 = vunpack.c.l.s4 1983009808
      %v1955 = vunpack.c.0.s8 %v1954
      %v1956 = vlaneseq
      %v1957 = vshrl.u32 %v1956, 7
      %v1958 = vsub.s32 %v1955, %v1957
      %v1959 = vrot.slane %v1945, %v1958
      %v1960 = vcombine.low %v1936, %v1952
      %v1961 = vcombine.high %v1936, %v1952
      %v1963 = vunpack.c.l.s4 1934713408
      %v1964 = vunpack.c.0.s8 %v1963
      %v1965 = vlaneseq
      %v1966 = vshrl.u32 %v1965, 7
      %v1967 = vsub.s32 %v1964, %v1966
      %v1968 = vrot.slane %v1960, %v1967
      %v1970 = vunpack.c.l.s4 1934713408
      %v1971 = vunpack.c.0.s8 %v1970
      %v1972 = vlaneseq
      %v1973 = vshrl.u32 %v1972, 7
      %v1974 = vsub.s32 %v1971, %v1973
      %v1975 = vrot.slane %v1961, %v1974
      %v1976 = vcombine.low %v1943, %v1959
      %v1977 = vcombine.high %v1943, %v1959
      %v1979 = vunpack.c.l.s4 1934713408
      %v1980 = vunpack.c.0.s8 %v1979
      %v1981 = vlaneseq
      %v1982 = vshrl.u32 %v1981, 7
      %v1983 = vsub.s32 %v1980, %v1982
      %v1984 = vrot.slane %v1976, %v1983
      %v1986 = vunpack.c.l.s4 1934713408
      %v1987 = vunpack.c.0.s8 %v1986
      %v1988 = vlaneseq
      %v1989 = vshrl.u32 %v1988, 7
      %v1990 = vsub.s32 %v1987, %v1989
      %v1991 = vrot.slane %v1977, %v1990
      %v1992 = vcombine.high %v1968, 0
      %v1993 = vcombine.high %v1975, 0
      %v1994 = vcombine.high %v1984, 0
      %v1995 = vcombine.high %v1991, 0
      %1996 = vxpose.xlu0.c.b16.start [1/8] %v1900, 128
      %1997 = vxpose.xlu0.c.b16.cont [2/8] 0, 128
      %1998 = vxpose.xlu0.c.b16.cont [3/8] 0, 128
      %1999 = vxpose.xlu0.c.b16.cont [4/8] 0, 128
      %2000 = vxpose.xlu0.c.b16.cont [5/8] 0, 128
      %2001 = vxpose.xlu0.c.b16.cont [6/8] 0, 128
      %2002 = vxpose.xlu0.c.b16.cont [7/8] 0, 128
      %2003 = vxpose.xlu0.c.b16.end [8/8] 0, 128
      %v2004 = vpop.trf.xlu0
      %v2005 = vpop.trf.xlu0
      %v2006 = vpop.trf.xlu0
      %v2007 = vpop.trf.xlu0
      %v2008 = vpop.trf.xlu0
      %v2009 = vpop.trf.xlu0
      %v2010 = vpop.trf.xlu0
      %v2011 = vpop.trf.xlu0
      %2012 = vxpose.xlu0.c.b16.start [1/8] %v1968, 128
      %2013 = vxpose.xlu0.c.b16.cont [2/8] 0, 128
      %2014 = vxpose.xlu0.c.b16.cont [3/8] 0, 128
      %2015 = vxpose.xlu0.c.b16.cont [4/8] 0, 128
      %2016 = vxpose.xlu0.c.b16.cont [5/8] 0, 128
      %2017 = vxpose.xlu0.c.b16.cont [6/8] 0, 128
      %2018 = vxpose.xlu0.c.b16.cont [7/8] 0, 128
      %2019 = vxpose.xlu0.c.b16.end [8/8] 0, 128
      %v2020 = vpop.trf.xlu0
      %v2021 = vpop.trf.xlu0
      %v2022 = vpop.trf.xlu0
      %v2023 = vpop.trf.xlu0
      %v2024 = vpop.trf.xlu0
      %v2025 = vpop.trf.xlu0
      %v2026 = vpop.trf.xlu0
      %v2027 = vpop.trf.xlu0
      %2028 = vxpose.xlu0.c.b16.start [1/8] %v1924, 128
      %2029 = vxpose.xlu0.c.b16.cont [2/8] 0, 128
      %2030 = vxpose.xlu0.c.b16.cont [3/8] 0, 128
      %2031 = vxpose.xlu0.c.b16.cont [4/8] 0, 128
      %2032 = vxpose.xlu0.c.b16.cont [5/8] 0, 128
      %2033 = vxpose.xlu0.c.b16.cont [6/8] 0, 128
      %2034 = vxpose.xlu0.c.b16.cont [7/8] 0, 128
      %2035 = vxpose.xlu0.c.b16.end [8/8] 0, 128
      %v2036 = vpop.trf.xlu0
      %v2037 = vpop.trf.xlu0
      %v2038 = vpop.trf.xlu0
      %v2039 = vpop.trf.xlu0
      %v2040 = vpop.trf.xlu0
      %v2041 = vpop.trf.xlu0
      %v2042 = vpop.trf.xlu0
      %v2043 = vpop.trf.xlu0
      %2044 = vxpose.xlu0.c.b16.start [1/8] %v1992, 128
      %2045 = vxpose.xlu0.c.b16.cont [2/8] 0, 128
      %2046 = vxpose.xlu0.c.b16.cont [3/8] 0, 128
      %2047 = vxpose.xlu0.c.b16.cont [4/8] 0, 128
      %2048 = vxpose.xlu0.c.b16.cont [5/8] 0, 128
      %2049 = vxpose.xlu0.c.b16.cont [6/8] 0, 128
      %2050 = vxpose.xlu0.c.b16.cont [7/8] 0, 128
      %2051 = vxpose.xlu0.c.b16.end [8/8] 0, 128
      %v2052 = vpop.trf.xlu0
      %v2053 = vpop.trf.xlu0
      %v2054 = vpop.trf.xlu0
      %v2055 = vpop.trf.xlu0
      %v2056 = vpop.trf.xlu0
      %v2057 = vpop.trf.xlu0
      %v2058 = vpop.trf.xlu0
      %v2059 = vpop.trf.xlu0
      %2060 = vxpose.xlu0.c.b16.start [1/8] %v1907, 128
      %2061 = vxpose.xlu0.c.b16.cont [2/8] 0, 128
      %2062 = vxpose.xlu0.c.b16.cont [3/8] 0, 128
      %2063 = vxpose.xlu0.c.b16.cont [4/8] 0, 128
      %2064 = vxpose.xlu0.c.b16.cont [5/8] 0, 128
      %2065 = vxpose.xlu0.c.b16.cont [6/8] 0, 128
      %2066 = vxpose.xlu0.c.b16.cont [7/8] 0, 128
      %2067 = vxpose.xlu0.c.b16.end [8/8] 0, 128
      %v2068 = vpop.trf.xlu0
      %v2069 = vpop.trf.xlu0
      %v2070 = vpop.trf.xlu0
      %v2071 = vpop.trf.xlu0
      %v2072 = vpop.trf.xlu0
      %v2073 = vpop.trf.xlu0
      %v2074 = vpop.trf.xlu0
      %v2075 = vpop.trf.xlu0
      %2076 = vxpose.xlu0.c.b16.start [1/8] %v1975, 128
      %2077 = vxpose.xlu0.c.b16.cont [2/8] 0, 128
      %2078 = vxpose.xlu0.c.b16.cont [3/8] 0, 128
      %2079 = vxpose.xlu0.c.b16.cont [4/8] 0, 128
      %2080 = vxpose.xlu0.c.b16.cont [5/8] 0, 128
      %2081 = vxpose.xlu0.c.b16.cont [6/8] 0, 128
      %2082 = vxpose.xlu0.c.b16.cont [7/8] 0, 128
      %2083 = vxpose.xlu0.c.b16.end [8/8] 0, 128
      %v2084 = vpop.trf.xlu0
      %v2085 = vpop.trf.xlu0
      %v2086 = vpop.trf.xlu0
      %v2087 = vpop.trf.xlu0
      %v2088 = vpop.trf.xlu0
      %v2089 = vpop.trf.xlu0
      %v2090 = vpop.trf.xlu0
      %v2091 = vpop.trf.xlu0
      %2092 = vxpose.xlu0.c.b16.start [1/8] %v1925, 128
      %2093 = vxpose.xlu0.c.b16.cont [2/8] 0, 128
      %2094 = vxpose.xlu0.c.b16.cont [3/8] 0, 128
      %2095 = vxpose.xlu0.c.b16.cont [4/8] 0, 128
      %2096 = vxpose.xlu0.c.b16.cont [5/8] 0, 128
      %2097 = vxpose.xlu0.c.b16.cont [6/8] 0, 128
      %2098 = vxpose.xlu0.c.b16.cont [7/8] 0, 128
      %2099 = vxpose.xlu0.c.b16.end [8/8] 0, 128
      %v2100 = vpop.trf.xlu0
      %v2101 = vpop.trf.xlu0
      %v2102 = vpop.trf.xlu0
      %v2103 = vpop.trf.xlu0
      %v2104 = vpop.trf.xlu0
      %v2105 = vpop.trf.xlu0
      %v2106 = vpop.trf.xlu0
      %v2107 = vpop.trf.xlu0
      %2108 = vxpose.xlu0.c.b16.start [1/8] %v1993, 128
      %2109 = vxpose.xlu0.c.b16.cont [2/8] 0, 128
      %2110 = vxpose.xlu0.c.b16.cont [3/8] 0, 128
      %2111 = vxpose.xlu0.c.b16.cont [4/8] 0, 128
      %2112 = vxpose.xlu0.c.b16.cont [5/8] 0, 128
      %2113 = vxpose.xlu0.c.b16.cont [6/8] 0, 128
      %2114 = vxpose.xlu0.c.b16.cont [7/8] 0, 128
      %2115 = vxpose.xlu0.c.b16.end [8/8] 0, 128
      %v2116 = vpop.trf.xlu0
      %v2117 = vpop.trf.xlu0
      %v2118 = vpop.trf.xlu0
      %v2119 = vpop.trf.xlu0
      %v2120 = vpop.trf.xlu0
      %v2121 = vpop.trf.xlu0
      %v2122 = vpop.trf.xlu0
      %v2123 = vpop.trf.xlu0
      %2124 = vxpose.xlu0.c.b16.start [1/8] %v1916, 128
      %2125 = vxpose.xlu0.c.b16.cont [2/8] 0, 128
      %2126 = vxpose.xlu0.c.b16.cont [3/8] 0, 128
      %2127 = vxpose.xlu0.c.b16.cont [4/8] 0, 128
      %2128 = vxpose.xlu0.c.b16.cont [5/8] 0, 128
      %2129 = vxpose.xlu0.c.b16.cont [6/8] 0, 128
      %2130 = vxpose.xlu0.c.b16.cont [7/8] 0, 128
      %2131 = vxpose.xlu0.c.b16.end [8/8] 0, 128
      %v2132 = vpop.trf.xlu0
      %v2133 = vpop.trf.xlu0
      %v2134 = vpop.trf.xlu0
      %v2135 = vpop.trf.xlu0
      %v2136 = vpop.trf.xlu0
      %v2137 = vpop.trf.xlu0
      %v2138 = vpop.trf.xlu0
      %v2139 = vpop.trf.xlu0
      %2140 = vxpose.xlu0.c.b16.start [1/8] %v1984, 128
      %2141 = vxpose.xlu0.c.b16.cont [2/8] 0, 128
      %2142 = vxpose.xlu0.c.b16.cont [3/8] 0, 128
      %2143 = vxpose.xlu0.c.b16.cont [4/8] 0, 128
      %2144 = vxpose.xlu0.c.b16.cont [5/8] 0, 128
      %2145 = vxpose.xlu0.c.b16.cont [6/8] 0, 128
      %2146 = vxpose.xlu0.c.b16.cont [7/8] 0, 128
      %2147 = vxpose.xlu0.c.b16.end [8/8] 0, 128
      %v2148 = vpop.trf.xlu0
      %v2149 = vpop.trf.xlu0
      %v2150 = vpop.trf.xlu0
      %v2151 = vpop.trf.xlu0
      %v2152 = vpop.trf.xlu0
      %v2153 = vpop.trf.xlu0
      %v2154 = vpop.trf.xlu0
      %v2155 = vpop.trf.xlu0
      %2156 = vxpose.xlu0.c.b16.start [1/8] %v1926, 128
      %2157 = vxpose.xlu0.c.b16.cont [2/8] 0, 128
      %2158 = vxpose.xlu0.c.b16.cont [3/8] 0, 128
      %2159 = vxpose.xlu0.c.b16.cont [4/8] 0, 128
      %2160 = vxpose.xlu0.c.b16.cont [5/8] 0, 128
      %2161 = vxpose.xlu0.c.b16.cont [6/8] 0, 128
      %2162 = vxpose.xlu0.c.b16.cont [7/8] 0, 128
      %2163 = vxpose.xlu0.c.b16.end [8/8] 0, 128
      %v2164 = vpop.trf.xlu0
      %v2165 = vpop.trf.xlu0
      %v2166 = vpop.trf.xlu0
      %v2167 = vpop.trf.xlu0
      %v2168 = vpop.trf.xlu0
      %v2169 = vpop.trf.xlu0
      %v2170 = vpop.trf.xlu0
      %v2171 = vpop.trf.xlu0
      %2172 = vxpose.xlu0.c.b16.start [1/8] %v1994, 128
      %2173 = vxpose.xlu0.c.b16.cont [2/8] 0, 128
      %2174 = vxpose.xlu0.c.b16.cont [3/8] 0, 128
      %2175 = vxpose.xlu0.c.b16.cont [4/8] 0, 128
      %2176 = vxpose.xlu0.c.b16.cont [5/8] 0, 128
      %2177 = vxpose.xlu0.c.b16.cont [6/8] 0, 128
      %2178 = vxpose.xlu0.c.b16.cont [7/8] 0, 128
      %2179 = vxpose.xlu0.c.b16.end [8/8] 0, 128
      %v2180 = vpop.trf.xlu0
      %v2181 = vpop.trf.xlu0
      %v2182 = vpop.trf.xlu0
      %v2183 = vpop.trf.xlu0
      %v2184 = vpop.trf.xlu0
      %v2185 = vpop.trf.xlu0
      %v2186 = vpop.trf.xlu0
      %v2187 = vpop.trf.xlu0
      %2188 = vxpose.xlu0.c.b16.start [1/8] %v1923, 128
      %2189 = vxpose.xlu0.c.b16.cont [2/8] 0, 128
      %2190 = vxpose.xlu0.c.b16.cont [3/8] 0, 128
      %2191 = vxpose.xlu0.c.b16.cont [4/8] 0, 128
      %2192 = vxpose.xlu0.c.b16.cont [5/8] 0, 128
      %2193 = vxpose.xlu0.c.b16.cont [6/8] 0, 128
      %2194 = vxpose.xlu0.c.b16.cont [7/8] 0, 128
      %2195 = vxpose.xlu0.c.b16.end [8/8] 0, 128
      %v2196 = vpop.trf.xlu0
      %v2197 = vpop.trf.xlu0
      %v2198 = vpop.trf.xlu0
      %v2199 = vpop.trf.xlu0
      %v2200 = vpop.trf.xlu0
      %v2201 = vpop.trf.xlu0
      %v2202 = vpop.trf.xlu0
      %v2203 = vpop.trf.xlu0
      %2204 = vxpose.xlu0.c.b16.start [1/8] %v1991, 128
      %2205 = vxpose.xlu0.c.b16.cont [2/8] 0, 128
      %2206 = vxpose.xlu0.c.b16.cont [3/8] 0, 128
      %2207 = vxpose.xlu0.c.b16.cont [4/8] 0, 128
      %2208 = vxpose.xlu0.c.b16.cont [5/8] 0, 128
      %2209 = vxpose.xlu0.c.b16.cont [6/8] 0, 128
      %2210 = vxpose.xlu0.c.b16.cont [7/8] 0, 128
      %2211 = vxpose.xlu0.c.b16.end [8/8] 0, 128
      %v2212 = vpop.trf.xlu0
      %v2213 = vpop.trf.xlu0
      %v2214 = vpop.trf.xlu0
      %v2215 = vpop.trf.xlu0
      %v2216 = vpop.trf.xlu0
      %v2217 = vpop.trf.xlu0
      %v2218 = vpop.trf.xlu0
      %v2219 = vpop.trf.xlu0
      %2220 = vxpose.xlu0.c.b16.start [1/8] %v1927, 128
      %2221 = vxpose.xlu0.c.b16.cont [2/8] 0, 128
      %2222 = vxpose.xlu0.c.b16.cont [3/8] 0, 128
      %2223 = vxpose.xlu0.c.b16.cont [4/8] 0, 128
      %2224 = vxpose.xlu0.c.b16.cont [5/8] 0, 128
      %2225 = vxpose.xlu0.c.b16.cont [6/8] 0, 128
      %2226 = vxpose.xlu0.c.b16.cont [7/8] 0, 128
      %2227 = vxpose.xlu0.c.b16.end [8/8] 0, 128
      %v2228 = vpop.trf.xlu0
      %v2229 = vpop.trf.xlu0
      %v2230 = vpop.trf.xlu0
      %v2231 = vpop.trf.xlu0
      %v2232 = vpop.trf.xlu0
      %v2233 = vpop.trf.xlu0
      %v2234 = vpop.trf.xlu0
      %v2235 = vpop.trf.xlu0
      %2236 = vxpose.xlu0.c.b16.start [1/8] %v1995, 128
      %2237 = vxpose.xlu0.c.b16.cont [2/8] 0, 128
      %2238 = vxpose.xlu0.c.b16.cont [3/8] 0, 128
      %2239 = vxpose.xlu0.c.b16.cont [4/8] 0, 128
      %2240 = vxpose.xlu0.c.b16.cont [5/8] 0, 128
      %2241 = vxpose.xlu0.c.b16.cont [6/8] 0, 128
      %2242 = vxpose.xlu0.c.b16.cont [7/8] 0, 128
      %2243 = vxpose.xlu0.c.b16.end [8/8] 0, 128
      %v2244 = vpop.trf.xlu0
      %v2245 = vpop.trf.xlu0
      %v2246 = vpop.trf.xlu0
      %v2247 = vpop.trf.xlu0
      %v2248 = vpop.trf.xlu0
      %v2249 = vpop.trf.xlu0
      %v2250 = vpop.trf.xlu0
      %v2251 = vpop.trf.xlu0
      %v2252 = vcombine.low %v2004, %v2068
      %v2254 = vunpack.c.l.s4 1983009808
      %v2255 = vunpack.c.0.s8 %v2254
      %v2256 = vlaneseq
      %v2257 = vshrl.u32 %v2256, 7
      %v2258 = vsub.s32 %v2255, %v2257
      %v2259 = vrot.slane %v2252, %v2258
      %v2260 = vcombine.low %v2036, %v2100
      %v2262 = vunpack.c.l.s4 1983009808
      %v2263 = vunpack.c.0.s8 %v2262
      %v2264 = vlaneseq
      %v2265 = vshrl.u32 %v2264, 7
      %v2266 = vsub.s32 %v2263, %v2265
      %v2267 = vrot.slane %v2260, %v2266
      %v2268 = vcombine.low %v2132, %v2196
      %v2270 = vunpack.c.l.s4 1983009808
      %v2271 = vunpack.c.0.s8 %v2270
      %v2272 = vlaneseq
      %v2273 = vshrl.u32 %v2272, 7
      %v2274 = vsub.s32 %v2271, %v2273
      %v2275 = vrot.slane %v2268, %v2274
      %v2276 = vcombine.low %v2164, %v2228
      %v2278 = vunpack.c.l.s4 1983009808
      %v2279 = vunpack.c.0.s8 %v2278
      %v2280 = vlaneseq
      %v2281 = vshrl.u32 %v2280, 7
      %v2282 = vsub.s32 %v2279, %v2281
      %v2283 = vrot.slane %v2276, %v2282
      %v2284 = vcombine.low %v2259, %v2267
      %v2286 = vunpack.c.l.s4 1934713408
      %v2287 = vunpack.c.0.s8 %v2286
      %v2288 = vlaneseq
      %v2289 = vshrl.u32 %v2288, 7
      %v2290 = vsub.s32 %v2287, %v2289
      %v2291 = vrot.slane %v2284, %v2290
      %v2292 = vcombine.low %v2275, %v2283
      %v2294 = vunpack.c.l.s4 1934713408
      %v2295 = vunpack.c.0.s8 %v2294
      %v2296 = vlaneseq
      %v2297 = vshrl.u32 %v2296, 7
      %v2298 = vsub.s32 %v2295, %v2297
      %v2299 = vrot.slane %v2292, %v2298
      %v2300 = vcombine.low %v2291, %v2299
      %v2301 = vcombine.low %v2020, %v2084
      %v2303 = vunpack.c.l.s4 1983009808
      %v2304 = vunpack.c.0.s8 %v2303
      %v2305 = vlaneseq
      %v2306 = vshrl.u32 %v2305, 7
      %v2307 = vsub.s32 %v2304, %v2306
      %v2308 = vrot.slane %v2301, %v2307
      %v2309 = vcombine.low %v2052, %v2116
      %v2311 = vunpack.c.l.s4 1983009808
      %v2312 = vunpack.c.0.s8 %v2311
      %v2313 = vlaneseq
      %v2314 = vshrl.u32 %v2313, 7
      %v2315 = vsub.s32 %v2312, %v2314
      %v2316 = vrot.slane %v2309, %v2315
      %v2317 = vcombine.low %v2148, %v2212
      %v2319 = vunpack.c.l.s4 1983009808
      %v2320 = vunpack.c.0.s8 %v2319
      %v2321 = vlaneseq
      %v2322 = vshrl.u32 %v2321, 7
      %v2323 = vsub.s32 %v2320, %v2322
      %v2324 = vrot.slane %v2317, %v2323
      %v2325 = vcombine.low %v2180, %v2244
      %v2327 = vunpack.c.l.s4 1983009808
      %v2328 = vunpack.c.0.s8 %v2327
      %v2329 = vlaneseq
      %v2330 = vshrl.u32 %v2329, 7
      %v2331 = vsub.s32 %v2328, %v2330
      %v2332 = vrot.slane %v2325, %v2331
      %v2333 = vcombine.low %v2308, %v2316
      %v2335 = vunpack.c.l.s4 1934713408
      %v2336 = vunpack.c.0.s8 %v2335
      %v2337 = vlaneseq
      %v2338 = vshrl.u32 %v2337, 7
      %v2339 = vsub.s32 %v2336, %v2338
      %v2340 = vrot.slane %v2333, %v2339
      %v2341 = vcombine.low %v2324, %v2332
      %v2343 = vunpack.c.l.s4 1934713408
      %v2344 = vunpack.c.0.s8 %v2343
      %v2345 = vlaneseq
      %v2346 = vshrl.u32 %v2345, 7
      %v2347 = vsub.s32 %v2344, %v2346
      %v2348 = vrot.slane %v2341, %v2347
      %v2349 = vcombine.low %v2340, %v2348
      %v2352 = vpack.i.b16 %v2349, %v2300
      %v2353 = vshrl.u32 %v2300, 16
      %v2354 = vshrl.u32 %v2349, 16
      %v2355 = vpack.i.b16 %v2354, %v2353
      %v2357 = vsel %vm1667, %v2352, 0
      %v2360 = vsel %vm1667, %v1690, 0
      %2362 = vmatprep.subr.bf16.mxu0 0
      %2363 = vmatpush1.bf16.xpose.msra.mxu0 0
      %2364 = vmatprep.subr.bf16.mxu0 0
      %2365 = vmatpush1.bf16.xpose.msra.mxu0 0
      %2366 = vmatprep.subr.bf16.mxu0 0
      %2367 = vmatpush1.bf16.xpose.msra.mxu0 0
      %2368 = vmatprep.subr.bf16.mxu0 0
      %2369 = vmatpush1.bf16.xpose.msra.mxu0 0
      %2370 = vmatprep.subr.bf16.mxu0 0
      %2371 = vmatpush1.bf16.xpose.msra.mxu0 0
      %2372 = vmatprep.subr.bf16.mxu0 0
      %2373 = vmatpush1.bf16.xpose.msra.mxu0 0
      %2374 = vmatprep.subr.bf16.mxu0 0
      %2375 = vmatpush1.bf16.xpose.msra.mxu0 0
      %2376 = vmatprep.subr.bf16.mxu0 0
      %2377 = vmatpush1.bf16.xpose.msra.mxu0 %v2360
      %2378 = vmatprep.subr.bf16.mxu0 0
      %2379 = vmatpush2.bf16.xpose.msra.mxu0 0
      %2380 = vmatprep.subr.bf16.mxu0 0
      %2381 = vmatpush2.bf16.xpose.msra.mxu0 0
      %2382 = vmatprep.subr.bf16.mxu0 0
      %2383 = vmatpush2.bf16.xpose.msra.mxu0 0
      %2384 = vmatprep.subr.bf16.mxu0 0
      %2385 = vmatpush2.bf16.xpose.msra.mxu0 0
      %2386 = vmatprep.subr.bf16.mxu0 0
      %2387 = vmatpush2.bf16.xpose.msra.mxu0 0
      %2388 = vmatprep.subr.bf16.mxu0 0
      %2389 = vmatpush2.bf16.xpose.msra.mxu0 0
      %2390 = vmatprep.subr.bf16.mxu0 0
      %2391 = vmatpush2.bf16.xpose.msra.mxu0 0
      %2392 = vmatprep.subr.bf16.mxu0 0
      %2393 = vmatpush2.bf16.xpose.msra.mxu0 0
      %2394 = vmatprep.mubr.bf16.mxu0 0
      %2395 = vmatmul.mubr.bf16.gmra.mxu0 %v2357
      %v2396 = vpop.f32.mrf.mxu0
      %v2397 = vadd.f32 0.0, %v2396
      %v2398 = vpop.f32.mrf.mxu0
      %v2399 = vpop.f32.mrf.mxu0
      %v2400 = vadd.f32 0.0, %v2399
      %v2401 = vpop.f32.mrf.mxu0
      %2402 = vdwg.mxu0
      %v2404 = vsel %vm1667, %v2355, 0
      %v2407 = vsel %vm1667, %v1691, 0
      %2409 = vmatprep.subr.bf16.mxu0 0
      %2410 = vmatpush1.bf16.xpose.msra.mxu0 0
      %2411 = vmatprep.subr.bf16.mxu0 0
      %2412 = vmatpush1.bf16.xpose.msra.mxu0 0
      %2413 = vmatprep.subr.bf16.mxu0 0
      %2414 = vmatpush1.bf16.xpose.msra.mxu0 0
      %2415 = vmatprep.subr.bf16.mxu0 0
      %2416 = vmatpush1.bf16.xpose.msra.mxu0 0
      %2417 = vmatprep.subr.bf16.mxu0 0
      %2418 = vmatpush1.bf16.xpose.msra.mxu0 0
      %2419 = vmatprep.subr.bf16.mxu0 0
      %2420 = vmatpush1.bf16.xpose.msra.mxu0 0
      %2421 = vmatprep.subr.bf16.mxu0 0
      %2422 = vmatpush1.bf16.xpose.msra.mxu0 0
      %2423 = vmatprep.subr.bf16.mxu0 0
      %2424 = vmatpush1.bf16.xpose.msra.mxu0 %v2407
      %2425 = vmatprep.subr.bf16.mxu0 0
      %2426 = vmatpush2.bf16.xpose.msra.mxu0 0
      %2427 = vmatprep.subr.bf16.mxu0 0
      %2428 = vmatpush2.bf16.xpose.msra.mxu0 0
      %2429 = vmatprep.subr.bf16.mxu0 0
      %2430 = vmatpush2.bf16.xpose.msra.mxu0 0
      %2431 = vmatprep.subr.bf16.mxu0 0
      %2432 = vmatpush2.bf16.xpose.msra.mxu0 0
      %2433 = vmatprep.subr.bf16.mxu0 0
      %2434 = vmatpush2.bf16.xpose.msra.mxu0 0
      %2435 = vmatprep.subr.bf16.mxu0 0
      %2436 = vmatpush2.bf16.xpose.msra.mxu0 0
      %2437 = vmatprep.subr.bf16.mxu0 0
      %2438 = vmatpush2.bf16.xpose.msra.mxu0 0
      %2439 = vmatprep.subr.bf16.mxu0 0
      %2440 = vmatpush2.bf16.xpose.msra.mxu0 0
      %2441 = vmatprep.mubr.bf16.mxu0 0
      %2442 = vmatmul.mubr.bf16.gmra.mxu0 %v2404
      %v2443 = vpop.f32.mrf.mxu0
      %v2444 = vadd.f32 0.0, %v2443
      %v2445 = vpop.f32.mrf.mxu0
      %v2446 = vpop.f32.mrf.mxu0
      %v2447 = vadd.f32 0.0, %v2446
      %v2448 = vpop.f32.mrf.mxu0
      %2449 = vdwg.mxu0
      %2450 = vxpose.xlu0.b32.start [1/16] %v2397, 128
      %2451 = vxpose.xlu0.b32.cont [2/16] %v2400, 128
      %2452 = vxpose.xlu0.b32.cont [3/16] 0.0, 128
      %2453 = vxpose.xlu0.b32.cont [4/16] 0.0, 128
      %2454 = vxpose.xlu0.b32.cont [5/16] 0.0, 128
      %2455 = vxpose.xlu0.b32.cont [6/16] 0.0, 128
      %2456 = vxpose.xlu0.b32.cont [7/16] 0.0, 128
      %2457 = vxpose.xlu0.b32.cont [8/16] 0.0, 128
      %2458 = vxpose.xlu0.b32.cont [9/16] 0.0, 128
      %2459 = vxpose.xlu0.b32.cont [10/16] 0.0, 128
      %2460 = vxpose.xlu0.b32.cont [11/16] 0.0, 128
      %2461 = vxpose.xlu0.b32.cont [12/16] 0.0, 128
      %2462 = vxpose.xlu0.b32.cont [13/16] 0.0, 128
      %2463 = vxpose.xlu0.b32.cont [14/16] 0.0, 128
      %2464 = vxpose.xlu0.b32.cont [15/16] 0.0, 128
      %2465 = vxpose.xlu0.b32.end [16/16] 0.0, 128
      %v2466 = vpop.trf.xlu0
      %v2467 = vpop.trf.xlu0
      %v2468 = vpop.trf.xlu0
      %v2469 = vpop.trf.xlu0
      %v2470 = vpop.trf.xlu0
      %v2471 = vpop.trf.xlu0
      %v2472 = vpop.trf.xlu0
      %v2473 = vpop.trf.xlu0
      %v2474 = vpop.trf.xlu0
      %v2475 = vpop.trf.xlu0
      %v2476 = vpop.trf.xlu0
      %v2477 = vpop.trf.xlu0
      %v2478 = vpop.trf.xlu0
      %v2479 = vpop.trf.xlu0
      %v2480 = vpop.trf.xlu0
      %v2481 = vpop.trf.xlu0
      %2482 = vxpose.xlu0.b32.start [1/16] %v2444, 128
      %2483 = vxpose.xlu0.b32.cont [2/16] %v2447, 128
      %2484 = vxpose.xlu0.b32.cont [3/16] 0.0, 128
      %2485 = vxpose.xlu0.b32.cont [4/16] 0.0, 128
      %2486 = vxpose.xlu0.b32.cont [5/16] 0.0, 128
      %2487 = vxpose.xlu0.b32.cont [6/16] 0.0, 128
      %2488 = vxpose.xlu0.b32.cont [7/16] 0.0, 128
      %2489 = vxpose.xlu0.b32.cont [8/16] 0.0, 128
      %2490 = vxpose.xlu0.b32.cont [9/16] 0.0, 128
      %2491 = vxpose.xlu0.b32.cont [10/16] 0.0, 128
      %2492 = vxpose.xlu0.b32.cont [11/16] 0.0, 128
      %2493 = vxpose.xlu0.b32.cont [12/16] 0.0, 128
      %2494 = vxpose.xlu0.b32.cont [13/16] 0.0, 128
      %2495 = vxpose.xlu0.b32.cont [14/16] 0.0, 128
      %2496 = vxpose.xlu0.b32.cont [15/16] 0.0, 128
      %2497 = vxpose.xlu0.b32.end [16/16] 0.0, 128
      %v2498 = vpop.trf.xlu0
      %v2499 = vpop.trf.xlu0
      %v2500 = vpop.trf.xlu0
      %v2501 = vpop.trf.xlu0
      %v2502 = vpop.trf.xlu0
      %v2503 = vpop.trf.xlu0
      %v2504 = vpop.trf.xlu0
      %v2505 = vpop.trf.xlu0
      %v2506 = vpop.trf.xlu0
      %v2507 = vpop.trf.xlu0
      %v2508 = vpop.trf.xlu0
      %v2509 = vpop.trf.xlu0
      %v2510 = vpop.trf.xlu0
      %v2511 = vpop.trf.xlu0
      %v2512 = vpop.trf.xlu0
      %v2513 = vpop.trf.xlu0
      %v2514 = vcombine.high %v2466, 0.0
      %v2516 = vunpack.c.l.s4 1983009808
      %v2517 = vunpack.c.0.s8 %v2516
      %v2518 = vlaneseq
      %v2519 = vshrl.u32 %v2518, 7
      %v2520 = vsub.s32 %v2517, %v2519
      %v2521 = vrot.slane %v2466, %v2520
      %v2523 = vunpack.c.l.s4 1983009808
      %v2524 = vunpack.c.0.s8 %v2523
      %v2525 = vlaneseq
      %v2526 = vshrl.u32 %v2525, 7
      %v2527 = vsub.s32 %v2524, %v2526
      %v2528 = vrot.slane %v2514, %v2527
      %v2529 = vcombine.high %v2498, 0.0
      %v2531 = vunpack.c.l.s4 1983009808
      %v2532 = vunpack.c.0.s8 %v2531
      %v2533 = vlaneseq
      %v2534 = vshrl.u32 %v2533, 7
      %v2535 = vsub.s32 %v2532, %v2534
      %v2536 = vrot.slane %v2498, %v2535
      %v2538 = vunpack.c.l.s4 1983009808
      %v2539 = vunpack.c.0.s8 %v2538
      %v2540 = vlaneseq
      %v2541 = vshrl.u32 %v2540, 7
      %v2542 = vsub.s32 %v2539, %v2541
      %v2543 = vrot.slane %v2529, %v2542
      %v2544 = vcombine.low %v2521, %v2536
      %v2545 = vcombine.high %v2521, %v2536
      %v2547 = vunpack.c.l.s4 1934713408
      %v2548 = vunpack.c.0.s8 %v2547
      %v2549 = vlaneseq
      %v2550 = vshrl.u32 %v2549, 7
      %v2551 = vsub.s32 %v2548, %v2550
      %v2552 = vrot.slane %v2544, %v2551
      %v2554 = vunpack.c.l.s4 1934713408
      %v2555 = vunpack.c.0.s8 %v2554
      %v2556 = vlaneseq
      %v2557 = vshrl.u32 %v2556, 7
      %v2558 = vsub.s32 %v2555, %v2557
      %v2559 = vrot.slane %v2545, %v2558
      %v2560 = vcombine.low %v2528, %v2543
      %v2561 = vcombine.high %v2528, %v2543
      %v2563 = vunpack.c.l.s4 1934713408
      %v2564 = vunpack.c.0.s8 %v2563
      %v2565 = vlaneseq
      %v2566 = vshrl.u32 %v2565, 7
      %v2567 = vsub.s32 %v2564, %v2566
      %v2568 = vrot.slane %v2560, %v2567
      %v2570 = vunpack.c.l.s4 1934713408
      %v2571 = vunpack.c.0.s8 %v2570
      %v2572 = vlaneseq
      %v2573 = vshrl.u32 %v2572, 7
      %v2574 = vsub.s32 %v2571, %v2573
      %v2575 = vrot.slane %v2561, %v2574
      %v2576 = vcombine.high %v2552, 0.0
      %v2577 = vcombine.high %v2559, 0.0
      %v2578 = vcombine.high %v2568, 0.0
      %v2579 = vcombine.high %v2575, 0.0
      %v2580 = vcombine.low %v2552, %v2559
      %v2582 = vunpack.c.l.s4 1983009808
      %v2583 = vunpack.c.0.s8 %v2582
      %v2584 = vlaneseq
      %v2585 = vshrl.u32 %v2584, 7
      %v2586 = vsub.s32 %v2583, %v2585
      %v2587 = vrot.slane %v2580, %v2586
      %v2588 = vcombine.low %v2576, %v2577
      %v2590 = vunpack.c.l.s4 1983009808
      %v2591 = vunpack.c.0.s8 %v2590
      %v2592 = vlaneseq
      %v2593 = vshrl.u32 %v2592, 7
      %v2594 = vsub.s32 %v2591, %v2593
      %v2595 = vrot.slane %v2588, %v2594
      %v2596 = vcombine.low %v2568, %v2575
      %v2598 = vunpack.c.l.s4 1983009808
      %v2599 = vunpack.c.0.s8 %v2598
      %v2600 = vlaneseq
      %v2601 = vshrl.u32 %v2600, 7
      %v2602 = vsub.s32 %v2599, %v2601
      %v2603 = vrot.slane %v2596, %v2602
      %v2604 = vcombine.low %v2578, %v2579
      %v2606 = vunpack.c.l.s4 1983009808
      %v2607 = vunpack.c.0.s8 %v2606
      %v2608 = vlaneseq
      %v2609 = vshrl.u32 %v2608, 7
      %v2610 = vsub.s32 %v2607, %v2609
      %v2611 = vrot.slane %v2604, %v2610
      %v2612 = vcombine.low %v2587, %v2595
      %v2614 = vunpack.c.l.s4 1934713408
      %v2615 = vunpack.c.0.s8 %v2614
      %v2616 = vlaneseq
      %v2617 = vshrl.u32 %v2616, 7
      %v2618 = vsub.s32 %v2615, %v2617
      %v2619 = vrot.slane %v2612, %v2618
      %v2620 = vcombine.low %v2603, %v2611
      %v2622 = vunpack.c.l.s4 1934713408
      %v2623 = vunpack.c.0.s8 %v2622
      %v2624 = vlaneseq
      %v2625 = vshrl.u32 %v2624, 7
      %v2626 = vsub.s32 %v2623, %v2625
      %v2627 = vrot.slane %v2620, %v2626
      %v2628 = vcombine.low %v2619, %v2627
      %v2629 = vcombine.high %v2619, %v2627
      %2631 = vrot.lane.b32.xlu0 %v2629, 16
      %v2632 = vpop.permute.xlu0 %2631
      %v2634 = vsel %vm1580, %v2628, %v2632
      %v2635 = vpack.c.bf16 %v2634, %v2634
      %v2636 = vld [vmem:[%s6] sm:$0xf]
      %v2637 = vld [vmem:[%s6 + $0x4] sm:$0xf]
      %v2638 = vld [vmem:[%s6 + $0x8] sm:$0xf]
      %v2639 = vld [vmem:[%s6 + $0xc] sm:$0xf]
      %v2640 = vld [vmem:[%s7] sm:$0x1]
      %v2642 = vlaneseq
      %v2643 = vshrl.u32 %v2642, 7
      %v2644 = vsub.s32 0, %v2643
      %v2645 = vrot.slane %v2640, %v2644
      %v2651 = vunpack.c.l.b16 %v2636
      %v2652 = vunpack.c.l.b16 %v2637
      %v2653 = vunpack.c.l.b16 %v2638
      %v2654 = vunpack.c.l.b16 %v2639
      %v2655 = vpack.c.b16 %v2652, %v2651
      %v2656 = vpack.c.b16 %v2654, %v2653
      %v2660 = vsel %vm536, %v2635, 0
      %2662 = vmatprep.subr.bf16.mxu0 0
      %2663 = vmatpush1.bf16.msra.mxu0 0
      %2664 = vmatprep.subr.bf16.mxu0 0
      %2665 = vmatpush1.bf16.msra.mxu0 0
      %2666 = vmatprep.subr.bf16.mxu0 0
      %2667 = vmatpush1.bf16.msra.mxu0 0
      %2668 = vmatprep.subr.bf16.mxu0 0
      %2669 = vmatpush1.bf16.msra.mxu0 0
      %2670 = vmatprep.subr.bf16.mxu0 0
      %2671 = vmatpush1.bf16.msra.mxu0 0
      %2672 = vmatprep.subr.bf16.mxu0 0
      %2673 = vmatpush1.bf16.msra.mxu0 0
      %2674 = vmatprep.subr.bf16.mxu0 0
      %2675 = vmatpush1.bf16.msra.mxu0 %v2656
      %2676 = vmatprep.subr.bf16.mxu0 0
      %2677 = vmatpush1.bf16.msra.mxu0 %v2655
      %2678 = vmatprep.subr.bf16.mxu0 0
      %2679 = vmatpush2.bf16.msra.mxu0 0
      %2680 = vmatprep.subr.bf16.mxu0 0
      %2681 = vmatpush2.bf16.msra.mxu0 0
      %2682 = vmatprep.subr.bf16.mxu0 0
      %2683 = vmatpush2.bf16.msra.mxu0 0
      %2684 = vmatprep.subr.bf16.mxu0 0
      %2685 = vmatpush2.bf16.msra.mxu0 0
      %2686 = vmatprep.subr.bf16.mxu0 0
      %2687 = vmatpush2.bf16.msra.mxu0 0
      %2688 = vmatprep.subr.bf16.mxu0 0
      %2689 = vmatpush2.bf16.msra.mxu0 0
      %2690 = vmatprep.subr.bf16.mxu0 0
      %2691 = vmatpush2.bf16.msra.mxu0 0
      %2692 = vmatprep.subr.bf16.mxu0 0
      %2693 = vmatpush2.bf16.msra.mxu0 0
      %2694 = vmatprep.mubr.bf16.mxu0 0
      %2695 = vmatmul.mubr.bf16.gmra.mxu0 %v2660
      %v2696 = vpop.f32.mrf.mxu0
      %v2697 = vadd.f32 %v2645, %v2696
      %v2698 = vpop.f32.mrf.mxu0
      %v2699 = vpop.f32.mrf.mxu0
      %v2700 = vpop.f32.mrf.mxu0
      %2701 = vdwg.mxu0
      %v2702 = vadd.f32 %v2697, %v564
      %v2703 = vld [vmem:[%s8] sm:$0x1]
      %v2704 = vld [vmem:[%s9] sm:$0x1]
      %v2705 = vsel %vm536, %v2702, 0.0
      %2706 = vadd.xlane.f32.xlu0 %v2705
      %v2707 = vpop.xlane.xlu0 %2706
      %v2708 = vmul.f32 %v2707, %v540
      %v2709 = vsub.f32 %v2702, %v2708
      %v2710 = vmul.f32 %v2709, %v2709
      %v2711 = vsel %vm536, %v2710, 0.0
      %2712 = vadd.xlane.f32.xlu0 %v2711
      %v2713 = vpop.xlane.xlu0 %2712
      %v2714 = vmul.f32 %v2713, %v540
      %v2715 = vadd.f32 %v2714, 1e-12
      %v2716 = vrsqrt.pop %v2715
      %v2717 = vmul.f32 %v2709, %v2716
      %v2719 = vlaneseq
      %v2720 = vshrl.u32 %v2719, 7
      %v2721 = vsub.s32 0, %v2720
      %v2722 = vrot.slane %v2703, %v2721
      %v2724 = vmul.f32 %v2717, %v2722
      %v2726 = vlaneseq
      %v2727 = vshrl.u32 %v2726, 7
      %v2728 = vsub.s32 0, %v2727
      %v2729 = vrot.slane %v2704, %v2728
      %v2731 = vadd.f32 %v2724, %v2729
      %v2732 = vpack.c.bf16 %v2731, %v2731
      %v2733 = vld [vmem:[%s10] sm:$0xf]
      %v2734 = vld [vmem:[%s10 + $0x4] sm:$0xf]
      %v2735 = vld [vmem:[%s10 + $0x8] sm:$0xf]
      %v2736 = vld [vmem:[%s10 + $0xc] sm:$0xf]
      %v2737 = vld [vmem:[%s11] sm:$0x1]
      %v2739 = vlaneseq
      %v2740 = vshrl.u32 %v2739, 7
      %v2741 = vsub.s32 0, %v2740
      %v2742 = vrot.slane %v2737, %v2741
      %v2748 = vunpack.c.l.b16 %v2733
      %v2749 = vunpack.c.l.b16 %v2734
      %v2750 = vunpack.c.l.b16 %v2735
      %v2751 = vunpack.c.l.b16 %v2736
      %v2752 = vpack.c.b16 %v2749, %v2748
      %v2753 = vpack.c.b16 %v2751, %v2750
      %v2757 = vsel %vm536, %v2732, 0
      %2759 = vmatprep.subr.bf16.mxu0 0
      %2760 = vmatpush1.bf16.msra.mxu0 0
      %2761 = vmatprep.subr.bf16.mxu0 0
      %2762 = vmatpush1.bf16.msra.mxu0 0
      %2763 = vmatprep.subr.bf16.mxu0 0
      %2764 = vmatpush1.bf16.msra.mxu0 0
      %2765 = vmatprep.subr.bf16.mxu0 0
      %2766 = vmatpush1.bf16.msra.mxu0 0
      %2767 = vmatprep.subr.bf16.mxu0 0
      %2768 = vmatpush1.bf16.msra.mxu0 0
      %2769 = vmatprep.subr.bf16.mxu0 0
      %2770 = vmatpush1.bf16.msra.mxu0 0
      %2771 = vmatprep.subr.bf16.mxu0 0
      %2772 = vmatpush1.bf16.msra.mxu0 %v2753
      %2773 = vmatprep.subr.bf16.mxu0 0
      %2774 = vmatpush1.bf16.msra.mxu0 %v2752
      %2775 = vmatprep.subr.bf16.mxu0 0
      %2776 = vmatpush2.bf16.msra.mxu0 0
      %2777 = vmatprep.subr.bf16.mxu0 0
      %2778 = vmatpush2.bf16.msra.mxu0 0
      %2779 = vmatprep.subr.bf16.mxu0 0
      %2780 = vmatpush2.bf16.msra.mxu0 0
      %2781 = vmatprep.subr.bf16.mxu0 0
      %2782 = vmatpush2.bf16.msra.mxu0 0
      %2783 = vmatprep.subr.bf16.mxu0 0
      %2784 = vmatpush2.bf16.msra.mxu0 0
      %2785 = vmatprep.subr.bf16.mxu0 0
      %2786 = vmatpush2.bf16.msra.mxu0 0
      %2787 = vmatprep.subr.bf16.mxu0 0
      %2788 = vmatpush2.bf16.msra.mxu0 0
      %2789 = vmatprep.subr.bf16.mxu0 0
      %2790 = vmatpush2.bf16.msra.mxu0 0
      %2791 = vmatprep.mubr.bf16.mxu0 0
      %2792 = vmatmul.mubr.bf16.gmra.mxu0 %v2757
      %v2793 = vpop.f32.mrf.mxu0
      %v2794 = vadd.f32 %v2742, %v2793
      %v2795 = vpop.f32.mrf.mxu0
      %v2796 = vpop.f32.mrf.mxu0
      %v2797 = vpop.f32.mrf.mxu0
      %2798 = vdwg.mxu0
      %v2799 = vmul.f32 %v2794, 0.5
      %v2800 = vmul.f32 %v2794, 0.044715
      %v2801 = vmul.f32 %v2800, %v2794
      %v2802 = vmul.f32 %v2801, %v2794
      %v2803 = vadd.f32 %v2794, %v2802
      %v2804 = vmul.f32 %v2803, 0.7978846
      %v2805 = vtanh.pop %v2804
      %v2806 = vadd.f32 %v2805, 1.0
      %v2807 = vmul.f32 %v2799, %v2806
      %v2808 = vpack.c.bf16 %v2807, %v2807
      %v2809 = vld [vmem:[%s12] sm:$0xf]
      %v2810 = vld [vmem:[%s12 + $0x4] sm:$0xf]
      %v2811 = vld [vmem:[%s12 + $0x8] sm:$0xf]
      %v2812 = vld [vmem:[%s12 + $0xc] sm:$0xf]
      %v2813 = vld [vmem:[%s12 + $0x10] sm:$0xf]
      %v2814 = vld [vmem:[%s12 + $0x14] sm:$0xf]
      %v2815 = vld [vmem:[%s12 + $0x18] sm:$0xf]
      %v2816 = vld [vmem:[%s12 + $0x1c] sm:$0xf]
      %v2817 = vld [vmem:[%s13] sm:$0x1]
      %v2819 = vlaneseq
      %v2820 = vshrl.u32 %v2819, 7
      %v2821 = vsub.s32 0, %v2820
      %v2822 = vrot.slane %v2817, %v2821
      %v2832 = vunpack.c.l.b16 %v2809
      %v2833 = vunpack.c.l.b16 %v2810
      %v2834 = vunpack.c.l.b16 %v2811
      %v2835 = vunpack.c.l.b16 %v2812
      %v2836 = vunpack.c.l.b16 %v2813
      %v2837 = vunpack.c.l.b16 %v2814
      %v2838 = vunpack.c.l.b16 %v2815
      %v2839 = vunpack.c.l.b16 %v2816
      %v2840 = vpack.c.b16 %v2833, %v2832
      %v2841 = vpack.c.b16 %v2835, %v2834
      %v2842 = vpack.c.b16 %v2837, %v2836
      %v2843 = vpack.c.b16 %v2839, %v2838
      %vm2848 = vcmask 523264
      %v2850 = vsel %vm2848, %v2808, 0
      %2852 = vmatprep.subr.bf16.mxu0 0
      %2853 = vmatpush1.bf16.msra.mxu0 0
      %2854 = vmatprep.subr.bf16.mxu0 0
      %2855 = vmatpush1.bf16.msra.mxu0 0
      %2856 = vmatprep.subr.bf16.mxu0 0
      %2857 = vmatpush1.bf16.msra.mxu0 0
      %2858 = vmatprep.subr.bf16.mxu0 0
      %2859 = vmatpush1.bf16.msra.mxu0 0
      %2860 = vmatprep.subr.bf16.mxu0 0
      %2861 = vmatpush1.bf16.msra.mxu0 %v2843
      %2862 = vmatprep.subr.bf16.mxu0 0
      %2863 = vmatpush1.bf16.msra.mxu0 %v2842
      %2864 = vmatprep.subr.bf16.mxu0 0
      %2865 = vmatpush1.bf16.msra.mxu0 %v2841
      %2866 = vmatprep.subr.bf16.mxu0 0
      %2867 = vmatpush1.bf16.msra.mxu0 %v2840
      %2868 = vmatprep.subr.bf16.mxu0 0
      %2869 = vmatpush2.bf16.msra.mxu0 0
      %2870 = vmatprep.subr.bf16.mxu0 0
      %2871 = vmatpush2.bf16.msra.mxu0 0
      %2872 = vmatprep.subr.bf16.mxu0 0
      %2873 = vmatpush2.bf16.msra.mxu0 0
      %2874 = vmatprep.subr.bf16.mxu0 0
      %2875 = vmatpush2.bf16.msra.mxu0 0
      %2876 = vmatprep.subr.bf16.mxu0 0
      %2877 = vmatpush2.bf16.msra.mxu0 0
      %2878 = vmatprep.subr.bf16.mxu0 0
      %2879 = vmatpush2.bf16.msra.mxu0 0
      %2880 = vmatprep.subr.bf16.mxu0 0
      %2881 = vmatpush2.bf16.msra.mxu0 0
      %2882 = vmatprep.subr.bf16.mxu0 0
      %2883 = vmatpush2.bf16.msra.mxu0 0
      %2884 = vmatprep.mubr.bf16.mxu0 0
      %2885 = vmatmul.mubr.bf16.gmra.mxu0 %v2850
      %v2886 = vpop.f32.mrf.mxu0
      %v2887 = vadd.f32 %v2822, %v2886
      %v2888 = vpop.f32.mrf.mxu0
      %v2889 = vpop.f32.mrf.mxu0
      %v2890 = vpop.f32.mrf.mxu0
      %2891 = vdwg.mxu0
      %v2892 = vadd.f32 %v2887, %v2731
      %v2893 = vld [vmem:[%s14] sm:$0x1]
      %v2894 = vld [vmem:[%s15] sm:$0x1]
      %v2895 = vsel %vm536, %v2892, 0.0
      %2896 = vadd.xlane.f32.xlu0 %v2895
      %v2897 = vpop.xlane.xlu0 %2896
      %v2898 = vmul.f32 %v2897, %v540
      %v2899 = vsub.f32 %v2892, %v2898
      %v2900 = vmul.f32 %v2899, %v2899
      %v2901 = vsel %vm536, %v2900, 0.0
      %2902 = vadd.xlane.f32.xlu0 %v2901
      %v2903 = vpop.xlane.xlu0 %2902
      %v2904 = vmul.f32 %v2903, %v540
      %v2905 = vadd.f32 %v2904, 1e-12
      %v2906 = vrsqrt.pop %v2905
      %v2907 = vmul.f32 %v2899, %v2906
      %v2909 = vlaneseq
      %v2910 = vshrl.u32 %v2909, 7
      %v2911 = vsub.s32 0, %v2910
      %v2912 = vrot.slane %v2893, %v2911
      %v2914 = vmul.f32 %v2907, %v2912
      %v2916 = vlaneseq
      %v2917 = vshrl.u32 %v2916, 7
      %v2918 = vsub.s32 0, %v2917
      %v2919 = vrot.slane %v2894, %v2918
      %v2921 = vadd.f32 %v2914, %v2919
      %v2922 = vpack.c.bf16 %v2921, %v2921
      %s2923 = scalar_lea.vmem %s4, 16
      %v2924 = vld [vmem:[%s2923] sm:$0xf]
      %v2925 = vld [vmem:[%s2923 + $0x4] sm:$0xf]
      %v2926 = vld [vmem:[%s2923 + $0x8] sm:$0xf]
      %v2927 = vld [vmem:[%s2923 + $0xc] sm:$0xf]
      %s2928 = scalar_lea.vmem %s5, 1
      %v2929 = vld [vmem:[%s2928] sm:$0x1]
      %v2931 = vlaneseq
      %v2932 = vshrl.u32 %v2931, 7
      %v2933 = vsub.s32 0, %v2932
      %v2934 = vrot.slane %v2929, %v2933
      %v2940 = vunpack.c.l.b16 %v2924
      %v2941 = vunpack.c.l.b16 %v2925
      %v2942 = vunpack.c.l.b16 %v2926
      %v2943 = vunpack.c.l.b16 %v2927
      %v2944 = vpack.c.b16 %v2941, %v2940
      %v2945 = vpack.c.b16 %v2943, %v2942
      %v2949 = vsel %vm536, %v2922, 0
      %2951 = vmatprep.subr.bf16.mxu0 0
      %2952 = vmatpush1.bf16.msra.mxu0 0
      %2953 = vmatprep.subr.bf16.mxu0 0
      %2954 = vmatpush1.bf16.msra.mxu0 0
      %2955 = vmatprep.subr.bf16.mxu0 0
      %2956 = vmatpush1.bf16.msra.mxu0 0
      %2957 = vmatprep.subr.bf16.mxu0 0
      %2958 = vmatpush1.bf16.msra.mxu0 0
      %2959 = vmatprep.subr.bf16.mxu0 0
      %2960 = vmatpush1.bf16.msra.mxu0 0
      %2961 = vmatprep.subr.bf16.mxu0 0
      %2962 = vmatpush1.bf16.msra.mxu0 0
      %2963 = vmatprep.subr.bf16.mxu0 0
      %2964 = vmatpush1.bf16.msra.mxu0 %v2945
      %2965 = vmatprep.subr.bf16.mxu0 0
      %2966 = vmatpush1.bf16.msra.mxu0 %v2944
      %2967 = vmatprep.subr.bf16.mxu0 0
      %2968 = vmatpush2.bf16.msra.mxu0 0
      %2969 = vmatprep.subr.bf16.mxu0 0
      %2970 = vmatpush2.bf16.msra.mxu0 0
      %2971 = vmatprep.subr.bf16.mxu0 0
      %2972 = vmatpush2.bf16.msra.mxu0 0
      %2973 = vmatprep.subr.bf16.mxu0 0
      %2974 = vmatpush2.bf16.msra.mxu0 0
      %2975 = vmatprep.subr.bf16.mxu0 0
      %2976 = vmatpush2.bf16.msra.mxu0 0
      %2977 = vmatprep.subr.bf16.mxu0 0
      %2978 = vmatpush2.bf16.msra.mxu0 0
      %2979 = vmatprep.subr.bf16.mxu0 0
      %2980 = vmatpush2.bf16.msra.mxu0 0
      %2981 = vmatprep.subr.bf16.mxu0 0
      %2982 = vmatpush2.bf16.msra.mxu0 0
      %2983 = vmatprep.mubr.bf16.mxu0 0
      %2984 = vmatmul.mubr.bf16.gmra.mxu0 %v2949
      %v2985 = vpop.f32.mrf.mxu0
      %v2986 = vadd.f32 %v2934, %v2985
      %v2987 = vpop.f32.mrf.mxu0
      %v2988 = vpop.f32.mrf.mxu0
      %v2989 = vpop.f32.mrf.mxu0
      %2990 = vdwg.mxu0
      %2992 = vrot.lane.b32.xlu0 %v2986, 112
      %v2993 = vpop.permute.xlu0 %2992
      %v2995 = vcombine.high %v2986, 0.0
      %v2997 = vunpack.c.l.s4 1983009808
      %v2998 = vunpack.c.0.s8 %v2997
      %v2999 = vlaneseq
      %v3000 = vshrl.u32 %v2999, 7
      %v3001 = vsub.s32 %v2998, %v3000
      %v3002 = vrot.slane %v2986, %v3001
      %v3004 = vunpack.c.l.s4 1983009808
      %v3005 = vunpack.c.0.s8 %v3004
      %v3006 = vlaneseq
      %v3007 = vshrl.u32 %v3006, 7
      %v3008 = vsub.s32 %v3005, %v3007
      %v3009 = vrot.slane %v2995, %v3008
      %v3010 = vcombine.high %v2993, 0.0
      %v3012 = vunpack.c.l.s4 1983009808
      %v3013 = vunpack.c.0.s8 %v3012
      %v3014 = vlaneseq
      %v3015 = vshrl.u32 %v3014, 7
      %v3016 = vsub.s32 %v3013, %v3015
      %v3017 = vrot.slane %v2993, %v3016
      %v3019 = vunpack.c.l.s4 1983009808
      %v3020 = vunpack.c.0.s8 %v3019
      %v3021 = vlaneseq
      %v3022 = vshrl.u32 %v3021, 7
      %v3023 = vsub.s32 %v3020, %v3022
      %v3024 = vrot.slane %v3010, %v3023
      %v3025 = vcombine.low %v3002, %v3017
      %v3026 = vcombine.high %v3002, %v3017
      %v3028 = vunpack.c.l.s4 1934713408
      %v3029 = vunpack.c.0.s8 %v3028
      %v3030 = vlaneseq
      %v3031 = vshrl.u32 %v3030, 7
      %v3032 = vsub.s32 %v3029, %v3031
      %v3033 = vrot.slane %v3025, %v3032
      %v3035 = vunpack.c.l.s4 1934713408
      %v3036 = vunpack.c.0.s8 %v3035
      %v3037 = vlaneseq
      %v3038 = vshrl.u32 %v3037, 7
      %v3039 = vsub.s32 %v3036, %v3038
      %v3040 = vrot.slane %v3026, %v3039
      %v3041 = vcombine.low %v3009, %v3024
      %v3042 = vcombine.high %v3009, %v3024
      %v3044 = vunpack.c.l.s4 1934713408
      %v3045 = vunpack.c.0.s8 %v3044
      %v3046 = vlaneseq
      %v3047 = vshrl.u32 %v3046, 7
      %v3048 = vsub.s32 %v3045, %v3047
      %v3049 = vrot.slane %v3041, %v3048
      %v3051 = vunpack.c.l.s4 1934713408
      %v3052 = vunpack.c.0.s8 %v3051
      %v3053 = vlaneseq
      %v3054 = vshrl.u32 %v3053, 7
      %v3055 = vsub.s32 %v3052, %v3054
      %v3056 = vrot.slane %v3042, %v3055
      %v3057 = vcombine.high %v3033, 0.0
      %v3058 = vcombine.high %v3040, 0.0
      %v3059 = vcombine.high %v3049, 0.0
      %v3060 = vcombine.high %v3056, 0.0
      %3061 = vrot.lane.b32.xlu0 %v2986, 96
      %v3062 = vpop.permute.xlu0 %3061
      %3063 = vrot.lane.b32.xlu0 %v2993, 96
      %v3064 = vpop.permute.xlu0 %3063
      %v3067 = vcombine.high %v3062, 0.0
      %v3069 = vunpack.c.l.s4 1983009808
      %v3070 = vunpack.c.0.s8 %v3069
      %v3071 = vlaneseq
      %v3072 = vshrl.u32 %v3071, 7
      %v3073 = vsub.s32 %v3070, %v3072
      %v3074 = vrot.slane %v3062, %v3073
      %v3076 = vunpack.c.l.s4 1983009808
      %v3077 = vunpack.c.0.s8 %v3076
      %v3078 = vlaneseq
      %v3079 = vshrl.u32 %v3078, 7
      %v3080 = vsub.s32 %v3077, %v3079
      %v3081 = vrot.slane %v3067, %v3080
      %v3082 = vcombine.high %v3064, 0.0
      %v3084 = vunpack.c.l.s4 1983009808
      %v3085 = vunpack.c.0.s8 %v3084
      %v3086 = vlaneseq
      %v3087 = vshrl.u32 %v3086, 7
      %v3088 = vsub.s32 %v3085, %v3087
      %v3089 = vrot.slane %v3064, %v3088
      %v3091 = vunpack.c.l.s4 1983009808
      %v3092 = vunpack.c.0.s8 %v3091
      %v3093 = vlaneseq
      %v3094 = vshrl.u32 %v3093, 7
      %v3095 = vsub.s32 %v3092, %v3094
      %v3096 = vrot.slane %v3082, %v3095
      %v3097 = vcombine.low %v3074, %v3089
      %v3098 = vcombine.high %v3074, %v3089
      %v3100 = vunpack.c.l.s4 1934713408
      %v3101 = vunpack.c.0.s8 %v3100
      %v3102 = vlaneseq
      %v3103 = vshrl.u32 %v3102, 7
      %v3104 = vsub.s32 %v3101, %v3103
      %v3105 = vrot.slane %v3097, %v3104
      %v3107 = vunpack.c.l.s4 1934713408
      %v3108 = vunpack.c.0.s8 %v3107
      %v3109 = vlaneseq
      %v3110 = vshrl.u32 %v3109, 7
      %v3111 = vsub.s32 %v3108, %v3110
      %v3112 = vrot.slane %v3098, %v3111
      %v3113 = vcombine.low %v3081, %v3096
      %v3114 = vcombine.high %v3081, %v3096
      %v3116 = vunpack.c.l.s4 1934713408
      %v3117 = vunpack.c.0.s8 %v3116
      %v3118 = vlaneseq
      %v3119 = vshrl.u32 %v3118, 7
      %v3120 = vsub.s32 %v3117, %v3119
      %v3121 = vrot.slane %v3113, %v3120
      %v3123 = vunpack.c.l.s4 1934713408
      %v3124 = vunpack.c.0.s8 %v3123
      %v3125 = vlaneseq
      %v3126 = vshrl.u32 %v3125, 7
      %v3127 = vsub.s32 %v3124, %v3126
      %v3128 = vrot.slane %v3114, %v3127
      %v3129 = vcombine.high %v3105, 0.0
      %v3130 = vcombine.high %v3112, 0.0
      %v3131 = vcombine.high %v3121, 0.0
      %v3132 = vcombine.high %v3128, 0.0
      %3133 = vrot.lane.b32.xlu0 %v2986, 64
      %v3134 = vpop.permute.xlu0 %3133
      %3135 = vrot.lane.b32.xlu0 %v2993, 64
      %v3136 = vpop.permute.xlu0 %3135
      %v3139 = vcombine.high %v3134, 0.0
      %v3141 = vunpack.c.l.s4 1983009808
      %v3142 = vunpack.c.0.s8 %v3141
      %v3143 = vlaneseq
      %v3144 = vshrl.u32 %v3143, 7
      %v3145 = vsub.s32 %v3142, %v3144
      %v3146 = vrot.slane %v3134, %v3145
      %v3148 = vunpack.c.l.s4 1983009808
      %v3149 = vunpack.c.0.s8 %v3148
      %v3150 = vlaneseq
      %v3151 = vshrl.u32 %v3150, 7
      %v3152 = vsub.s32 %v3149, %v3151
      %v3153 = vrot.slane %v3139, %v3152
      %v3154 = vcombine.high %v3136, 0.0
      %v3156 = vunpack.c.l.s4 1983009808
      %v3157 = vunpack.c.0.s8 %v3156
      %v3158 = vlaneseq
      %v3159 = vshrl.u32 %v3158, 7
      %v3160 = vsub.s32 %v3157, %v3159
      %v3161 = vrot.slane %v3136, %v3160
      %v3163 = vunpack.c.l.s4 1983009808
      %v3164 = vunpack.c.0.s8 %v3163
      %v3165 = vlaneseq
      %v3166 = vshrl.u32 %v3165, 7
      %v3167 = vsub.s32 %v3164, %v3166
      %v3168 = vrot.slane %v3154, %v3167
      %v3169 = vcombine.low %v3146, %v3161
      %v3170 = vcombine.high %v3146, %v3161
      %v3172 = vunpack.c.l.s4 1934713408
      %v3173 = vunpack.c.0.s8 %v3172
      %v3174 = vlaneseq
      %v3175 = vshrl.u32 %v3174, 7
      %v3176 = vsub.s32 %v3173, %v3175
      %v3177 = vrot.slane %v3169, %v3176
      %v3179 = vunpack.c.l.s4 1934713408
      %v3180 = vunpack.c.0.s8 %v3179
      %v3181 = vlaneseq
      %v3182 = vshrl.u32 %v3181, 7
      %v3183 = vsub.s32 %v3180, %v3182
      %v3184 = vrot.slane %v3170, %v3183
      %v3185 = vcombine.low %v3153, %v3168
      %v3186 = vcombine.high %v3153, %v3168
      %v3188 = vunpack.c.l.s4 1934713408
      %v3189 = vunpack.c.0.s8 %v3188
      %v3190 = vlaneseq
      %v3191 = vshrl.u32 %v3190, 7
      %v3192 = vsub.s32 %v3189, %v3191
      %v3193 = vrot.slane %v3185, %v3192
      %v3195 = vunpack.c.l.s4 1934713408
      %v3196 = vunpack.c.0.s8 %v3195
      %v3197 = vlaneseq
      %v3198 = vshrl.u32 %v3197, 7
      %v3199 = vsub.s32 %v3196, %v3198
      %v3200 = vrot.slane %v3186, %v3199
      %v3201 = vcombine.high %v3177, 0.0
      %v3202 = vcombine.high %v3184, 0.0
      %v3203 = vcombine.high %v3193, 0.0
      %v3204 = vcombine.high %v3200, 0.0
      %v3205 = vpack.c.bf16 %v3033, %v3033
      %v3206 = vpack.c.bf16 %v3057, %v3057
      %v3207 = vpack.c.bf16 %v3040, %v3040
      %v3208 = vpack.c.bf16 %v3058, %v3058
      %v3209 = vpack.c.bf16 %v3049, %v3049
      %v3210 = vpack.c.bf16 %v3059, %v3059
      %v3211 = vpack.c.bf16 %v3056, %v3056
      %v3212 = vpack.c.bf16 %v3060, %v3060
      %v3213 = vpack.c.bf16 %v3105, %v3105
      %v3214 = vpack.c.bf16 %v3129, %v3129
      %v3215 = vpack.c.bf16 %v3112, %v3112
      %v3216 = vpack.c.bf16 %v3130, %v3130
      %v3217 = vpack.c.bf16 %v3121, %v3121
      %v3218 = vpack.c.bf16 %v3131, %v3131
      %v3219 = vpack.c.bf16 %v3128, %v3128
      %v3220 = vpack.c.bf16 %v3132, %v3132
      %v3221 = vcombine.low %v3205, %v3209
      %v3223 = vunpack.c.l.s4 1983009808
      %v3224 = vunpack.c.0.s8 %v3223
      %v3225 = vlaneseq
      %v3226 = vshrl.u32 %v3225, 7
      %v3227 = vsub.s32 %v3224, %v3226
      %v3228 = vrot.slane %v3221, %v3227
      %v3229 = vcombine.low %v3207, %v3211
      %v3231 = vunpack.c.l.s4 1983009808
      %v3232 = vunpack.c.0.s8 %v3231
      %v3233 = vlaneseq
      %v3234 = vshrl.u32 %v3233, 7
      %v3235 = vsub.s32 %v3232, %v3234
      %v3236 = vrot.slane %v3229, %v3235
      %v3237 = vcombine.low %v3228, %v3236
      %v3239 = vunpack.c.l.s4 1934713408
      %v3240 = vunpack.c.0.s8 %v3239
      %v3241 = vlaneseq
      %v3242 = vshrl.u32 %v3241, 7
      %v3243 = vsub.s32 %v3240, %v3242
      %v3244 = vrot.slane %v3237, %v3243
      %v3245 = vcombine.low %v3206, %v3210
      %v3247 = vunpack.c.l.s4 1983009808
      %v3248 = vunpack.c.0.s8 %v3247
      %v3249 = vlaneseq
      %v3250 = vshrl.u32 %v3249, 7
      %v3251 = vsub.s32 %v3248, %v3250
      %v3252 = vrot.slane %v3245, %v3251
      %v3253 = vcombine.low %v3208, %v3212
      %v3255 = vunpack.c.l.s4 1983009808
      %v3256 = vunpack.c.0.s8 %v3255
      %v3257 = vlaneseq
      %v3258 = vshrl.u32 %v3257, 7
      %v3259 = vsub.s32 %v3256, %v3258
      %v3260 = vrot.slane %v3253, %v3259
      %v3261 = vcombine.low %v3252, %v3260
      %v3263 = vunpack.c.l.s4 1934713408
      %v3264 = vunpack.c.0.s8 %v3263
      %v3265 = vlaneseq
      %v3266 = vshrl.u32 %v3265, 7
      %v3267 = vsub.s32 %v3264, %v3266
      %v3268 = vrot.slane %v3261, %v3267
      %v3271 = vpack.i.b16 %v3268, %v3244
      %v3272 = vshrl.u32 %v3244, 16
      %v3273 = vshrl.u32 %v3268, 16
      %v3274 = vpack.i.b16 %v3273, %v3272
      %3275 = vxpose.xlu0.c.b16.start [1/8] %v3213, 128
      %3276 = vxpose.xlu0.c.b16.cont [2/8] 0, 128
      %3277 = vxpose.xlu0.c.b16.cont [3/8] 0, 128
      %3278 = vxpose.xlu0.c.b16.cont [4/8] 0, 128
      %3279 = vxpose.xlu0.c.b16.cont [5/8] 0, 128
      %3280 = vxpose.xlu0.c.b16.cont [6/8] 0, 128
      %3281 = vxpose.xlu0.c.b16.cont [7/8] 0, 128
      %3282 = vxpose.xlu0.c.b16.end [8/8] 0, 128
      %v3283 = vpop.trf.xlu0
      %v3284 = vpop.trf.xlu0
      %v3285 = vpop.trf.xlu0
      %v3286 = vpop.trf.xlu0
      %v3287 = vpop.trf.xlu0
      %v3288 = vpop.trf.xlu0
      %v3289 = vpop.trf.xlu0
      %v3290 = vpop.trf.xlu0
      %3291 = vxpose.xlu0.c.b16.start [1/8] %v3214, 128
      %3292 = vxpose.xlu0.c.b16.cont [2/8] 0, 128
      %3293 = vxpose.xlu0.c.b16.cont [3/8] 0, 128
      %3294 = vxpose.xlu0.c.b16.cont [4/8] 0, 128
      %3295 = vxpose.xlu0.c.b16.cont [5/8] 0, 128
      %3296 = vxpose.xlu0.c.b16.cont [6/8] 0, 128
      %3297 = vxpose.xlu0.c.b16.cont [7/8] 0, 128
      %3298 = vxpose.xlu0.c.b16.end [8/8] 0, 128
      %v3299 = vpop.trf.xlu0
      %v3300 = vpop.trf.xlu0
      %v3301 = vpop.trf.xlu0
      %v3302 = vpop.trf.xlu0
      %v3303 = vpop.trf.xlu0
      %v3304 = vpop.trf.xlu0
      %v3305 = vpop.trf.xlu0
      %v3306 = vpop.trf.xlu0
      %3307 = vxpose.xlu0.c.b16.start [1/8] %v3215, 128
      %3308 = vxpose.xlu0.c.b16.cont [2/8] 0, 128
      %3309 = vxpose.xlu0.c.b16.cont [3/8] 0, 128
      %3310 = vxpose.xlu0.c.b16.cont [4/8] 0, 128
      %3311 = vxpose.xlu0.c.b16.cont [5/8] 0, 128
      %3312 = vxpose.xlu0.c.b16.cont [6/8] 0, 128
      %3313 = vxpose.xlu0.c.b16.cont [7/8] 0, 128
      %3314 = vxpose.xlu0.c.b16.end [8/8] 0, 128
      %v3315 = vpop.trf.xlu0
      %v3316 = vpop.trf.xlu0
      %v3317 = vpop.trf.xlu0
      %v3318 = vpop.trf.xlu0
      %v3319 = vpop.trf.xlu0
      %v3320 = vpop.trf.xlu0
      %v3321 = vpop.trf.xlu0
      %v3322 = vpop.trf.xlu0
      %3323 = vxpose.xlu0.c.b16.start [1/8] %v3216, 128
      %3324 = vxpose.xlu0.c.b16.cont [2/8] 0, 128
      %3325 = vxpose.xlu0.c.b16.cont [3/8] 0, 128
      %3326 = vxpose.xlu0.c.b16.cont [4/8] 0, 128
      %3327 = vxpose.xlu0.c.b16.cont [5/8] 0, 128
      %3328 = vxpose.xlu0.c.b16.cont [6/8] 0, 128
      %3329 = vxpose.xlu0.c.b16.cont [7/8] 0, 128
      %3330 = vxpose.xlu0.c.b16.end [8/8] 0, 128
      %v3331 = vpop.trf.xlu0
      %v3332 = vpop.trf.xlu0
      %v3333 = vpop.trf.xlu0
      %v3334 = vpop.trf.xlu0
      %v3335 = vpop.trf.xlu0
      %v3336 = vpop.trf.xlu0
      %v3337 = vpop.trf.xlu0
      %v3338 = vpop.trf.xlu0
      %3339 = vxpose.xlu0.c.b16.start [1/8] %v3217, 128
      %3340 = vxpose.xlu0.c.b16.cont [2/8] 0, 128
      %3341 = vxpose.xlu0.c.b16.cont [3/8] 0, 128
      %3342 = vxpose.xlu0.c.b16.cont [4/8] 0, 128
      %3343 = vxpose.xlu0.c.b16.cont [5/8] 0, 128
      %3344 = vxpose.xlu0.c.b16.cont [6/8] 0, 128
      %3345 = vxpose.xlu0.c.b16.cont [7/8] 0, 128
      %3346 = vxpose.xlu0.c.b16.end [8/8] 0, 128
      %v3347 = vpop.trf.xlu0
      %v3348 = vpop.trf.xlu0
      %v3349 = vpop.trf.xlu0
      %v3350 = vpop.trf.xlu0
      %v3351 = vpop.trf.xlu0
      %v3352 = vpop.trf.xlu0
      %v3353 = vpop.trf.xlu0
      %v3354 = vpop.trf.xlu0
      %3355 = vxpose.xlu0.c.b16.start [1/8] %v3218, 128
      %3356 = vxpose.xlu0.c.b16.cont [2/8] 0, 128
      %3357 = vxpose.xlu0.c.b16.cont [3/8] 0, 128
      %3358 = vxpose.xlu0.c.b16.cont [4/8] 0, 128
      %3359 = vxpose.xlu0.c.b16.cont [5/8] 0, 128
      %3360 = vxpose.xlu0.c.b16.cont [6/8] 0, 128
      %3361 = vxpose.xlu0.c.b16.cont [7/8] 0, 128
      %3362 = vxpose.xlu0.c.b16.end [8/8] 0, 128
      %v3363 = vpop.trf.xlu0
      %v3364 = vpop.trf.xlu0
      %v3365 = vpop.trf.xlu0
      %v3366 = vpop.trf.xlu0
      %v3367 = vpop.trf.xlu0
      %v3368 = vpop.trf.xlu0
      %v3369 = vpop.trf.xlu0
      %v3370 = vpop.trf.xlu0
      %3371 = vxpose.xlu0.c.b16.start [1/8] %v3219, 128
      %3372 = vxpose.xlu0.c.b16.cont [2/8] 0, 128
      %3373 = vxpose.xlu0.c.b16.cont [3/8] 0, 128
      %3374 = vxpose.xlu0.c.b16.cont [4/8] 0, 128
      %3375 = vxpose.xlu0.c.b16.cont [5/8] 0, 128
      %3376 = vxpose.xlu0.c.b16.cont [6/8] 0, 128
      %3377 = vxpose.xlu0.c.b16.cont [7/8] 0, 128
      %3378 = vxpose.xlu0.c.b16.end [8/8] 0, 128
      %v3379 = vpop.trf.xlu0
      %v3380 = vpop.trf.xlu0
      %v3381 = vpop.trf.xlu0
      %v3382 = vpop.trf.xlu0
      %v3383 = vpop.trf.xlu0
      %v3384 = vpop.trf.xlu0
      %v3385 = vpop.trf.xlu0
      %v3386 = vpop.trf.xlu0
      %3387 = vxpose.xlu0.c.b16.start [1/8] %v3220, 128
      %3388 = vxpose.xlu0.c.b16.cont [2/8] 0, 128
      %3389 = vxpose.xlu0.c.b16.cont [3/8] 0, 128
      %3390 = vxpose.xlu0.c.b16.cont [4/8] 0, 128
      %3391 = vxpose.xlu0.c.b16.cont [5/8] 0, 128
      %3392 = vxpose.xlu0.c.b16.cont [6/8] 0, 128
      %3393 = vxpose.xlu0.c.b16.cont [7/8] 0, 128
      %3394 = vxpose.xlu0.c.b16.end [8/8] 0, 128
      %v3395 = vpop.trf.xlu0
      %v3396 = vpop.trf.xlu0
      %v3397 = vpop.trf.xlu0
      %v3398 = vpop.trf.xlu0
      %v3399 = vpop.trf.xlu0
      %v3400 = vpop.trf.xlu0
      %v3401 = vpop.trf.xlu0
      %v3402 = vpop.trf.xlu0
      %v3405 = vpack.i.b16 %v3299, %v3283
      %v3407 = vshrl.u32 %v3283, 16
      %v3408 = vshrl.u32 %v3299, 16
      %v3409 = vpack.i.b16 %v3408, %v3407
      %v3413 = vpack.i.b16 %v3331, %v3315
      %v3415 = vshrl.u32 %v3315, 16
      %v3416 = vshrl.u32 %v3331, 16
      %v3417 = vpack.i.b16 %v3416, %v3415
      %v3421 = vpack.i.b16 %v3363, %v3347
      %v3423 = vshrl.u32 %v3347, 16
      %v3424 = vshrl.u32 %v3363, 16
      %v3425 = vpack.i.b16 %v3424, %v3423
      %v3429 = vpack.i.b16 %v3395, %v3379
      %v3431 = vshrl.u32 %v3379, 16
      %v3432 = vshrl.u32 %v3395, 16
      %v3433 = vpack.i.b16 %v3432, %v3431
      %v3435 = vcombine.low %v3405, %v3421
      %v3436 = vcombine.high %v3405, %v3421
      %v3438 = vunpack.c.l.s4 1983009808
      %v3439 = vunpack.c.0.s8 %v3438
      %v3440 = vlaneseq
      %v3441 = vshrl.u32 %v3440, 7
      %v3442 = vsub.s32 %v3439, %v3441
      %v3443 = vrot.slane %v3435, %v3442
      %v3445 = vunpack.c.l.s4 1983009808
      %v3446 = vunpack.c.0.s8 %v3445
      %v3447 = vlaneseq
      %v3448 = vshrl.u32 %v3447, 7
      %v3449 = vsub.s32 %v3446, %v3448
      %v3450 = vrot.slane %v3436, %v3449
      %v3451 = vcombine.low %v3413, %v3429
      %v3452 = vcombine.high %v3413, %v3429
      %v3454 = vunpack.c.l.s4 1983009808
      %v3455 = vunpack.c.0.s8 %v3454
      %v3456 = vlaneseq
      %v3457 = vshrl.u32 %v3456, 7
      %v3458 = vsub.s32 %v3455, %v3457
      %v3459 = vrot.slane %v3451, %v3458
      %v3461 = vunpack.c.l.s4 1983009808
      %v3462 = vunpack.c.0.s8 %v3461
      %v3463 = vlaneseq
      %v3464 = vshrl.u32 %v3463, 7
      %v3465 = vsub.s32 %v3462, %v3464
      %v3466 = vrot.slane %v3452, %v3465
      %v3467 = vcombine.low %v3443, %v3459
      %v3468 = vcombine.high %v3443, %v3459
      %v3470 = vunpack.c.l.s4 1934713408
      %v3471 = vunpack.c.0.s8 %v3470
      %v3472 = vlaneseq
      %v3473 = vshrl.u32 %v3472, 7
      %v3474 = vsub.s32 %v3471, %v3473
      %v3475 = vrot.slane %v3467, %v3474
      %v3477 = vunpack.c.l.s4 1934713408
      %v3478 = vunpack.c.0.s8 %v3477
      %v3479 = vlaneseq
      %v3480 = vshrl.u32 %v3479, 7
      %v3481 = vsub.s32 %v3478, %v3480
      %v3482 = vrot.slane %v3468, %v3481
      %v3483 = vcombine.low %v3450, %v3466
      %v3484 = vcombine.high %v3450, %v3466
      %v3486 = vunpack.c.l.s4 1934713408
      %v3487 = vunpack.c.0.s8 %v3486
      %v3488 = vlaneseq
      %v3489 = vshrl.u32 %v3488, 7
      %v3490 = vsub.s32 %v3487, %v3489
      %v3491 = vrot.slane %v3483, %v3490
      %v3493 = vunpack.c.l.s4 1934713408
      %v3494 = vunpack.c.0.s8 %v3493
      %v3495 = vlaneseq
      %v3496 = vshrl.u32 %v3495, 7
      %v3497 = vsub.s32 %v3494, %v3496
      %v3498 = vrot.slane %v3484, %v3497
      %v3499 = vcombine.high %v3475, 0
      %v3500 = vcombine.high %v3482, 0
      %v3501 = vcombine.high %v3491, 0
      %v3502 = vcombine.high %v3498, 0
      %v3503 = vcombine.low %v3409, %v3425
      %v3504 = vcombine.high %v3409, %v3425
      %v3506 = vunpack.c.l.s4 1983009808
      %v3507 = vunpack.c.0.s8 %v3506
      %v3508 = vlaneseq
      %v3509 = vshrl.u32 %v3508, 7
      %v3510 = vsub.s32 %v3507, %v3509
      %v3511 = vrot.slane %v3503, %v3510
      %v3513 = vunpack.c.l.s4 1983009808
      %v3514 = vunpack.c.0.s8 %v3513
      %v3515 = vlaneseq
      %v3516 = vshrl.u32 %v3515, 7
      %v3517 = vsub.s32 %v3514, %v3516
      %v3518 = vrot.slane %v3504, %v3517
      %v3519 = vcombine.low %v3417, %v3433
      %v3520 = vcombine.high %v3417, %v3433
      %v3522 = vunpack.c.l.s4 1983009808
      %v3523 = vunpack.c.0.s8 %v3522
      %v3524 = vlaneseq
      %v3525 = vshrl.u32 %v3524, 7
      %v3526 = vsub.s32 %v3523, %v3525
      %v3527 = vrot.slane %v3519, %v3526
      %v3529 = vunpack.c.l.s4 1983009808
      %v3530 = vunpack.c.0.s8 %v3529
      %v3531 = vlaneseq
      %v3532 = vshrl.u32 %v3531, 7
      %v3533 = vsub.s32 %v3530, %v3532
      %v3534 = vrot.slane %v3520, %v3533
      %v3535 = vcombine.low %v3511, %v3527
      %v3536 = vcombine.high %v3511, %v3527
      %v3538 = vunpack.c.l.s4 1934713408
      %v3539 = vunpack.c.0.s8 %v3538
      %v3540 = vlaneseq
      %v3541 = vshrl.u32 %v3540, 7
      %v3542 = vsub.s32 %v3539, %v3541
      %v3543 = vrot.slane %v3535, %v3542
      %v3545 = vunpack.c.l.s4 1934713408
      %v3546 = vunpack.c.0.s8 %v3545
      %v3547 = vlaneseq
      %v3548 = vshrl.u32 %v3547, 7
      %v3549 = vsub.s32 %v3546, %v3548
      %v3550 = vrot.slane %v3536, %v3549
      %v3551 = vcombine.low %v3518, %v3534
      %v3552 = vcombine.high %v3518, %v3534
      %v3554 = vunpack.c.l.s4 1934713408
      %v3555 = vunpack.c.0.s8 %v3554
      %v3556 = vlaneseq
      %v3557 = vshrl.u32 %v3556, 7
      %v3558 = vsub.s32 %v3555, %v3557
      %v3559 = vrot.slane %v3551, %v3558
      %v3561 = vunpack.c.l.s4 1934713408
      %v3562 = vunpack.c.0.s8 %v3561
      %v3563 = vlaneseq
      %v3564 = vshrl.u32 %v3563, 7
      %v3565 = vsub.s32 %v3562, %v3564
      %v3566 = vrot.slane %v3552, %v3565
      %v3567 = vcombine.high %v3543, 0
      %v3568 = vcombine.high %v3550, 0
      %v3569 = vcombine.high %v3559, 0
      %v3570 = vcombine.high %v3566, 0
      %3571 = vxpose.xlu0.c.b16.start [1/8] %v3475, 128
      %3572 = vxpose.xlu0.c.b16.cont [2/8] 0, 128
      %3573 = vxpose.xlu0.c.b16.cont [3/8] 0, 128
      %3574 = vxpose.xlu0.c.b16.cont [4/8] 0, 128
      %3575 = vxpose.xlu0.c.b16.cont [5/8] 0, 128
      %3576 = vxpose.xlu0.c.b16.cont [6/8] 0, 128
      %3577 = vxpose.xlu0.c.b16.cont [7/8] 0, 128
      %3578 = vxpose.xlu0.c.b16.end [8/8] 0, 128
      %v3579 = vpop.trf.xlu0
      %v3580 = vpop.trf.xlu0
      %v3581 = vpop.trf.xlu0
      %v3582 = vpop.trf.xlu0
      %v3583 = vpop.trf.xlu0
      %v3584 = vpop.trf.xlu0
      %v3585 = vpop.trf.xlu0
      %v3586 = vpop.trf.xlu0
      %3587 = vxpose.xlu0.c.b16.start [1/8] %v3543, 128
      %3588 = vxpose.xlu0.c.b16.cont [2/8] 0, 128
      %3589 = vxpose.xlu0.c.b16.cont [3/8] 0, 128
      %3590 = vxpose.xlu0.c.b16.cont [4/8] 0, 128
      %3591 = vxpose.xlu0.c.b16.cont [5/8] 0, 128
      %3592 = vxpose.xlu0.c.b16.cont [6/8] 0, 128
      %3593 = vxpose.xlu0.c.b16.cont [7/8] 0, 128
      %3594 = vxpose.xlu0.c.b16.end [8/8] 0, 128
      %v3595 = vpop.trf.xlu0
      %v3596 = vpop.trf.xlu0
      %v3597 = vpop.trf.xlu0
      %v3598 = vpop.trf.xlu0
      %v3599 = vpop.trf.xlu0
      %v3600 = vpop.trf.xlu0
      %v3601 = vpop.trf.xlu0
      %v3602 = vpop.trf.xlu0
      %3603 = vxpose.xlu0.c.b16.start [1/8] %v3499, 128
      %3604 = vxpose.xlu0.c.b16.cont [2/8] 0, 128
      %3605 = vxpose.xlu0.c.b16.cont [3/8] 0, 128
      %3606 = vxpose.xlu0.c.b16.cont [4/8] 0, 128
      %3607 = vxpose.xlu0.c.b16.cont [5/8] 0, 128
      %3608 = vxpose.xlu0.c.b16.cont [6/8] 0, 128
      %3609 = vxpose.xlu0.c.b16.cont [7/8] 0, 128
      %3610 = vxpose.xlu0.c.b16.end [8/8] 0, 128
      %v3611 = vpop.trf.xlu0
      %v3612 = vpop.trf.xlu0
      %v3613 = vpop.trf.xlu0
      %v3614 = vpop.trf.xlu0
      %v3615 = vpop.trf.xlu0
      %v3616 = vpop.trf.xlu0
      %v3617 = vpop.trf.xlu0
      %v3618 = vpop.trf.xlu0
      %3619 = vxpose.xlu0.c.b16.start [1/8] %v3567, 128
      %3620 = vxpose.xlu0.c.b16.cont [2/8] 0, 128
      %3621 = vxpose.xlu0.c.b16.cont [3/8] 0, 128
      %3622 = vxpose.xlu0.c.b16.cont [4/8] 0, 128
      %3623 = vxpose.xlu0.c.b16.cont [5/8] 0, 128
      %3624 = vxpose.xlu0.c.b16.cont [6/8] 0, 128
      %3625 = vxpose.xlu0.c.b16.cont [7/8] 0, 128
      %3626 = vxpose.xlu0.c.b16.end [8/8] 0, 128
      %v3627 = vpop.trf.xlu0
      %v3628 = vpop.trf.xlu0
      %v3629 = vpop.trf.xlu0
      %v3630 = vpop.trf.xlu0
      %v3631 = vpop.trf.xlu0
      %v3632 = vpop.trf.xlu0
      %v3633 = vpop.trf.xlu0
      %v3634 = vpop.trf.xlu0
      %3635 = vxpose.xlu0.c.b16.start [1/8] %v3482, 128
      %3636 = vxpose.xlu0.c.b16.cont [2/8] 0, 128
      %3637 = vxpose.xlu0.c.b16.cont [3/8] 0, 128
      %3638 = vxpose.xlu0.c.b16.cont [4/8] 0, 128
      %3639 = vxpose.xlu0.c.b16.cont [5/8] 0, 128
      %3640 = vxpose.xlu0.c.b16.cont [6/8] 0, 128
      %3641 = vxpose.xlu0.c.b16.cont [7/8] 0, 128
      %3642 = vxpose.xlu0.c.b16.end [8/8] 0, 128
      %v3643 = vpop.trf.xlu0
      %v3644 = vpop.trf.xlu0
      %v3645 = vpop.trf.xlu0
      %v3646 = vpop.trf.xlu0
      %v3647 = vpop.trf.xlu0
      %v3648 = vpop.trf.xlu0
      %v3649 = vpop.trf.xlu0
      %v3650 = vpop.trf.xlu0
      %3651 = vxpose.xlu0.c.b16.start [1/8] %v3550, 128
      %3652 = vxpose.xlu0.c.b16.cont [2/8] 0, 128
      %3653 = vxpose.xlu0.c.b16.cont [3/8] 0, 128
      %3654 = vxpose.xlu0.c.b16.cont [4/8] 0, 128
      %3655 = vxpose.xlu0.c.b16.cont [5/8] 0, 128
      %3656 = vxpose.xlu0.c.b16.cont [6/8] 0, 128
      %3657 = vxpose.xlu0.c.b16.cont [7/8] 0, 128
      %3658 = vxpose.xlu0.c.b16.end [8/8] 0, 128
      %v3659 = vpop.trf.xlu0
      %v3660 = vpop.trf.xlu0
      %v3661 = vpop.trf.xlu0
      %v3662 = vpop.trf.xlu0
      %v3663 = vpop.trf.xlu0
      %v3664 = vpop.trf.xlu0
      %v3665 = vpop.trf.xlu0
      %v3666 = vpop.trf.xlu0
      %3667 = vxpose.xlu0.c.b16.start [1/8] %v3500, 128
      %3668 = vxpose.xlu0.c.b16.cont [2/8] 0, 128
      %3669 = vxpose.xlu0.c.b16.cont [3/8] 0, 128
      %3670 = vxpose.xlu0.c.b16.cont [4/8] 0, 128
      %3671 = vxpose.xlu0.c.b16.cont [5/8] 0, 128
      %3672 = vxpose.xlu0.c.b16.cont [6/8] 0, 128
      %3673 = vxpose.xlu0.c.b16.cont [7/8] 0, 128
      %3674 = vxpose.xlu0.c.b16.end [8/8] 0, 128
      %v3675 = vpop.trf.xlu0
      %v3676 = vpop.trf.xlu0
      %v3677 = vpop.trf.xlu0
      %v3678 = vpop.trf.xlu0
      %v3679 = vpop.trf.xlu0
      %v3680 = vpop.trf.xlu0
      %v3681 = vpop.trf.xlu0
      %v3682 = vpop.trf.xlu0
      %3683 = vxpose.xlu0.c.b16.start [1/8] %v3568, 128
      %3684 = vxpose.xlu0.c.b16.cont [2/8] 0, 128
      %3685 = vxpose.xlu0.c.b16.cont [3/8] 0, 128
      %3686 = vxpose.xlu0.c.b16.cont [4/8] 0, 128
      %3687 = vxpose.xlu0.c.b16.cont [5/8] 0, 128
      %3688 = vxpose.xlu0.c.b16.cont [6/8] 0, 128
      %3689 = vxpose.xlu0.c.b16.cont [7/8] 0, 128
      %3690 = vxpose.xlu0.c.b16.end [8/8] 0, 128
      %v3691 = vpop.trf.xlu0
      %v3692 = vpop.trf.xlu0
      %v3693 = vpop.trf.xlu0
      %v3694 = vpop.trf.xlu0
      %v3695 = vpop.trf.xlu0
      %v3696 = vpop.trf.xlu0
      %v3697 = vpop.trf.xlu0
      %v3698 = vpop.trf.xlu0
      %3699 = vxpose.xlu0.c.b16.start [1/8] %v3491, 128
      %3700 = vxpose.xlu0.c.b16.cont [2/8] 0, 128
      %3701 = vxpose.xlu0.c.b16.cont [3/8] 0, 128
      %3702 = vxpose.xlu0.c.b16.cont [4/8] 0, 128
      %3703 = vxpose.xlu0.c.b16.cont [5/8] 0, 128
      %3704 = vxpose.xlu0.c.b16.cont [6/8] 0, 128
      %3705 = vxpose.xlu0.c.b16.cont [7/8] 0, 128
      %3706 = vxpose.xlu0.c.b16.end [8/8] 0, 128
      %v3707 = vpop.trf.xlu0
      %v3708 = vpop.trf.xlu0
      %v3709 = vpop.trf.xlu0
      %v3710 = vpop.trf.xlu0
      %v3711 = vpop.trf.xlu0
      %v3712 = vpop.trf.xlu0
      %v3713 = vpop.trf.xlu0
      %v3714 = vpop.trf.xlu0
      %3715 = vxpose.xlu0.c.b16.start [1/8] %v3559, 128
      %3716 = vxpose.xlu0.c.b16.cont [2/8] 0, 128
      %3717 = vxpose.xlu0.c.b16.cont [3/8] 0, 128
      %3718 = vxpose.xlu0.c.b16.cont [4/8] 0, 128
      %3719 = vxpose.xlu0.c.b16.cont [5/8] 0, 128
      %3720 = vxpose.xlu0.c.b16.cont [6/8] 0, 128
      %3721 = vxpose.xlu0.c.b16.cont [7/8] 0, 128
      %3722 = vxpose.xlu0.c.b16.end [8/8] 0, 128
      %v3723 = vpop.trf.xlu0
      %v3724 = vpop.trf.xlu0
      %v3725 = vpop.trf.xlu0
      %v3726 = vpop.trf.xlu0
      %v3727 = vpop.trf.xlu0
      %v3728 = vpop.trf.xlu0
      %v3729 = vpop.trf.xlu0
      %v3730 = vpop.trf.xlu0
      %3731 = vxpose.xlu0.c.b16.start [1/8] %v3501, 128
      %3732 = vxpose.xlu0.c.b16.cont [2/8] 0, 128
      %3733 = vxpose.xlu0.c.b16.cont [3/8] 0, 128
      %3734 = vxpose.xlu0.c.b16.cont [4/8] 0, 128
      %3735 = vxpose.xlu0.c.b16.cont [5/8] 0, 128
      %3736 = vxpose.xlu0.c.b16.cont [6/8] 0, 128
      %3737 = vxpose.xlu0.c.b16.cont [7/8] 0, 128
      %3738 = vxpose.xlu0.c.b16.end [8/8] 0, 128
      %v3739 = vpop.trf.xlu0
      %v3740 = vpop.trf.xlu0
      %v3741 = vpop.trf.xlu0
      %v3742 = vpop.trf.xlu0
      %v3743 = vpop.trf.xlu0
      %v3744 = vpop.trf.xlu0
      %v3745 = vpop.trf.xlu0
      %v3746 = vpop.trf.xlu0
      %3747 = vxpose.xlu0.c.b16.start [1/8] %v3569, 128
      %3748 = vxpose.xlu0.c.b16.cont [2/8] 0, 128
      %3749 = vxpose.xlu0.c.b16.cont [3/8] 0, 128
      %3750 = vxpose.xlu0.c.b16.cont [4/8] 0, 128
      %3751 = vxpose.xlu0.c.b16.cont [5/8] 0, 128
      %3752 = vxpose.xlu0.c.b16.cont [6/8] 0, 128
      %3753 = vxpose.xlu0.c.b16.cont [7/8] 0, 128
      %3754 = vxpose.xlu0.c.b16.end [8/8] 0, 128
      %v3755 = vpop.trf.xlu0
      %v3756 = vpop.trf.xlu0
      %v3757 = vpop.trf.xlu0
      %v3758 = vpop.trf.xlu0
      %v3759 = vpop.trf.xlu0
      %v3760 = vpop.trf.xlu0
      %v3761 = vpop.trf.xlu0
      %v3762 = vpop.trf.xlu0
      %3763 = vxpose.xlu0.c.b16.start [1/8] %v3498, 128
      %3764 = vxpose.xlu0.c.b16.cont [2/8] 0, 128
      %3765 = vxpose.xlu0.c.b16.cont [3/8] 0, 128
      %3766 = vxpose.xlu0.c.b16.cont [4/8] 0, 128
      %3767 = vxpose.xlu0.c.b16.cont [5/8] 0, 128
      %3768 = vxpose.xlu0.c.b16.cont [6/8] 0, 128
      %3769 = vxpose.xlu0.c.b16.cont [7/8] 0, 128
      %3770 = vxpose.xlu0.c.b16.end [8/8] 0, 128
      %v3771 = vpop.trf.xlu0
      %v3772 = vpop.trf.xlu0
      %v3773 = vpop.trf.xlu0
      %v3774 = vpop.trf.xlu0
      %v3775 = vpop.trf.xlu0
      %v3776 = vpop.trf.xlu0
      %v3777 = vpop.trf.xlu0
      %v3778 = vpop.trf.xlu0
      %3779 = vxpose.xlu0.c.b16.start [1/8] %v3566, 128
      %3780 = vxpose.xlu0.c.b16.cont [2/8] 0, 128
      %3781 = vxpose.xlu0.c.b16.cont [3/8] 0, 128
      %3782 = vxpose.xlu0.c.b16.cont [4/8] 0, 128
      %3783 = vxpose.xlu0.c.b16.cont [5/8] 0, 128
      %3784 = vxpose.xlu0.c.b16.cont [6/8] 0, 128
      %3785 = vxpose.xlu0.c.b16.cont [7/8] 0, 128
      %3786 = vxpose.xlu0.c.b16.end [8/8] 0, 128
      %v3787 = vpop.trf.xlu0
      %v3788 = vpop.trf.xlu0
      %v3789 = vpop.trf.xlu0
      %v3790 = vpop.trf.xlu0
      %v3791 = vpop.trf.xlu0
      %v3792 = vpop.trf.xlu0
      %v3793 = vpop.trf.xlu0
      %v3794 = vpop.trf.xlu0
      %3795 = vxpose.xlu0.c.b16.start [1/8] %v3502, 128
      %3796 = vxpose.xlu0.c.b16.cont [2/8] 0, 128
      %3797 = vxpose.xlu0.c.b16.cont [3/8] 0, 128
      %3798 = vxpose.xlu0.c.b16.cont [4/8] 0, 128
      %3799 = vxpose.xlu0.c.b16.cont [5/8] 0, 128
      %3800 = vxpose.xlu0.c.b16.cont [6/8] 0, 128
      %3801 = vxpose.xlu0.c.b16.cont [7/8] 0, 128
      %3802 = vxpose.xlu0.c.b16.end [8/8] 0, 128
      %v3803 = vpop.trf.xlu0
      %v3804 = vpop.trf.xlu0
      %v3805 = vpop.trf.xlu0
      %v3806 = vpop.trf.xlu0
      %v3807 = vpop.trf.xlu0
      %v3808 = vpop.trf.xlu0
      %v3809 = vpop.trf.xlu0
      %v3810 = vpop.trf.xlu0
      %3811 = vxpose.xlu0.c.b16.start [1/8] %v3570, 128
      %3812 = vxpose.xlu0.c.b16.cont [2/8] 0, 128
      %3813 = vxpose.xlu0.c.b16.cont [3/8] 0, 128
      %3814 = vxpose.xlu0.c.b16.cont [4/8] 0, 128
      %3815 = vxpose.xlu0.c.b16.cont [5/8] 0, 128
      %3816 = vxpose.xlu0.c.b16.cont [6/8] 0, 128
      %3817 = vxpose.xlu0.c.b16.cont [7/8] 0, 128
      %3818 = vxpose.xlu0.c.b16.end [8/8] 0, 128
      %v3819 = vpop.trf.xlu0
      %v3820 = vpop.trf.xlu0
      %v3821 = vpop.trf.xlu0
      %v3822 = vpop.trf.xlu0
      %v3823 = vpop.trf.xlu0
      %v3824 = vpop.trf.xlu0
      %v3825 = vpop.trf.xlu0
      %v3826 = vpop.trf.xlu0
      %v3827 = vcombine.low %v3579, %v3643
      %v3829 = vunpack.c.l.s4 1983009808
      %v3830 = vunpack.c.0.s8 %v3829
      %v3831 = vlaneseq
      %v3832 = vshrl.u32 %v3831, 7
      %v3833 = vsub.s32 %v3830, %v3832
      %v3834 = vrot.slane %v3827, %v3833
      %v3835 = vcombine.low %v3611, %v3675
      %v3837 = vunpack.c.l.s4 1983009808
      %v3838 = vunpack.c.0.s8 %v3837
      %v3839 = vlaneseq
      %v3840 = vshrl.u32 %v3839, 7
      %v3841 = vsub.s32 %v3838, %v3840
      %v3842 = vrot.slane %v3835, %v3841
      %v3843 = vcombine.low %v3707, %v3771
      %v3845 = vunpack.c.l.s4 1983009808
      %v3846 = vunpack.c.0.s8 %v3845
      %v3847 = vlaneseq
      %v3848 = vshrl.u32 %v3847, 7
      %v3849 = vsub.s32 %v3846, %v3848
      %v3850 = vrot.slane %v3843, %v3849
      %v3851 = vcombine.low %v3739, %v3803
      %v3853 = vunpack.c.l.s4 1983009808
      %v3854 = vunpack.c.0.s8 %v3853
      %v3855 = vlaneseq
      %v3856 = vshrl.u32 %v3855, 7
      %v3857 = vsub.s32 %v3854, %v3856
      %v3858 = vrot.slane %v3851, %v3857
      %v3859 = vcombine.low %v3834, %v3842
      %v3861 = vunpack.c.l.s4 1934713408
      %v3862 = vunpack.c.0.s8 %v3861
      %v3863 = vlaneseq
      %v3864 = vshrl.u32 %v3863, 7
      %v3865 = vsub.s32 %v3862, %v3864
      %v3866 = vrot.slane %v3859, %v3865
      %v3867 = vcombine.low %v3850, %v3858
      %v3869 = vunpack.c.l.s4 1934713408
      %v3870 = vunpack.c.0.s8 %v3869
      %v3871 = vlaneseq
      %v3872 = vshrl.u32 %v3871, 7
      %v3873 = vsub.s32 %v3870, %v3872
      %v3874 = vrot.slane %v3867, %v3873
      %v3875 = vcombine.low %v3866, %v3874
      %v3876 = vcombine.low %v3595, %v3659
      %v3878 = vunpack.c.l.s4 1983009808
      %v3879 = vunpack.c.0.s8 %v3878
      %v3880 = vlaneseq
      %v3881 = vshrl.u32 %v3880, 7
      %v3882 = vsub.s32 %v3879, %v3881
      %v3883 = vrot.slane %v3876, %v3882
      %v3884 = vcombine.low %v3627, %v3691
      %v3886 = vunpack.c.l.s4 1983009808
      %v3887 = vunpack.c.0.s8 %v3886
      %v3888 = vlaneseq
      %v3889 = vshrl.u32 %v3888, 7
      %v3890 = vsub.s32 %v3887, %v3889
      %v3891 = vrot.slane %v3884, %v3890
      %v3892 = vcombine.low %v3723, %v3787
      %v3894 = vunpack.c.l.s4 1983009808
      %v3895 = vunpack.c.0.s8 %v3894
      %v3896 = vlaneseq
      %v3897 = vshrl.u32 %v3896, 7
      %v3898 = vsub.s32 %v3895, %v3897
      %v3899 = vrot.slane %v3892, %v3898
      %v3900 = vcombine.low %v3755, %v3819
      %v3902 = vunpack.c.l.s4 1983009808
      %v3903 = vunpack.c.0.s8 %v3902
      %v3904 = vlaneseq
      %v3905 = vshrl.u32 %v3904, 7
      %v3906 = vsub.s32 %v3903, %v3905
      %v3907 = vrot.slane %v3900, %v3906
      %v3908 = vcombine.low %v3883, %v3891
      %v3910 = vunpack.c.l.s4 1934713408
      %v3911 = vunpack.c.0.s8 %v3910
      %v3912 = vlaneseq
      %v3913 = vshrl.u32 %v3912, 7
      %v3914 = vsub.s32 %v3911, %v3913
      %v3915 = vrot.slane %v3908, %v3914
      %v3916 = vcombine.low %v3899, %v3907
      %v3918 = vunpack.c.l.s4 1934713408
      %v3919 = vunpack.c.0.s8 %v3918
      %v3920 = vlaneseq
      %v3921 = vshrl.u32 %v3920, 7
      %v3922 = vsub.s32 %v3919, %v3921
      %v3923 = vrot.slane %v3916, %v3922
      %v3924 = vcombine.low %v3915, %v3923
      %v3927 = vpack.i.b16 %v3924, %v3875
      %v3929 = vshrl.u32 %v3875, 16
      %v3930 = vshrl.u32 %v3924, 16
      %v3931 = vpack.i.b16 %v3930, %v3929
      %v3934 = vsel %vm1580, %v3271, 0
      %3936 = vmatprep.subr.bf16.mxu0 0
      %3937 = vmatpush1.bf16.msra.mxu0 0
      %3938 = vmatprep.subr.bf16.mxu0 0
      %3939 = vmatpush1.bf16.msra.mxu0 0
      %3940 = vmatprep.subr.bf16.mxu0 0
      %3941 = vmatpush1.bf16.msra.mxu0 0
      %3942 = vmatprep.subr.bf16.mxu0 0
      %3943 = vmatpush1.bf16.msra.mxu0 0
      %3944 = vmatprep.subr.bf16.mxu0 0
      %3945 = vmatpush1.bf16.msra.mxu0 0
      %3946 = vmatprep.subr.bf16.mxu0 0
      %3947 = vmatpush1.bf16.msra.mxu0 0
      %3948 = vmatprep.subr.bf16.mxu0 0
      %3949 = vmatpush1.bf16.msra.mxu0 0
      %3950 = vmatprep.subr.bf16.mxu0 0
      %3951 = vmatpush1.bf16.msra.mxu0 %v3927
      %3952 = vmatprep.subr.bf16.mxu0 0
      %3953 = vmatpush2.bf16.msra.mxu0 0
      %3954 = vmatprep.subr.bf16.mxu0 0
      %3955 = vmatpush2.bf16.msra.mxu0 0
      %3956 = vmatprep.subr.bf16.mxu0 0
      %3957 = vmatpush2.bf16.msra.mxu0 0
      %3958 = vmatprep.subr.bf16.mxu0 0
      %3959 = vmatpush2.bf16.msra.mxu0 0
      %3960 = vmatprep.subr.bf16.mxu0 0
      %3961 = vmatpush2.bf16.msra.mxu0 0
      %3962 = vmatprep.subr.bf16.mxu0 0
      %3963 = vmatpush2.bf16.msra.mxu0 0
      %3964 = vmatprep.subr.bf16.mxu0 0
      %3965 = vmatpush2.bf16.msra.mxu0 0
      %3966 = vmatprep.subr.bf16.mxu0 0
      %3967 = vmatpush2.bf16.msra.mxu0 0
      %3968 = vmatprep.mubr.bf16.mxu0 0
      %3969 = vmatmul.mubr.bf16.gmra.mxu0 %v3934
      %v3970 = vpop.f32.mrf.mxu0
      %v3971 = vadd.f32 %v866, %v3970
      %v3972 = vpop.f32.mrf.mxu0
      %v3973 = vpop.f32.mrf.mxu0
      %v3974 = vpop.f32.mrf.mxu0
      %3975 = vdwg.mxu0
      %v3977 = vsel %vm1580, %v3274, 0
      %3979 = vmatprep.subr.bf16.mxu0 0
      %3980 = vmatpush1.bf16.msra.mxu0 0
      %3981 = vmatprep.subr.bf16.mxu0 0
      %3982 = vmatpush1.bf16.msra.mxu0 0
      %3983 = vmatprep.subr.bf16.mxu0 0
      %3984 = vmatpush1.bf16.msra.mxu0 0
      %3985 = vmatprep.subr.bf16.mxu0 0
      %3986 = vmatpush1.bf16.msra.mxu0 0
      %3987 = vmatprep.subr.bf16.mxu0 0
      %3988 = vmatpush1.bf16.msra.mxu0 0
      %3989 = vmatprep.subr.bf16.mxu0 0
      %3990 = vmatpush1.bf16.msra.mxu0 0
      %3991 = vmatprep.subr.bf16.mxu0 0
      %3992 = vmatpush1.bf16.msra.mxu0 0
      %3993 = vmatprep.subr.bf16.mxu0 0
      %3994 = vmatpush1.bf16.msra.mxu0 %v3931
      %3995 = vmatprep.subr.bf16.mxu0 0
      %3996 = vmatpush2.bf16.msra.mxu0 0
      %3997 = vmatprep.subr.bf16.mxu0 0
      %3998 = vmatpush2.bf16.msra.mxu0 0
      %3999 = vmatprep.subr.bf16.mxu0 0
      %4000 = vmatpush2.bf16.msra.mxu0 0
      %4001 = vmatprep.subr.bf16.mxu0 0
      %4002 = vmatpush2.bf16.msra.mxu0 0
      %4003 = vmatprep.subr.bf16.mxu0 0
      %4004 = vmatpush2.bf16.msra.mxu0 0
      %4005 = vmatprep.subr.bf16.mxu0 0
      %4006 = vmatpush2.bf16.msra.mxu0 0
      %4007 = vmatprep.subr.bf16.mxu0 0
      %4008 = vmatpush2.bf16.msra.mxu0 0
      %4009 = vmatprep.subr.bf16.mxu0 0
      %4010 = vmatpush2.bf16.msra.mxu0 0
      %4011 = vmatprep.mubr.bf16.mxu0 0
      %4012 = vmatmul.mubr.bf16.gmra.mxu0 %v3977
      %v4013 = vpop.f32.mrf.mxu0
      %v4014 = vadd.f32 %v866, %v4013
      %v4015 = vpop.f32.mrf.mxu0
      %v4016 = vpop.f32.mrf.mxu0
      %v4017 = vpop.f32.mrf.mxu0
      %4018 = vdwg.mxu0
      %v4019 = vsel %vm1667, %v3971, -inf
      %4020 = vmax.xlane.f32.xlu0 %v4019
      %v4021 = vpop.xlane.xlu0 %4020
      %v4022 = vsel %vm1667, %v4014, -inf
      %4023 = vmax.xlane.f32.xlu0 %v4022
      %v4024 = vpop.xlane.xlu0 %4023
      %v4025 = vsub.f32 %v3971, %v4021
      %v4026 = vsub.f32 %v4014, %v4024
      %v4027 = vmul.f32 %v4025, 1.442695
      %v4028 = vpow.pop %v4027
      %v4029 = vmul.f32 %v4026, 1.442695
      %v4030 = vpow.pop %v4029
      %v4031 = vsel %vm1667, %v4028, 0.0
      %4032 = vadd.xlane.f32.xlu0 %v4031
      %v4033 = vpop.xlane.xlu0 %4032
      %v4034 = vsel %vm1667, %v4030, 0.0
      %4035 = vadd.xlane.f32.xlu0 %v4034
      %v4036 = vpop.xlane.xlu0 %4035
      %v4037 = vrcp.pop %v4033
      %v4038 = vrcp.pop %v4036
      %v4039 = vmul.f32 %v4028, %v4037
      %v4040 = vmul.f32 %v4030, %v4038
      %v4041 = vpack.c.bf16 %v4039, %v4039
      %v4042 = vpack.c.bf16 %v4040, %v4040
      %v4043 = vpack.c.bf16 %v3177, %v3177
      %v4044 = vpack.c.bf16 %v3201, %v3201
      %v4045 = vpack.c.bf16 %v3184, %v3184
      %v4046 = vpack.c.bf16 %v3202, %v3202
      %v4047 = vpack.c.bf16 %v3193, %v3193
      %v4048 = vpack.c.bf16 %v3203, %v3203
      %v4049 = vpack.c.bf16 %v3200, %v3200
      %v4050 = vpack.c.bf16 %v3204, %v3204
      %4051 = vxpose.xlu0.c.b16.start [1/8] %v4043, 128
      %4052 = vxpose.xlu0.c.b16.cont [2/8] 0, 128
      %4053 = vxpose.xlu0.c.b16.cont [3/8] 0, 128
      %4054 = vxpose.xlu0.c.b16.cont [4/8] 0, 128
      %4055 = vxpose.xlu0.c.b16.cont [5/8] 0, 128
      %4056 = vxpose.xlu0.c.b16.cont [6/8] 0, 128
      %4057 = vxpose.xlu0.c.b16.cont [7/8] 0, 128
      %4058 = vxpose.xlu0.c.b16.end [8/8] 0, 128
      %v4059 = vpop.trf.xlu0
      %v4060 = vpop.trf.xlu0
      %v4061 = vpop.trf.xlu0
      %v4062 = vpop.trf.xlu0
      %v4063 = vpop.trf.xlu0
      %v4064 = vpop.trf.xlu0
      %v4065 = vpop.trf.xlu0
      %v4066 = vpop.trf.xlu0
      %4067 = vxpose.xlu0.c.b16.start [1/8] %v4044, 128
      %4068 = vxpose.xlu0.c.b16.cont [2/8] 0, 128
      %4069 = vxpose.xlu0.c.b16.cont [3/8] 0, 128
      %4070 = vxpose.xlu0.c.b16.cont [4/8] 0, 128
      %4071 = vxpose.xlu0.c.b16.cont [5/8] 0, 128
      %4072 = vxpose.xlu0.c.b16.cont [6/8] 0, 128
      %4073 = vxpose.xlu0.c.b16.cont [7/8] 0, 128
      %4074 = vxpose.xlu0.c.b16.end [8/8] 0, 128
      %v4075 = vpop.trf.xlu0
      %v4076 = vpop.trf.xlu0
      %v4077 = vpop.trf.xlu0
      %v4078 = vpop.trf.xlu0
      %v4079 = vpop.trf.xlu0
      %v4080 = vpop.trf.xlu0
      %v4081 = vpop.trf.xlu0
      %v4082 = vpop.trf.xlu0
      %4083 = vxpose.xlu0.c.b16.start [1/8] %v4045, 128
      %4084 = vxpose.xlu0.c.b16.cont [2/8] 0, 128
      %4085 = vxpose.xlu0.c.b16.cont [3/8] 0, 128
      %4086 = vxpose.xlu0.c.b16.cont [4/8] 0, 128
      %4087 = vxpose.xlu0.c.b16.cont [5/8] 0, 128
      %4088 = vxpose.xlu0.c.b16.cont [6/8] 0, 128
      %4089 = vxpose.xlu0.c.b16.cont [7/8] 0, 128
      %4090 = vxpose.xlu0.c.b16.end [8/8] 0, 128
      %v4091 = vpop.trf.xlu0
      %v4092 = vpop.trf.xlu0
      %v4093 = vpop.trf.xlu0
      %v4094 = vpop.trf.xlu0
      %v4095 = vpop.trf.xlu0
      %v4096 = vpop.trf.xlu0
      %v4097 = vpop.trf.xlu0
      %v4098 = vpop.trf.xlu0
      %4099 = vxpose.xlu0.c.b16.start [1/8] %v4046, 128
      %4100 = vxpose.xlu0.c.b16.cont [2/8] 0, 128
      %4101 = vxpose.xlu0.c.b16.cont [3/8] 0, 128
      %4102 = vxpose.xlu0.c.b16.cont [4/8] 0, 128
      %4103 = vxpose.xlu0.c.b16.cont [5/8] 0, 128
      %4104 = vxpose.xlu0.c.b16.cont [6/8] 0, 128
      %4105 = vxpose.xlu0.c.b16.cont [7/8] 0, 128
      %4106 = vxpose.xlu0.c.b16.end [8/8] 0, 128
      %v4107 = vpop.trf.xlu0
      %v4108 = vpop.trf.xlu0
      %v4109 = vpop.trf.xlu0
      %v4110 = vpop.trf.xlu0
      %v4111 = vpop.trf.xlu0
      %v4112 = vpop.trf.xlu0
      %v4113 = vpop.trf.xlu0
      %v4114 = vpop.trf.xlu0
      %4115 = vxpose.xlu0.c.b16.start [1/8] %v4047, 128
      %4116 = vxpose.xlu0.c.b16.cont [2/8] 0, 128
      %4117 = vxpose.xlu0.c.b16.cont [3/8] 0, 128
      %4118 = vxpose.xlu0.c.b16.cont [4/8] 0, 128
      %4119 = vxpose.xlu0.c.b16.cont [5/8] 0, 128
      %4120 = vxpose.xlu0.c.b16.cont [6/8] 0, 128
      %4121 = vxpose.xlu0.c.b16.cont [7/8] 0, 128
      %4122 = vxpose.xlu0.c.b16.end [8/8] 0, 128
      %v4123 = vpop.trf.xlu0
      %v4124 = vpop.trf.xlu0
      %v4125 = vpop.trf.xlu0
      %v4126 = vpop.trf.xlu0
      %v4127 = vpop.trf.xlu0
      %v4128 = vpop.trf.xlu0
      %v4129 = vpop.trf.xlu0
      %v4130 = vpop.trf.xlu0
      %4131 = vxpose.xlu0.c.b16.start [1/8] %v4048, 128
      %4132 = vxpose.xlu0.c.b16.cont [2/8] 0, 128
      %4133 = vxpose.xlu0.c.b16.cont [3/8] 0, 128
      %4134 = vxpose.xlu0.c.b16.cont [4/8] 0, 128
      %4135 = vxpose.xlu0.c.b16.cont [5/8] 0, 128
      %4136 = vxpose.xlu0.c.b16.cont [6/8] 0, 128
      %4137 = vxpose.xlu0.c.b16.cont [7/8] 0, 128
      %4138 = vxpose.xlu0.c.b16.end [8/8] 0, 128
      %v4139 = vpop.trf.xlu0
      %v4140 = vpop.trf.xlu0
      %v4141 = vpop.trf.xlu0
      %v4142 = vpop.trf.xlu0
      %v4143 = vpop.trf.xlu0
      %v4144 = vpop.trf.xlu0
      %v4145 = vpop.trf.xlu0
      %v4146 = vpop.trf.xlu0
      %4147 = vxpose.xlu0.c.b16.start [1/8] %v4049, 128
      %4148 = vxpose.xlu0.c.b16.cont [2/8] 0, 128
      %4149 = vxpose.xlu0.c.b16.cont [3/8] 0, 128
      %4150 = vxpose.xlu0.c.b16.cont [4/8] 0, 128
      %4151 = vxpose.xlu0.c.b16.cont [5/8] 0, 128
      %4152 = vxpose.xlu0.c.b16.cont [6/8] 0, 128
      %4153 = vxpose.xlu0.c.b16.cont [7/8] 0, 128
      %4154 = vxpose.xlu0.c.b16.end [8/8] 0, 128
      %v4155 = vpop.trf.xlu0
      %v4156 = vpop.trf.xlu0
      %v4157 = vpop.trf.xlu0
      %v4158 = vpop.trf.xlu0
      %v4159 = vpop.trf.xlu0
      %v4160 = vpop.trf.xlu0
      %v4161 = vpop.trf.xlu0
      %v4162 = vpop.trf.xlu0
      %4163 = vxpose.xlu0.c.b16.start [1/8] %v4050, 128
      %4164 = vxpose.xlu0.c.b16.cont [2/8] 0, 128
      %4165 = vxpose.xlu0.c.b16.cont [3/8] 0, 128
      %4166 = vxpose.xlu0.c.b16.cont [4/8] 0, 128
      %4167 = vxpose.xlu0.c.b16.cont [5/8] 0, 128
      %4168 = vxpose.xlu0.c.b16.cont [6/8] 0, 128
      %4169 = vxpose.xlu0.c.b16.cont [7/8] 0, 128
      %4170 = vxpose.xlu0.c.b16.end [8/8] 0, 128
      %v4171 = vpop.trf.xlu0
      %v4172 = vpop.trf.xlu0
      %v4173 = vpop.trf.xlu0
      %v4174 = vpop.trf.xlu0
      %v4175 = vpop.trf.xlu0
      %v4176 = vpop.trf.xlu0
      %v4177 = vpop.trf.xlu0
      %v4178 = vpop.trf.xlu0
      %v4181 = vpack.i.b16 %v4075, %v4059
      %v4183 = vshrl.u32 %v4059, 16
      %v4184 = vshrl.u32 %v4075, 16
      %v4185 = vpack.i.b16 %v4184, %v4183
      %v4189 = vpack.i.b16 %v4107, %v4091
      %v4191 = vshrl.u32 %v4091, 16
      %v4192 = vshrl.u32 %v4107, 16
      %v4193 = vpack.i.b16 %v4192, %v4191
      %v4197 = vpack.i.b16 %v4139, %v4123
      %v4199 = vshrl.u32 %v4123, 16
      %v4200 = vshrl.u32 %v4139, 16
      %v4201 = vpack.i.b16 %v4200, %v4199
      %v4205 = vpack.i.b16 %v4171, %v4155
      %v4207 = vshrl.u32 %v4155, 16
      %v4208 = vshrl.u32 %v4171, 16
      %v4209 = vpack.i.b16 %v4208, %v4207
      %v4211 = vcombine.low %v4181, %v4197
      %v4212 = vcombine.high %v4181, %v4197
      %v4214 = vunpack.c.l.s4 1983009808
      %v4215 = vunpack.c.0.s8 %v4214
      %v4216 = vlaneseq
      %v4217 = vshrl.u32 %v4216, 7
      %v4218 = vsub.s32 %v4215, %v4217
      %v4219 = vrot.slane %v4211, %v4218
      %v4221 = vunpack.c.l.s4 1983009808
      %v4222 = vunpack.c.0.s8 %v4221
      %v4223 = vlaneseq
      %v4224 = vshrl.u32 %v4223, 7
      %v4225 = vsub.s32 %v4222, %v4224
      %v4226 = vrot.slane %v4212, %v4225
      %v4227 = vcombine.low %v4189, %v4205
      %v4228 = vcombine.high %v4189, %v4205
      %v4230 = vunpack.c.l.s4 1983009808
      %v4231 = vunpack.c.0.s8 %v4230
      %v4232 = vlaneseq
      %v4233 = vshrl.u32 %v4232, 7
      %v4234 = vsub.s32 %v4231, %v4233
      %v4235 = vrot.slane %v4227, %v4234
      %v4237 = vunpack.c.l.s4 1983009808
      %v4238 = vunpack.c.0.s8 %v4237
      %v4239 = vlaneseq
      %v4240 = vshrl.u32 %v4239, 7
      %v4241 = vsub.s32 %v4238, %v4240
      %v4242 = vrot.slane %v4228, %v4241
      %v4243 = vcombine.low %v4219, %v4235
      %v4244 = vcombine.high %v4219, %v4235
      %v4246 = vunpack.c.l.s4 1934713408
      %v4247 = vunpack.c.0.s8 %v4246
      %v4248 = vlaneseq
      %v4249 = vshrl.u32 %v4248, 7
      %v4250 = vsub.s32 %v4247, %v4249
      %v4251 = vrot.slane %v4243, %v4250
      %v4253 = vunpack.c.l.s4 1934713408
      %v4254 = vunpack.c.0.s8 %v4253
      %v4255 = vlaneseq
      %v4256 = vshrl.u32 %v4255, 7
      %v4257 = vsub.s32 %v4254, %v4256
      %v4258 = vrot.slane %v4244, %v4257
      %v4259 = vcombine.low %v4226, %v4242
      %v4260 = vcombine.high %v4226, %v4242
      %v4262 = vunpack.c.l.s4 1934713408
      %v4263 = vunpack.c.0.s8 %v4262
      %v4264 = vlaneseq
      %v4265 = vshrl.u32 %v4264, 7
      %v4266 = vsub.s32 %v4263, %v4265
      %v4267 = vrot.slane %v4259, %v4266
      %v4269 = vunpack.c.l.s4 1934713408
      %v4270 = vunpack.c.0.s8 %v4269
      %v4271 = vlaneseq
      %v4272 = vshrl.u32 %v4271, 7
      %v4273 = vsub.s32 %v4270, %v4272
      %v4274 = vrot.slane %v4260, %v4273
      %v4275 = vcombine.high %v4251, 0
      %v4276 = vcombine.high %v4258, 0
      %v4277 = vcombine.high %v4267, 0
      %v4278 = vcombine.high %v4274, 0
      %v4279 = vcombine.low %v4185, %v4201
      %v4280 = vcombine.high %v4185, %v4201
      %v4282 = vunpack.c.l.s4 1983009808
      %v4283 = vunpack.c.0.s8 %v4282
      %v4284 = vlaneseq
      %v4285 = vshrl.u32 %v4284, 7
      %v4286 = vsub.s32 %v4283, %v4285
      %v4287 = vrot.slane %v4279, %v4286
      %v4289 = vunpack.c.l.s4 1983009808
      %v4290 = vunpack.c.0.s8 %v4289
      %v4291 = vlaneseq
      %v4292 = vshrl.u32 %v4291, 7
      %v4293 = vsub.s32 %v4290, %v4292
      %v4294 = vrot.slane %v4280, %v4293
      %v4295 = vcombine.low %v4193, %v4209
      %v4296 = vcombine.high %v4193, %v4209
      %v4298 = vunpack.c.l.s4 1983009808
      %v4299 = vunpack.c.0.s8 %v4298
      %v4300 = vlaneseq
      %v4301 = vshrl.u32 %v4300, 7
      %v4302 = vsub.s32 %v4299, %v4301
      %v4303 = vrot.slane %v4295, %v4302
      %v4305 = vunpack.c.l.s4 1983009808
      %v4306 = vunpack.c.0.s8 %v4305
      %v4307 = vlaneseq
      %v4308 = vshrl.u32 %v4307, 7
      %v4309 = vsub.s32 %v4306, %v4308
      %v4310 = vrot.slane %v4296, %v4309
      %v4311 = vcombine.low %v4287, %v4303
      %v4312 = vcombine.high %v4287, %v4303
      %v4314 = vunpack.c.l.s4 1934713408
      %v4315 = vunpack.c.0.s8 %v4314
      %v4316 = vlaneseq
      %v4317 = vshrl.u32 %v4316, 7
      %v4318 = vsub.s32 %v4315, %v4317
      %v4319 = vrot.slane %v4311, %v4318
      %v4321 = vunpack.c.l.s4 1934713408
      %v4322 = vunpack.c.0.s8 %v4321
      %v4323 = vlaneseq
      %v4324 = vshrl.u32 %v4323, 7
      %v4325 = vsub.s32 %v4322, %v4324
      %v4326 = vrot.slane %v4312, %v4325
      %v4327 = vcombine.low %v4294, %v4310
      %v4328 = vcombine.high %v4294, %v4310
      %v4330 = vunpack.c.l.s4 1934713408
      %v4331 = vunpack.c.0.s8 %v4330
      %v4332 = vlaneseq
      %v4333 = vshrl.u32 %v4332, 7
      %v4334 = vsub.s32 %v4331, %v4333
      %v4335 = vrot.slane %v4327, %v4334
      %v4337 = vunpack.c.l.s4 1934713408
      %v4338 = vunpack.c.0.s8 %v4337
      %v4339 = vlaneseq
      %v4340 = vshrl.u32 %v4339, 7
      %v4341 = vsub.s32 %v4338, %v4340
      %v4342 = vrot.slane %v4328, %v4341
      %v4343 = vcombine.high %v4319, 0
      %v4344 = vcombine.high %v4326, 0
      %v4345 = vcombine.high %v4335, 0
      %v4346 = vcombine.high %v4342, 0
      %4347 = vxpose.xlu0.c.b16.start [1/8] %v4251, 128
      %4348 = vxpose.xlu0.c.b16.cont [2/8] 0, 128
      %4349 = vxpose.xlu0.c.b16.cont [3/8] 0, 128
      %4350 = vxpose.xlu0.c.b16.cont [4/8] 0, 128
      %4351 = vxpose.xlu0.c.b16.cont [5/8] 0, 128
      %4352 = vxpose.xlu0.c.b16.cont [6/8] 0, 128
      %4353 = vxpose.xlu0.c.b16.cont [7/8] 0, 128
      %4354 = vxpose.xlu0.c.b16.end [8/8] 0, 128
      %v4355 = vpop.trf.xlu0
      %v4356 = vpop.trf.xlu0
      %v4357 = vpop.trf.xlu0
      %v4358 = vpop.trf.xlu0
      %v4359 = vpop.trf.xlu0
      %v4360 = vpop.trf.xlu0
      %v4361 = vpop.trf.xlu0
      %v4362 = vpop.trf.xlu0
      %4363 = vxpose.xlu0.c.b16.start [1/8] %v4319, 128
      %4364 = vxpose.xlu0.c.b16.cont [2/8] 0, 128
      %4365 = vxpose.xlu0.c.b16.cont [3/8] 0, 128
      %4366 = vxpose.xlu0.c.b16.cont [4/8] 0, 128
      %4367 = vxpose.xlu0.c.b16.cont [5/8] 0, 128
      %4368 = vxpose.xlu0.c.b16.cont [6/8] 0, 128
      %4369 = vxpose.xlu0.c.b16.cont [7/8] 0, 128
      %4370 = vxpose.xlu0.c.b16.end [8/8] 0, 128
      %v4371 = vpop.trf.xlu0
      %v4372 = vpop.trf.xlu0
      %v4373 = vpop.trf.xlu0
      %v4374 = vpop.trf.xlu0
      %v4375 = vpop.trf.xlu0
      %v4376 = vpop.trf.xlu0
      %v4377 = vpop.trf.xlu0
      %v4378 = vpop.trf.xlu0
      %4379 = vxpose.xlu0.c.b16.start [1/8] %v4275, 128
      %4380 = vxpose.xlu0.c.b16.cont [2/8] 0, 128
      %4381 = vxpose.xlu0.c.b16.cont [3/8] 0, 128
      %4382 = vxpose.xlu0.c.b16.cont [4/8] 0, 128
      %4383 = vxpose.xlu0.c.b16.cont [5/8] 0, 128
      %4384 = vxpose.xlu0.c.b16.cont [6/8] 0, 128
      %4385 = vxpose.xlu0.c.b16.cont [7/8] 0, 128
      %4386 = vxpose.xlu0.c.b16.end [8/8] 0, 128
      %v4387 = vpop.trf.xlu0
      %v4388 = vpop.trf.xlu0
      %v4389 = vpop.trf.xlu0
      %v4390 = vpop.trf.xlu0
      %v4391 = vpop.trf.xlu0
      %v4392 = vpop.trf.xlu0
      %v4393 = vpop.trf.xlu0
      %v4394 = vpop.trf.xlu0
      %4395 = vxpose.xlu0.c.b16.start [1/8] %v4343, 128
      %4396 = vxpose.xlu0.c.b16.cont [2/8] 0, 128
      %4397 = vxpose.xlu0.c.b16.cont [3/8] 0, 128
      %4398 = vxpose.xlu0.c.b16.cont [4/8] 0, 128
      %4399 = vxpose.xlu0.c.b16.cont [5/8] 0, 128
      %4400 = vxpose.xlu0.c.b16.cont [6/8] 0, 128
      %4401 = vxpose.xlu0.c.b16.cont [7/8] 0, 128
      %4402 = vxpose.xlu0.c.b16.end [8/8] 0, 128
      %v4403 = vpop.trf.xlu0
      %v4404 = vpop.trf.xlu0
      %v4405 = vpop.trf.xlu0
      %v4406 = vpop.trf.xlu0
      %v4407 = vpop.trf.xlu0
      %v4408 = vpop.trf.xlu0
      %v4409 = vpop.trf.xlu0
      %v4410 = vpop.trf.xlu0
      %4411 = vxpose.xlu0.c.b16.start [1/8] %v4258, 128
      %4412 = vxpose.xlu0.c.b16.cont [2/8] 0, 128
      %4413 = vxpose.xlu0.c.b16.cont [3/8] 0, 128
      %4414 = vxpose.xlu0.c.b16.cont [4/8] 0, 128
      %4415 = vxpose.xlu0.c.b16.cont [5/8] 0, 128
      %4416 = vxpose.xlu0.c.b16.cont [6/8] 0, 128
      %4417 = vxpose.xlu0.c.b16.cont [7/8] 0, 128
      %4418 = vxpose.xlu0.c.b16.end [8/8] 0, 128
      %v4419 = vpop.trf.xlu0
      %v4420 = vpop.trf.xlu0
      %v4421 = vpop.trf.xlu0
      %v4422 = vpop.trf.xlu0
      %v4423 = vpop.trf.xlu0
      %v4424 = vpop.trf.xlu0
      %v4425 = vpop.trf.xlu0
      %v4426 = vpop.trf.xlu0
      %4427 = vxpose.xlu0.c.b16.start [1/8] %v4326, 128
      %4428 = vxpose.xlu0.c.b16.cont [2/8] 0, 128
      %4429 = vxpose.xlu0.c.b16.cont [3/8] 0, 128
      %4430 = vxpose.xlu0.c.b16.cont [4/8] 0, 128
      %4431 = vxpose.xlu0.c.b16.cont [5/8] 0, 128
      %4432 = vxpose.xlu0.c.b16.cont [6/8] 0, 128
      %4433 = vxpose.xlu0.c.b16.cont [7/8] 0, 128
      %4434 = vxpose.xlu0.c.b16.end [8/8] 0, 128
      %v4435 = vpop.trf.xlu0
      %v4436 = vpop.trf.xlu0
      %v4437 = vpop.trf.xlu0
      %v4438 = vpop.trf.xlu0
      %v4439 = vpop.trf.xlu0
      %v4440 = vpop.trf.xlu0
      %v4441 = vpop.trf.xlu0
      %v4442 = vpop.trf.xlu0
      %4443 = vxpose.xlu0.c.b16.start [1/8] %v4276, 128
      %4444 = vxpose.xlu0.c.b16.cont [2/8] 0, 128
      %4445 = vxpose.xlu0.c.b16.cont [3/8] 0, 128
      %4446 = vxpose.xlu0.c.b16.cont [4/8] 0, 128
      %4447 = vxpose.xlu0.c.b16.cont [5/8] 0, 128
      %4448 = vxpose.xlu0.c.b16.cont [6/8] 0, 128
      %4449 = vxpose.xlu0.c.b16.cont [7/8] 0, 128
      %4450 = vxpose.xlu0.c.b16.end [8/8] 0, 128
      %v4451 = vpop.trf.xlu0
      %v4452 = vpop.trf.xlu0
      %v4453 = vpop.trf.xlu0
      %v4454 = vpop.trf.xlu0
      %v4455 = vpop.trf.xlu0
      %v4456 = vpop.trf.xlu0
      %v4457 = vpop.trf.xlu0
      %v4458 = vpop.trf.xlu0
      %4459 = vxpose.xlu0.c.b16.start [1/8] %v4344, 128
      %4460 = vxpose.xlu0.c.b16.cont [2/8] 0, 128
      %4461 = vxpose.xlu0.c.b16.cont [3/8] 0, 128
      %4462 = vxpose.xlu0.c.b16.cont [4/8] 0, 128
      %4463 = vxpose.xlu0.c.b16.cont [5/8] 0, 128
      %4464 = vxpose.xlu0.c.b16.cont [6/8] 0, 128
      %4465 = vxpose.xlu0.c.b16.cont [7/8] 0, 128
      %4466 = vxpose.xlu0.c.b16.end [8/8] 0, 128
      %v4467 = vpop.trf.xlu0
      %v4468 = vpop.trf.xlu0
      %v4469 = vpop.trf.xlu0
      %v4470 = vpop.trf.xlu0
      %v4471 = vpop.trf.xlu0
      %v4472 = vpop.trf.xlu0
      %v4473 = vpop.trf.xlu0
      %v4474 = vpop.trf.xlu0
      %4475 = vxpose.xlu0.c.b16.start [1/8] %v4267, 128
      %4476 = vxpose.xlu0.c.b16.cont [2/8] 0, 128
      %4477 = vxpose.xlu0.c.b16.cont [3/8] 0, 128
      %4478 = vxpose.xlu0.c.b16.cont [4/8] 0, 128
      %4479 = vxpose.xlu0.c.b16.cont [5/8] 0, 128
      %4480 = vxpose.xlu0.c.b16.cont [6/8] 0, 128
      %4481 = vxpose.xlu0.c.b16.cont [7/8] 0, 128
      %4482 = vxpose.xlu0.c.b16.end [8/8] 0, 128
      %v4483 = vpop.trf.xlu0
      %v4484 = vpop.trf.xlu0
      %v4485 = vpop.trf.xlu0
      %v4486 = vpop.trf.xlu0
      %v4487 = vpop.trf.xlu0
      %v4488 = vpop.trf.xlu0
      %v4489 = vpop.trf.xlu0
      %v4490 = vpop.trf.xlu0
      %4491 = vxpose.xlu0.c.b16.start [1/8] %v4335, 128
      %4492 = vxpose.xlu0.c.b16.cont [2/8] 0, 128
      %4493 = vxpose.xlu0.c.b16.cont [3/8] 0, 128
      %4494 = vxpose.xlu0.c.b16.cont [4/8] 0, 128
      %4495 = vxpose.xlu0.c.b16.cont [5/8] 0, 128
      %4496 = vxpose.xlu0.c.b16.cont [6/8] 0, 128
      %4497 = vxpose.xlu0.c.b16.cont [7/8] 0, 128
      %4498 = vxpose.xlu0.c.b16.end [8/8] 0, 128
      %v4499 = vpop.trf.xlu0
      %v4500 = vpop.trf.xlu0
      %v4501 = vpop.trf.xlu0
      %v4502 = vpop.trf.xlu0
      %v4503 = vpop.trf.xlu0
      %v4504 = vpop.trf.xlu0
      %v4505 = vpop.trf.xlu0
      %v4506 = vpop.trf.xlu0
      %4507 = vxpose.xlu0.c.b16.start [1/8] %v4277, 128
      %4508 = vxpose.xlu0.c.b16.cont [2/8] 0, 128
      %4509 = vxpose.xlu0.c.b16.cont [3/8] 0, 128
      %4510 = vxpose.xlu0.c.b16.cont [4/8] 0, 128
      %4511 = vxpose.xlu0.c.b16.cont [5/8] 0, 128
      %4512 = vxpose.xlu0.c.b16.cont [6/8] 0, 128
      %4513 = vxpose.xlu0.c.b16.cont [7/8] 0, 128
      %4514 = vxpose.xlu0.c.b16.end [8/8] 0, 128
      %v4515 = vpop.trf.xlu0
      %v4516 = vpop.trf.xlu0
      %v4517 = vpop.trf.xlu0
      %v4518 = vpop.trf.xlu0
      %v4519 = vpop.trf.xlu0
      %v4520 = vpop.trf.xlu0
      %v4521 = vpop.trf.xlu0
      %v4522 = vpop.trf.xlu0
      %4523 = vxpose.xlu0.c.b16.start [1/8] %v4345, 128
      %4524 = vxpose.xlu0.c.b16.cont [2/8] 0, 128
      %4525 = vxpose.xlu0.c.b16.cont [3/8] 0, 128
      %4526 = vxpose.xlu0.c.b16.cont [4/8] 0, 128
      %4527 = vxpose.xlu0.c.b16.cont [5/8] 0, 128
      %4528 = vxpose.xlu0.c.b16.cont [6/8] 0, 128
      %4529 = vxpose.xlu0.c.b16.cont [7/8] 0, 128
      %4530 = vxpose.xlu0.c.b16.end [8/8] 0, 128
      %v4531 = vpop.trf.xlu0
      %v4532 = vpop.trf.xlu0
      %v4533 = vpop.trf.xlu0
      %v4534 = vpop.trf.xlu0
      %v4535 = vpop.trf.xlu0
      %v4536 = vpop.trf.xlu0
      %v4537 = vpop.trf.xlu0
      %v4538 = vpop.trf.xlu0
      %4539 = vxpose.xlu0.c.b16.start [1/8] %v4274, 128
      %4540 = vxpose.xlu0.c.b16.cont [2/8] 0, 128
      %4541 = vxpose.xlu0.c.b16.cont [3/8] 0, 128
      %4542 = vxpose.xlu0.c.b16.cont [4/8] 0, 128
      %4543 = vxpose.xlu0.c.b16.cont [5/8] 0, 128
      %4544 = vxpose.xlu0.c.b16.cont [6/8] 0, 128
      %4545 = vxpose.xlu0.c.b16.cont [7/8] 0, 128
      %4546 = vxpose.xlu0.c.b16.end [8/8] 0, 128
      %v4547 = vpop.trf.xlu0
      %v4548 = vpop.trf.xlu0
      %v4549 = vpop.trf.xlu0
      %v4550 = vpop.trf.xlu0
      %v4551 = vpop.trf.xlu0
      %v4552 = vpop.trf.xlu0
      %v4553 = vpop.trf.xlu0
      %v4554 = vpop.trf.xlu0
      %4555 = vxpose.xlu0.c.b16.start [1/8] %v4342, 128
      %4556 = vxpose.xlu0.c.b16.cont [2/8] 0, 128
      %4557 = vxpose.xlu0.c.b16.cont [3/8] 0, 128
      %4558 = vxpose.xlu0.c.b16.cont [4/8] 0, 128
      %4559 = vxpose.xlu0.c.b16.cont [5/8] 0, 128
      %4560 = vxpose.xlu0.c.b16.cont [6/8] 0, 128
      %4561 = vxpose.xlu0.c.b16.cont [7/8] 0, 128
      %4562 = vxpose.xlu0.c.b16.end [8/8] 0, 128
      %v4563 = vpop.trf.xlu0
      %v4564 = vpop.trf.xlu0
      %v4565 = vpop.trf.xlu0
      %v4566 = vpop.trf.xlu0
      %v4567 = vpop.trf.xlu0
      %v4568 = vpop.trf.xlu0
      %v4569 = vpop.trf.xlu0
      %v4570 = vpop.trf.xlu0
      %4571 = vxpose.xlu0.c.b16.start [1/8] %v4278, 128
      %4572 = vxpose.xlu0.c.b16.cont [2/8] 0, 128
      %4573 = vxpose.xlu0.c.b16.cont [3/8] 0, 128
      %4574 = vxpose.xlu0.c.b16.cont [4/8] 0, 128
      %4575 = vxpose.xlu0.c.b16.cont [5/8] 0, 128
      %4576 = vxpose.xlu0.c.b16.cont [6/8] 0, 128
      %4577 = vxpose.xlu0.c.b16.cont [7/8] 0, 128
      %4578 = vxpose.xlu0.c.b16.end [8/8] 0, 128
      %v4579 = vpop.trf.xlu0
      %v4580 = vpop.trf.xlu0
      %v4581 = vpop.trf.xlu0
      %v4582 = vpop.trf.xlu0
      %v4583 = vpop.trf.xlu0
      %v4584 = vpop.trf.xlu0
      %v4585 = vpop.trf.xlu0
      %v4586 = vpop.trf.xlu0
      %4587 = vxpose.xlu0.c.b16.start [1/8] %v4346, 128
      %4588 = vxpose.xlu0.c.b16.cont [2/8] 0, 128
      %4589 = vxpose.xlu0.c.b16.cont [3/8] 0, 128
      %4590 = vxpose.xlu0.c.b16.cont [4/8] 0, 128
      %4591 = vxpose.xlu0.c.b16.cont [5/8] 0, 128
      %4592 = vxpose.xlu0.c.b16.cont [6/8] 0, 128
      %4593 = vxpose.xlu0.c.b16.cont [7/8] 0, 128
      %4594 = vxpose.xlu0.c.b16.end [8/8] 0, 128
      %v4595 = vpop.trf.xlu0
      %v4596 = vpop.trf.xlu0
      %v4597 = vpop.trf.xlu0
      %v4598 = vpop.trf.xlu0
      %v4599 = vpop.trf.xlu0
      %v4600 = vpop.trf.xlu0
      %v4601 = vpop.trf.xlu0
      %v4602 = vpop.trf.xlu0
      %v4603 = vcombine.low %v4355, %v4419
      %v4605 = vunpack.c.l.s4 1983009808
      %v4606 = vunpack.c.0.s8 %v4605
      %v4607 = vlaneseq
      %v4608 = vshrl.u32 %v4607, 7
      %v4609 = vsub.s32 %v4606, %v4608
      %v4610 = vrot.slane %v4603, %v4609
      %v4611 = vcombine.low %v4387, %v4451
      %v4613 = vunpack.c.l.s4 1983009808
      %v4614 = vunpack.c.0.s8 %v4613
      %v4615 = vlaneseq
      %v4616 = vshrl.u32 %v4615, 7
      %v4617 = vsub.s32 %v4614, %v4616
      %v4618 = vrot.slane %v4611, %v4617
      %v4619 = vcombine.low %v4483, %v4547
      %v4621 = vunpack.c.l.s4 1983009808
      %v4622 = vunpack.c.0.s8 %v4621
      %v4623 = vlaneseq
      %v4624 = vshrl.u32 %v4623, 7
      %v4625 = vsub.s32 %v4622, %v4624
      %v4626 = vrot.slane %v4619, %v4625
      %v4627 = vcombine.low %v4515, %v4579
      %v4629 = vunpack.c.l.s4 1983009808
      %v4630 = vunpack.c.0.s8 %v4629
      %v4631 = vlaneseq
      %v4632 = vshrl.u32 %v4631, 7
      %v4633 = vsub.s32 %v4630, %v4632
      %v4634 = vrot.slane %v4627, %v4633
      %v4635 = vcombine.low %v4610, %v4618
      %v4637 = vunpack.c.l.s4 1934713408
      %v4638 = vunpack.c.0.s8 %v4637
      %v4639 = vlaneseq
      %v4640 = vshrl.u32 %v4639, 7
      %v4641 = vsub.s32 %v4638, %v4640
      %v4642 = vrot.slane %v4635, %v4641
      %v4643 = vcombine.low %v4626, %v4634
      %v4645 = vunpack.c.l.s4 1934713408
      %v4646 = vunpack.c.0.s8 %v4645
      %v4647 = vlaneseq
      %v4648 = vshrl.u32 %v4647, 7
      %v4649 = vsub.s32 %v4646, %v4648
      %v4650 = vrot.slane %v4643, %v4649
      %v4651 = vcombine.low %v4642, %v4650
      %v4652 = vcombine.low %v4371, %v4435
      %v4654 = vunpack.c.l.s4 1983009808
      %v4655 = vunpack.c.0.s8 %v4654
      %v4656 = vlaneseq
      %v4657 = vshrl.u32 %v4656, 7
      %v4658 = vsub.s32 %v4655, %v4657
      %v4659 = vrot.slane %v4652, %v4658
      %v4660 = vcombine.low %v4403, %v4467
      %v4662 = vunpack.c.l.s4 1983009808
      %v4663 = vunpack.c.0.s8 %v4662
      %v4664 = vlaneseq
      %v4665 = vshrl.u32 %v4664, 7
      %v4666 = vsub.s32 %v4663, %v4665
      %v4667 = vrot.slane %v4660, %v4666
      %v4668 = vcombine.low %v4499, %v4563
      %v4670 = vunpack.c.l.s4 1983009808
      %v4671 = vunpack.c.0.s8 %v4670
      %v4672 = vlaneseq
      %v4673 = vshrl.u32 %v4672, 7
      %v4674 = vsub.s32 %v4671, %v4673
      %v4675 = vrot.slane %v4668, %v4674
      %v4676 = vcombine.low %v4531, %v4595
      %v4678 = vunpack.c.l.s4 1983009808
      %v4679 = vunpack.c.0.s8 %v4678
      %v4680 = vlaneseq
      %v4681 = vshrl.u32 %v4680, 7
      %v4682 = vsub.s32 %v4679, %v4681
      %v4683 = vrot.slane %v4676, %v4682
      %v4684 = vcombine.low %v4659, %v4667
      %v4686 = vunpack.c.l.s4 1934713408
      %v4687 = vunpack.c.0.s8 %v4686
      %v4688 = vlaneseq
      %v4689 = vshrl.u32 %v4688, 7
      %v4690 = vsub.s32 %v4687, %v4689
      %v4691 = vrot.slane %v4684, %v4690
      %v4692 = vcombine.low %v4675, %v4683
      %v4694 = vunpack.c.l.s4 1934713408
      %v4695 = vunpack.c.0.s8 %v4694
      %v4696 = vlaneseq
      %v4697 = vshrl.u32 %v4696, 7
      %v4698 = vsub.s32 %v4695, %v4697
      %v4699 = vrot.slane %v4692, %v4698
      %v4700 = vcombine.low %v4691, %v4699
      %v4703 = vpack.i.b16 %v4700, %v4651
      %v4704 = vshrl.u32 %v4651, 16
      %v4705 = vshrl.u32 %v4700, 16
      %v4706 = vpack.i.b16 %v4705, %v4704
      %v4708 = vsel %vm1667, %v4703, 0
      %v4711 = vsel %vm1667, %v4041, 0
      %4713 = vmatprep.subr.bf16.mxu0 0
      %4714 = vmatpush1.bf16.xpose.msra.mxu0 0
      %4715 = vmatprep.subr.bf16.mxu0 0
      %4716 = vmatpush1.bf16.xpose.msra.mxu0 0
      %4717 = vmatprep.subr.bf16.mxu0 0
      %4718 = vmatpush1.bf16.xpose.msra.mxu0 0
      %4719 = vmatprep.subr.bf16.mxu0 0
      %4720 = vmatpush1.bf16.xpose.msra.mxu0 0
      %4721 = vmatprep.subr.bf16.mxu0 0
      %4722 = vmatpush1.bf16.xpose.msra.mxu0 0
      %4723 = vmatprep.subr.bf16.mxu0 0
      %4724 = vmatpush1.bf16.xpose.msra.mxu0 0
      %4725 = vmatprep.subr.bf16.mxu0 0
      %4726 = vmatpush1.bf16.xpose.msra.mxu0 0
      %4727 = vmatprep.subr.bf16.mxu0 0
      %4728 = vmatpush1.bf16.xpose.msra.mxu0 %v4711
      %4729 = vmatprep.subr.bf16.mxu0 0
      %4730 = vmatpush2.bf16.xpose.msra.mxu0 0
      %4731 = vmatprep.subr.bf16.mxu0 0
      %4732 = vmatpush2.bf16.xpose.msra.mxu0 0
      %4733 = vmatprep.subr.bf16.mxu0 0
      %4734 = vmatpush2.bf16.xpose.msra.mxu0 0
      %4735 = vmatprep.subr.bf16.mxu0 0
      %4736 = vmatpush2.bf16.xpose.msra.mxu0 0
      %4737 = vmatprep.subr.bf16.mxu0 0
      %4738 = vmatpush2.bf16.xpose.msra.mxu0 0
      %4739 = vmatprep.subr.bf16.mxu0 0
      %4740 = vmatpush2.bf16.xpose.msra.mxu0 0
      %4741 = vmatprep.subr.bf16.mxu0 0
      %4742 = vmatpush2.bf16.xpose.msra.mxu0 0
      %4743 = vmatprep.subr.bf16.mxu0 0
      %4744 = vmatpush2.bf16.xpose.msra.mxu0 0
      %4745 = vmatprep.mubr.bf16.mxu0 0
      %4746 = vmatmul.mubr.bf16.gmra.mxu0 %v4708
      %v4747 = vpop.f32.mrf.mxu0
      %v4748 = vadd.f32 0.0, %v4747
      %v4749 = vpop.f32.mrf.mxu0
      %v4750 = vpop.f32.mrf.mxu0
      %v4751 = vadd.f32 0.0, %v4750
      %v4752 = vpop.f32.mrf.mxu0
      %4753 = vdwg.mxu0
      %v4755 = vsel %vm1667, %v4706, 0
      %v4758 = vsel %vm1667, %v4042, 0
      %4760 = vmatprep.subr.bf16.mxu0 0
      %4761 = vmatpush1.bf16.xpose.msra.mxu0 0
      %4762 = vmatprep.subr.bf16.mxu0 0
      %4763 = vmatpush1.bf16.xpose.msra.mxu0 0
      %4764 = vmatprep.subr.bf16.mxu0 0
      %4765 = vmatpush1.bf16.xpose.msra.mxu0 0
      %4766 = vmatprep.subr.bf16.mxu0 0
      %4767 = vmatpush1.bf16.xpose.msra.mxu0 0
      %4768 = vmatprep.subr.bf16.mxu0 0
      %4769 = vmatpush1.bf16.xpose.msra.mxu0 0
      %4770 = vmatprep.subr.bf16.mxu0 0
      %4771 = vmatpush1.bf16.xpose.msra.mxu0 0
      %4772 = vmatprep.subr.bf16.mxu0 0
      %4773 = vmatpush1.bf16.xpose.msra.mxu0 0
      %4774 = vmatprep.subr.bf16.mxu0 0
      %4775 = vmatpush1.bf16.xpose.msra.mxu0 %v4758
      %4776 = vmatprep.subr.bf16.mxu0 0
      %4777 = vmatpush2.bf16.xpose.msra.mxu0 0
      %4778 = vmatprep.subr.bf16.mxu0 0
      %4779 = vmatpush2.bf16.xpose.msra.mxu0 0
      %4780 = vmatprep.subr.bf16.mxu0 0
      %4781 = vmatpush2.bf16.xpose.msra.mxu0 0
      %4782 = vmatprep.subr.bf16.mxu0 0
      %4783 = vmatpush2.bf16.xpose.msra.mxu0 0
      %4784 = vmatprep.subr.bf16.mxu0 0
      %4785 = vmatpush2.bf16.xpose.msra.mxu0 0
      %4786 = vmatprep.subr.bf16.mxu0 0
      %4787 = vmatpush2.bf16.xpose.msra.mxu0 0
      %4788 = vmatprep.subr.bf16.mxu0 0
      %4789 = vmatpush2.bf16.xpose.msra.mxu0 0
      %4790 = vmatprep.subr.bf16.mxu0 0
      %4791 = vmatpush2.bf16.xpose.msra.mxu0 0
      %4792 = vmatprep.mubr.bf16.mxu0 0
      %4793 = vmatmul.mubr.bf16.gmra.mxu0 %v4755
      %v4794 = vpop.f32.mrf.mxu0
      %v4795 = vadd.f32 0.0, %v4794
      %v4796 = vpop.f32.mrf.mxu0
      %v4797 = vpop.f32.mrf.mxu0
      %v4798 = vadd.f32 0.0, %v4797
      %v4799 = vpop.f32.mrf.mxu0
      %4800 = vdwg.mxu0
      %4801 = vxpose.xlu0.b32.start [1/16] %v4748, 128
      %4802 = vxpose.xlu0.b32.cont [2/16] %v4751, 128
      %4803 = vxpose.xlu0.b32.cont [3/16] 0.0, 128
      %4804 = vxpose.xlu0.b32.cont [4/16] 0.0, 128
      %4805 = vxpose.xlu0.b32.cont [5/16] 0.0, 128
      %4806 = vxpose.xlu0.b32.cont [6/16] 0.0, 128
      %4807 = vxpose.xlu0.b32.cont [7/16] 0.0, 128
      %4808 = vxpose.xlu0.b32.cont [8/16] 0.0, 128
      %4809 = vxpose.xlu0.b32.cont [9/16] 0.0, 128
      %4810 = vxpose.xlu0.b32.cont [10/16] 0.0, 128
      %4811 = vxpose.xlu0.b32.cont [11/16] 0.0, 128
      %4812 = vxpose.xlu0.b32.cont [12/16] 0.0, 128
      %4813 = vxpose.xlu0.b32.cont [13/16] 0.0, 128
      %4814 = vxpose.xlu0.b32.cont [14/16] 0.0, 128
      %4815 = vxpose.xlu0.b32.cont [15/16] 0.0, 128
      %4816 = vxpose.xlu0.b32.end [16/16] 0.0, 128
      %v4817 = vpop.trf.xlu0
      %v4818 = vpop.trf.xlu0
      %v4819 = vpop.trf.xlu0
      %v4820 = vpop.trf.xlu0
      %v4821 = vpop.trf.xlu0
      %v4822 = vpop.trf.xlu0
      %v4823 = vpop.trf.xlu0
      %v4824 = vpop.trf.xlu0
      %v4825 = vpop.trf.xlu0
      %v4826 = vpop.trf.xlu0
      %v4827 = vpop.trf.xlu0
      %v4828 = vpop.trf.xlu0
      %v4829 = vpop.trf.xlu0
      %v4830 = vpop.trf.xlu0
      %v4831 = vpop.trf.xlu0
      %v4832 = vpop.trf.xlu0
      %4833 = vxpose.xlu0.b32.start [1/16] %v4795, 128
      %4834 = vxpose.xlu0.b32.cont [2/16] %v4798, 128
      %4835 = vxpose.xlu0.b32.cont [3/16] 0.0, 128
      %4836 = vxpose.xlu0.b32.cont [4/16] 0.0, 128
      %4837 = vxpose.xlu0.b32.cont [5/16] 0.0, 128
      %4838 = vxpose.xlu0.b32.cont [6/16] 0.0, 128
      %4839 = vxpose.xlu0.b32.cont [7/16] 0.0, 128
      %4840 = vxpose.xlu0.b32.cont [8/16] 0.0, 128
      %4841 = vxpose.xlu0.b32.cont [9/16] 0.0, 128
      %4842 = vxpose.xlu0.b32.cont [10/16] 0.0, 128
      %4843 = vxpose.xlu0.b32.cont [11/16] 0.0, 128
      %4844 = vxpose.xlu0.b32.cont [12/16] 0.0, 128
      %4845 = vxpose.xlu0.b32.cont [13/16] 0.0, 128
      %4846 = vxpose.xlu0.b32.cont [14/16] 0.0, 128
      %4847 = vxpose.xlu0.b32.cont [15/16] 0.0, 128
      %4848 = vxpose.xlu0.b32.end [16/16] 0.0, 128
      %v4849 = vpop.trf.xlu0
      %v4850 = vpop.trf.xlu0
      %v4851 = vpop.trf.xlu0
      %v4852 = vpop.trf.xlu0
      %v4853 = vpop.trf.xlu0
      %v4854 = vpop.trf.xlu0
      %v4855 = vpop.trf.xlu0
      %v4856 = vpop.trf.xlu0
      %v4857 = vpop.trf.xlu0
      %v4858 = vpop.trf.xlu0
      %v4859 = vpop.trf.xlu0
      %v4860 = vpop.trf.xlu0
      %v4861 = vpop.trf.xlu0
      %v4862 = vpop.trf.xlu0
      %v4863 = vpop.trf.xlu0
      %v4864 = vpop.trf.xlu0
      %v4865 = vcombine.high %v4817, 0.0
      %v4867 = vunpack.c.l.s4 1983009808
      %v4868 = vunpack.c.0.s8 %v4867
      %v4869 = vlaneseq
      %v4870 = vshrl.u32 %v4869, 7
      %v4871 = vsub.s32 %v4868, %v4870
      %v4872 = vrot.slane %v4817, %v4871
      %v4874 = vunpack.c.l.s4 1983009808
      %v4875 = vunpack.c.0.s8 %v4874
      %v4876 = vlaneseq
      %v4877 = vshrl.u32 %v4876, 7
      %v4878 = vsub.s32 %v4875, %v4877
      %v4879 = vrot.slane %v4865, %v4878
      %v4880 = vcombine.high %v4849, 0.0
      %v4882 = vunpack.c.l.s4 1983009808
      %v4883 = vunpack.c.0.s8 %v4882
      %v4884 = vlaneseq
      %v4885 = vshrl.u32 %v4884, 7
      %v4886 = vsub.s32 %v4883, %v4885
      %v4887 = vrot.slane %v4849, %v4886
      %v4889 = vunpack.c.l.s4 1983009808
      %v4890 = vunpack.c.0.s8 %v4889
      %v4891 = vlaneseq
      %v4892 = vshrl.u32 %v4891, 7
      %v4893 = vsub.s32 %v4890, %v4892
      %v4894 = vrot.slane %v4880, %v4893
      %v4895 = vcombine.low %v4872, %v4887
      %v4896 = vcombine.high %v4872, %v4887
      %v4898 = vunpack.c.l.s4 1934713408
      %v4899 = vunpack.c.0.s8 %v4898
      %v4900 = vlaneseq
      %v4901 = vshrl.u32 %v4900, 7
      %v4902 = vsub.s32 %v4899, %v4901
      %v4903 = vrot.slane %v4895, %v4902
      %v4905 = vunpack.c.l.s4 1934713408
      %v4906 = vunpack.c.0.s8 %v4905
      %v4907 = vlaneseq
      %v4908 = vshrl.u32 %v4907, 7
      %v4909 = vsub.s32 %v4906, %v4908
      %v4910 = vrot.slane %v4896, %v4909
      %v4911 = vcombine.low %v4879, %v4894
      %v4912 = vcombine.high %v4879, %v4894
      %v4914 = vunpack.c.l.s4 1934713408
      %v4915 = vunpack.c.0.s8 %v4914
      %v4916 = vlaneseq
      %v4917 = vshrl.u32 %v4916, 7
      %v4918 = vsub.s32 %v4915, %v4917
      %v4919 = vrot.slane %v4911, %v4918
      %v4921 = vunpack.c.l.s4 1934713408
      %v4922 = vunpack.c.0.s8 %v4921
      %v4923 = vlaneseq
      %v4924 = vshrl.u32 %v4923, 7
      %v4925 = vsub.s32 %v4922, %v4924
      %v4926 = vrot.slane %v4912, %v4925
      %v4927 = vcombine.high %v4903, 0.0
      %v4928 = vcombine.high %v4910, 0.0
      %v4929 = vcombine.high %v4919, 0.0
      %v4930 = vcombine.high %v4926, 0.0
      %v4931 = vcombine.low %v4903, %v4910
      %v4933 = vunpack.c.l.s4 1983009808
      %v4934 = vunpack.c.0.s8 %v4933
      %v4935 = vlaneseq
      %v4936 = vshrl.u32 %v4935, 7
      %v4937 = vsub.s32 %v4934, %v4936
      %v4938 = vrot.slane %v4931, %v4937
      %v4939 = vcombine.low %v4927, %v4928
      %v4941 = vunpack.c.l.s4 1983009808
      %v4942 = vunpack.c.0.s8 %v4941
      %v4943 = vlaneseq
      %v4944 = vshrl.u32 %v4943, 7
      %v4945 = vsub.s32 %v4942, %v4944
      %v4946 = vrot.slane %v4939, %v4945
      %v4947 = vcombine.low %v4919, %v4926
      %v4949 = vunpack.c.l.s4 1983009808
      %v4950 = vunpack.c.0.s8 %v4949
      %v4951 = vlaneseq
      %v4952 = vshrl.u32 %v4951, 7
      %v4953 = vsub.s32 %v4950, %v4952
      %v4954 = vrot.slane %v4947, %v4953
      %v4955 = vcombine.low %v4929, %v4930
      %v4957 = vunpack.c.l.s4 1983009808
      %v4958 = vunpack.c.0.s8 %v4957
      %v4959 = vlaneseq
      %v4960 = vshrl.u32 %v4959, 7
      %v4961 = vsub.s32 %v4958, %v4960
      %v4962 = vrot.slane %v4955, %v4961
      %v4963 = vcombine.low %v4938, %v4946
      %v4965 = vunpack.c.l.s4 1934713408
      %v4966 = vunpack.c.0.s8 %v4965
      %v4967 = vlaneseq
      %v4968 = vshrl.u32 %v4967, 7
      %v4969 = vsub.s32 %v4966, %v4968
      %v4970 = vrot.slane %v4963, %v4969
      %v4971 = vcombine.low %v4954, %v4962
      %v4973 = vunpack.c.l.s4 1934713408
      %v4974 = vunpack.c.0.s8 %v4973
      %v4975 = vlaneseq
      %v4976 = vshrl.u32 %v4975, 7
      %v4977 = vsub.s32 %v4974, %v4976
      %v4978 = vrot.slane %v4971, %v4977
      %v4979 = vcombine.low %v4970, %v4978
      %v4980 = vcombine.high %v4970, %v4978
      %4982 = vrot.lane.b32.xlu0 %v4980, 16
      %v4983 = vpop.permute.xlu0 %4982
      %v4985 = vsel %vm1580, %v4979, %v4983
      %v4986 = vpack.c.bf16 %v4985, %v4985
      %s4987 = scalar_lea.vmem %s6, 16
      %v4988 = vld [vmem:[%s4987] sm:$0xf]
      %v4989 = vld [vmem:[%s4987 + $0x4] sm:$0xf]
      %v4990 = vld [vmem:[%s4987 + $0x8] sm:$0xf]
      %v4991 = vld [vmem:[%s4987 + $0xc] sm:$0xf]
      %s4992 = scalar_lea.vmem %s7, 1
      %v4993 = vld [vmem:[%s4992] sm:$0x1]
      %v4995 = vlaneseq
      %v4996 = vshrl.u32 %v4995, 7
      %v4997 = vsub.s32 0, %v4996
      %v4998 = vrot.slane %v4993, %v4997
      %v5004 = vunpack.c.l.b16 %v4988
      %v5005 = vunpack.c.l.b16 %v4989
      %v5006 = vunpack.c.l.b16 %v4990
      %v5007 = vunpack.c.l.b16 %v4991
      %v5008 = vpack.c.b16 %v5005, %v5004
      %v5009 = vpack.c.b16 %v5007, %v5006
      %v5013 = vsel %vm536, %v4986, 0
      %5015 = vmatprep.subr.bf16.mxu0 0
      %5016 = vmatpush1.bf16.msra.mxu0 0
      %5017 = vmatprep.subr.bf16.mxu0 0
      %5018 = vmatpush1.bf16.msra.mxu0 0
      %5019 = vmatprep.subr.bf16.mxu0 0
      %5020 = vmatpush1.bf16.msra.mxu0 0
      %5021 = vmatprep.subr.bf16.mxu0 0
      %5022 = vmatpush1.bf16.msra.mxu0 0
      %5023 = vmatprep.subr.bf16.mxu0 0
      %5024 = vmatpush1.bf16.msra.mxu0 0
      %5025 = vmatprep.subr.bf16.mxu0 0
      %5026 = vmatpush1.bf16.msra.mxu0 0
      %5027 = vmatprep.subr.bf16.mxu0 0
      %5028 = vmatpush1.bf16.msra.mxu0 %v5009
      %5029 = vmatprep.subr.bf16.mxu0 0
      %5030 = vmatpush1.bf16.msra.mxu0 %v5008
      %5031 = vmatprep.subr.bf16.mxu0 0
      %5032 = vmatpush2.bf16.msra.mxu0 0
      %5033 = vmatprep.subr.bf16.mxu0 0
      %5034 = vmatpush2.bf16.msra.mxu0 0
      %5035 = vmatprep.subr.bf16.mxu0 0
      %5036 = vmatpush2.bf16.msra.mxu0 0
      %5037 = vmatprep.subr.bf16.mxu0 0
      %5038 = vmatpush2.bf16.msra.mxu0 0
      %5039 = vmatprep.subr.bf16.mxu0 0
      %5040 = vmatpush2.bf16.msra.mxu0 0
      %5041 = vmatprep.subr.bf16.mxu0 0
      %5042 = vmatpush2.bf16.msra.mxu0 0
      %5043 = vmatprep.subr.bf16.mxu0 0
      %5044 = vmatpush2.bf16.msra.mxu0 0
      %5045 = vmatprep.subr.bf16.mxu0 0
      %5046 = vmatpush2.bf16.msra.mxu0 0
      %5047 = vmatprep.mubr.bf16.mxu0 0
      %5048 = vmatmul.mubr.bf16.gmra.mxu0 %v5013
      %v5049 = vpop.f32.mrf.mxu0
      %v5050 = vadd.f32 %v4998, %v5049
      %v5051 = vpop.f32.mrf.mxu0
      %v5052 = vpop.f32.mrf.mxu0
      %v5053 = vpop.f32.mrf.mxu0
      %5054 = vdwg.mxu0
      %v5055 = vadd.f32 %v5050, %v2921
      %s5056 = scalar_lea.vmem %s8, 1
      %v5057 = vld [vmem:[%s5056] sm:$0x1]
      %s5058 = scalar_lea.vmem %s9, 1
      %v5059 = vld [vmem:[%s5058] sm:$0x1]
      %v5060 = vsel %vm536, %v5055, 0.0
      %5061 = vadd.xlane.f32.xlu0 %v5060
      %v5062 = vpop.xlane.xlu0 %5061
      %v5063 = vmul.f32 %v5062, %v540
      %v5064 = vsub.f32 %v5055, %v5063
      %v5065 = vmul.f32 %v5064, %v5064
      %v5066 = vsel %vm536, %v5065, 0.0
      %5067 = vadd.xlane.f32.xlu0 %v5066
      %v5068 = vpop.xlane.xlu0 %5067
      %v5069 = vmul.f32 %v5068, %v540
      %v5070 = vadd.f32 %v5069, 1e-12
      %v5071 = vrsqrt.pop %v5070
      %v5072 = vmul.f32 %v5064, %v5071
      %v5074 = vlaneseq
      %v5075 = vshrl.u32 %v5074, 7
      %v5076 = vsub.s32 0, %v5075
      %v5077 = vrot.slane %v5057, %v5076
      %v5079 = vmul.f32 %v5072, %v5077
      %v5081 = vlaneseq
      %v5082 = vshrl.u32 %v5081, 7
      %v5083 = vsub.s32 0, %v5082
      %v5084 = vrot.slane %v5059, %v5083
      %v5086 = vadd.f32 %v5079, %v5084
      %v5087 = vpack.c.bf16 %v5086, %v5086
      %s5088 = scalar_lea.vmem %s10, 16
      %v5089 = vld [vmem:[%s5088] sm:$0xf]
      %v5090 = vld [vmem:[%s5088 + $0x4] sm:$0xf]
      %v5091 = vld [vmem:[%s5088 + $0x8] sm:$0xf]
      %v5092 = vld [vmem:[%s5088 + $0xc] sm:$0xf]
      %s5093 = scalar_lea.vmem %s11, 1
      %v5094 = vld [vmem:[%s5093] sm:$0x1]
      %v5096 = vlaneseq
      %v5097 = vshrl.u32 %v5096, 7
      %v5098 = vsub.s32 0, %v5097
      %v5099 = vrot.slane %v5094, %v5098
      %v5105 = vunpack.c.l.b16 %v5089
      %v5106 = vunpack.c.l.b16 %v5090
      %v5107 = vunpack.c.l.b16 %v5091
      %v5108 = vunpack.c.l.b16 %v5092
      %v5109 = vpack.c.b16 %v5106, %v5105
      %v5110 = vpack.c.b16 %v5108, %v5107
      %v5114 = vsel %vm536, %v5087, 0
      %5116 = vmatprep.subr.bf16.mxu0 0
      %5117 = vmatpush1.bf16.msra.mxu0 0
      %5118 = vmatprep.subr.bf16.mxu0 0
      %5119 = vmatpush1.bf16.msra.mxu0 0
      %5120 = vmatprep.subr.bf16.mxu0 0
      %5121 = vmatpush1.bf16.msra.mxu0 0
      %5122 = vmatprep.subr.bf16.mxu0 0
      %5123 = vmatpush1.bf16.msra.mxu0 0
      %5124 = vmatprep.subr.bf16.mxu0 0
      %5125 = vmatpush1.bf16.msra.mxu0 0
      %5126 = vmatprep.subr.bf16.mxu0 0
      %5127 = vmatpush1.bf16.msra.mxu0 0
      %5128 = vmatprep.subr.bf16.mxu0 0
      %5129 = vmatpush1.bf16.msra.mxu0 %v5110
      %5130 = vmatprep.subr.bf16.mxu0 0
      %5131 = vmatpush1.bf16.msra.mxu0 %v5109
      %5132 = vmatprep.subr.bf16.mxu0 0
      %5133 = vmatpush2.bf16.msra.mxu0 0
      %5134 = vmatprep.subr.bf16.mxu0 0
      %5135 = vmatpush2.bf16.msra.mxu0 0
      %5136 = vmatprep.subr.bf16.mxu0 0
      %5137 = vmatpush2.bf16.msra.mxu0 0
      %5138 = vmatprep.subr.bf16.mxu0 0
      %5139 = vmatpush2.bf16.msra.mxu0 0
      %5140 = vmatprep.subr.bf16.mxu0 0
      %5141 = vmatpush2.bf16.msra.mxu0 0
      %5142 = vmatprep.subr.bf16.mxu0 0
      %5143 = vmatpush2.bf16.msra.mxu0 0
      %5144 = vmatprep.subr.bf16.mxu0 0
      %5145 = vmatpush2.bf16.msra.mxu0 0
      %5146 = vmatprep.subr.bf16.mxu0 0
      %5147 = vmatpush2.bf16.msra.mxu0 0
      %5148 = vmatprep.mubr.bf16.mxu0 0
      %5149 = vmatmul.mubr.bf16.gmra.mxu0 %v5114
      %v5150 = vpop.f32.mrf.mxu0
      %v5151 = vadd.f32 %v5099, %v5150
      %v5152 = vpop.f32.mrf.mxu0
      %v5153 = vpop.f32.mrf.mxu0
      %v5154 = vpop.f32.mrf.mxu0
      %5155 = vdwg.mxu0
      %v5156 = vmul.f32 %v5151, 0.5
      %v5157 = vmul.f32 %v5151, 0.044715
      %v5158 = vmul.f32 %v5157, %v5151
      %v5159 = vmul.f32 %v5158, %v5151
      %v5160 = vadd.f32 %v5151, %v5159
      %v5161 = vmul.f32 %v5160, 0.7978846
      %v5162 = vtanh.pop %v5161
      %v5163 = vadd.f32 %v5162, 1.0
      %v5164 = vmul.f32 %v5156, %v5163
      %v5165 = vpack.c.bf16 %v5164, %v5164
      %s5166 = scalar_lea.vmem %s12, 32
      %v5167 = vld [vmem:[%s5166] sm:$0xf]
      %v5168 = vld [vmem:[%s5166 + $0x4] sm:$0xf]
      %v5169 = vld [vmem:[%s5166 + $0x8] sm:$0xf]
      %v5170 = vld [vmem:[%s5166 + $0xc] sm:$0xf]
      %v5171 = vld [vmem:[%s5166 + $0x10] sm:$0xf]
      %v5172 = vld [vmem:[%s5166 + $0x14] sm:$0xf]
      %v5173 = vld [vmem:[%s5166 + $0x18] sm:$0xf]
      %v5174 = vld [vmem:[%s5166 + $0x1c] sm:$0xf]
      %s5175 = scalar_lea.vmem %s13, 1
      %v5176 = vld [vmem:[%s5175] sm:$0x1]
      %v5178 = vlaneseq
      %v5179 = vshrl.u32 %v5178, 7
      %v5180 = vsub.s32 0, %v5179
      %v5181 = vrot.slane %v5176, %v5180
      %v5191 = vunpack.c.l.b16 %v5167
      %v5192 = vunpack.c.l.b16 %v5168
      %v5193 = vunpack.c.l.b16 %v5169
      %v5194 = vunpack.c.l.b16 %v5170
      %v5195 = vunpack.c.l.b16 %v5171
      %v5196 = vunpack.c.l.b16 %v5172
      %v5197 = vunpack.c.l.b16 %v5173
      %v5198 = vunpack.c.l.b16 %v5174
      %v5199 = vpack.c.b16 %v5192, %v5191
      %v5200 = vpack.c.b16 %v5194, %v5193
      %v5201 = vpack.c.b16 %v5196, %v5195
      %v5202 = vpack.c.b16 %v5198, %v5197
      %v5208 = vsel %vm2848, %v5165, 0
      %5210 = vmatprep.subr.bf16.mxu0 0
      %5211 = vmatpush1.bf16.msra.mxu0 0
      %5212 = vmatprep.subr.bf16.mxu0 0
      %5213 = vmatpush1.bf16.msra.mxu0 0
      %5214 = vmatprep.subr.bf16.mxu0 0
      %5215 = vmatpush1.bf16.msra.mxu0 0
      %5216 = vmatprep.subr.bf16.mxu0 0
      %5217 = vmatpush1.bf16.msra.mxu0 0
      %5218 = vmatprep.subr.bf16.mxu0 0
      %5219 = vmatpush1.bf16.msra.mxu0 %v5202
      %5220 = vmatprep.subr.bf16.mxu0 0
      %5221 = vmatpush1.bf16.msra.mxu0 %v5201
      %5222 = vmatprep.subr.bf16.mxu0 0
      %5223 = vmatpush1.bf16.msra.mxu0 %v5200
      %5224 = vmatprep.subr.bf16.mxu0 0
      %5225 = vmatpush1.bf16.msra.mxu0 %v5199
      %5226 = vmatprep.subr.bf16.mxu0 0
      %5227 = vmatpush2.bf16.msra.mxu0 0
      %5228 = vmatprep.subr.bf16.mxu0 0
      %5229 = vmatpush2.bf16.msra.mxu0 0
      %5230 = vmatprep.subr.bf16.mxu0 0
      %5231 = vmatpush2.bf16.msra.mxu0 0
      %5232 = vmatprep.subr.bf16.mxu0 0
      %5233 = vmatpush2.bf16.msra.mxu0 0
      %5234 = vmatprep.subr.bf16.mxu0 0
      %5235 = vmatpush2.bf16.msra.mxu0 0
      %5236 = vmatprep.subr.bf16.mxu0 0
      %5237 = vmatpush2.bf16.msra.mxu0 0
      %5238 = vmatprep.subr.bf16.mxu0 0
      %5239 = vmatpush2.bf16.msra.mxu0 0
      %5240 = vmatprep.subr.bf16.mxu0 0
      %5241 = vmatpush2.bf16.msra.mxu0 0
      %5242 = vmatprep.mubr.bf16.mxu0 0
      %5243 = vmatmul.mubr.bf16.gmra.mxu0 %v5208
      %v5244 = vpop.f32.mrf.mxu0
      %v5245 = vadd.f32 %v5181, %v5244
      %v5246 = vpop.f32.mrf.mxu0
      %v5247 = vpop.f32.mrf.mxu0
      %v5248 = vpop.f32.mrf.mxu0
      %5249 = vdwg.mxu0
      %v5250 = vadd.f32 %v5245, %v5086
      %s5251 = scalar_lea.vmem %s14, 1
      %v5252 = vld [vmem:[%s5251] sm:$0x1]
      %s5253 = scalar_lea.vmem %s15, 1
      %v5254 = vld [vmem:[%s5253] sm:$0x1]
      %v5255 = vsel %vm536, %v5250, 0.0
      %5256 = vadd.xlane.f32.xlu0 %v5255
      %v5257 = vpop.xlane.xlu0 %5256
      %v5258 = vmul.f32 %v5257, %v540
      %v5259 = vsub.f32 %v5250, %v5258
      %v5260 = vmul.f32 %v5259, %v5259
      %v5261 = vsel %vm536, %v5260, 0.0
      %5262 = vadd.xlane.f32.xlu0 %v5261
      %v5263 = vpop.xlane.xlu0 %5262
      %v5264 = vmul.f32 %v5263, %v540
      %v5265 = vadd.f32 %v5264, 1e-12
      %v5266 = vrsqrt.pop %v5265
      %v5267 = vmul.f32 %v5259, %v5266
      %v5269 = vlaneseq
      %v5270 = vshrl.u32 %v5269, 7
      %v5271 = vsub.s32 0, %v5270
      %v5272 = vrot.slane %v5252, %v5271
      %v5274 = vmul.f32 %v5267, %v5272
      %v5276 = vlaneseq
      %v5277 = vshrl.u32 %v5276, 7
      %v5278 = vsub.s32 0, %v5277
      %v5279 = vrot.slane %v5254, %v5278
      %v5281 = vadd.f32 %v5274, %v5279
      %5282 = vst.msk [vmem:[%s530] sm:$0xff] %vm536, %v5281
      %p5283 = scmp.lt.s32.totalorder %s27, 1
      %s5284 = scalar_select %p5283, %s27, 1
      %s5285 = smul.addr %s5284, 8
      %s5286 = scalar_lea.vmem %s16, %s5285
      // Predicated region
      $region85: #{seq_encoder_forward.1} parent=83 // pred_check
        %p5287 = pneg %p391
      $region86: #{seq_encoder_forward.1} parent=83 // pred_check_branch
        %5289 = sbr.rel (%p5287) target = $region88
      $region87: #{seq_encoder_forward.1} parent=83 // pred_region
        _
      $region88: #{seq_encoder_forward.1} parent=83 // pred_fallthru
        _
    $region84: #{seq_encoder_forward.1} parent=5 // pred_fallthru
      _
    %p5290 = scmp.le.s32.totalorder 2, %s22
    // Predicated region
    $region89: #{seq_encoder_forward.1} parent=5 // pred_check
      %p5291 = pneg %p5290
    $region90: #{seq_encoder_forward.1} parent=5 // pred_check_branch
      %5293 = sbr.rel (%p5291) target = $region92
    $region91: #{seq_encoder_forward.1} parent=5 // pred_region
      %s5294 = ssub.s32 %s22, 2
      // Predicated region
      $region93: #{seq_encoder_forward.1} parent=91 // pred_check
        %p5295 = pneg %p397
      $region94: #{seq_encoder_forward.1} parent=91 // pred_check_branch
        %5297 = sbr.rel (%p5295) target = $region96
      $region95: #{seq_encoder_forward.1} parent=91 // pred_region
        %p5298 = scmp.lt.s32.totalorder %s28, 1
        %s5299 = scalar_select %p5298, %s28, 1
        %s5300 = smul.addr %s5299, 8
        %s5301 = scalar_lea.vmem %s16, %s5300
      $region96: #{seq_encoder_forward.1} parent=91 // pred_fallthru
        _
    $region92: #{seq_encoder_forward.1} parent=5 // pred_fallthru
      _
  $region6: #{seq_encoder_forward.1} parent=0 // loop_footer
    %s26 = sadd.s32 1, %s22
  $region7: #{seq_encoder_forward.1} parent=0 // loop_footer_branch
    %21 = sbr.rel target = $region3
  $region8: #{seq_encoder_forward.1} parent=0 // loop_exit
    _

</llo_original>
